<compile_context>
chip_gen: v6e
topology: v6e:2x2x1
jax: 0.10.0
libtpu: 0.0.40
codegen_flags: <defaults>
</compile_context>

<pallas_src>
import functools

import jax
import jax.numpy as jnp
import numpy as np
from jax.experimental import pallas as pl
from jax.experimental.pallas import tpu as pltpu

GATE_PAD = 128   # 3 * hidden_dim (96) padded to a full lane group
PAIR_PAD = 128   # n_pairs (28) padded to a full lane group
OUT_PAD = 128    # n_nodes * n_nodes (64) padded to a full lane group


def rnn_decoder_kernel(x_ref, wlp_ref, blp_ref, wih_ref, whh_ref, bi_ref, bhn_ref,
                       wd_ref, gb_ref, scat_ref, out_ref,
                       *, n_nodes, n_layers, hidden_dim):
    f32 = jnp.float32
    H = hidden_dim
    T = n_nodes
    Bp = x_ref.shape[0]          # sublane-padded batch (multiple of 8)

    # latent_proj: [Bp, L] @ [L, H] + [1, H]
    h0 = jnp.dot(x_ref[...], wlp_ref[...], preferred_element_type=f32) + blp_ref[...]

    # ---- hoist per-layer weights / bias broadcasts out of the wavefront ----
    w_ih = [wih_ref[l] for l in range(n_layers)]                       # [H, GATE_PAD]
    w_hh = [whh_ref[l] for l in range(n_layers)]                       # [H, GATE_PAD]
    b_i = [jnp.broadcast_to(bi_ref[l], (Bp, GATE_PAD)) for l in range(n_layers)]
    b_hn = [jnp.broadcast_to(bhn_ref[l], (Bp, H)) for l in range(n_layers)]

    def gru_step(h_prev, gi, w_hh_l, b_hn_l):
        # gi: [Bp, GATE_PAD] (gate order n|r|z);  h_prev: [Bp, H]
        gh = jnp.dot(h_prev, w_hh_l, preferred_element_type=f32)       # [Bp, GATE_PAD]
        s = gi + gh
        sig = jax.nn.sigmoid(s)            # ONE fused EUP pass; n/pad lanes unused
        r = sig[:, H:2 * H]
        z = sig[:, 2 * H:3 * H]
        # n-gate lives in lanes 0:H -> already aligned with h / b_hn (no lane move)
        n = jnp.tanh(gi[:, 0:H] + r * (gh[:, 0:H] + b_hn_l))
        return n + z * (h_prev - n)        # == (1-z)*n + z*h, one fewer dependent op

    # layer-0 input: x.unsqueeze(1).repeat(1, T, 1) -> identical at every timestep,
    # so a single [Bp,H]@[H,3H] matmul covers all T steps.
    gi0 = jnp.dot(h0, w_ih[0], preferred_element_type=f32) + b_i[0]

    # ---- wavefront schedule over (layer, timestep): layer l does timestep t at
    # wavefront step t + l.  Critical path: T + n_layers - 1 dependent GRU steps. ----
    h = [jnp.zeros((Bp, H), f32) for _ in range(n_layers)]
    gi_pend = [None] * n_layers            # next-timestep input projection per layer
    acc = jnp.zeros((Bp, H), f32)          # running sum for out.mean(dim=1)

    for step in range(T + n_layers - 1):
        # deepest layer first so it consumes gi_pend[l] BEFORE layer l-1 overwrites it
        for l in range(n_layers - 1, -1, -1):
            t = step - l
            if 0 <= t < T:
                gi = gi0 if l == 0 else gi_pend[l]
                h[l] = gru_step(h[l], gi, w_hh[l], b_hn[l])
                if l + 1 < n_layers:
                    # issue next layer's input projection as soon as h_t is ready
                    gi_pend[l + 1] = (jnp.dot(h[l], w_ih[l + 1],
                                              preferred_element_type=f32) + b_i[l + 1])
                else:
                    acc = acc + h[l]

    mean_out = acc * (1.0 / T)

    # adj_proj folded into the class-0 minus class-1 difference (gumbel noise + bias
    # difference pre-folded in glue).  hard gumbel-softmax class-0 indicator:
    # argmax == 0  <=>  l0 - l1 >= 0 (ties -> class 0, matching torch.argmax).
    l_diff = jnp.dot(mean_out, wd_ref[...], preferred_element_type=f32) + gb_ref[...]
    hard0 = (l_diff >= 0.0).astype(f32)                                 # [Bp, PAIR_PAD]

    # symmetric upper-triangular scatter as a one-hot matmul:
    # scat[k, i*N+j] = scat[k, j*N+i] = 1 for the k-th (i<j) pair; padded rows are zero.
    out_ref[...] = jnp.dot(hard0, scat_ref[...], preferred_element_type=f32)


def rnn_decoder_forward(x, params, g_diff, *, n_nodes, n_layers, hidden_dim):
    B = x.shape[0]
    B_pad = max(8, ((B + 7) // 8) * 8)     # full-sublane batch
    (wlp, blp, wih_f, whh_f, bi_f, bhn, w_diff, b_diff, scat) = params

    # fold the (b0 - b1) bias into the gumbel-noise difference once, in glue
    gb_diff = (g_diff + b_diff).astype(jnp.float32)                     # [B, PAIR_PAD]

    # sublane-pad the batch so every per-step vreg / the final store is full-sublane
    x_pad = jnp.zeros((B_pad, x.shape[1]), jnp.float32).at[:B].set(x.astype(jnp.float32))
    gb_pad = jnp.zeros((B_pad, PAIR_PAD), jnp.float32).at[:B].set(gb_diff)

    kernel = functools.partial(rnn_decoder_kernel, n_nodes=n_nodes,
                               n_layers=n_layers, hidden_dim=hidden_dim)
    n_inputs = 10
    adj_flat = pl.pallas_call(
        kernel,
        out_shape=jax.ShapeDtypeStruct((B_pad, OUT_PAD), jnp.float32),
        in_specs=[pl.BlockSpec(memory_space=pltpu.MemorySpace.VMEM)] * n_inputs,
        out_specs=pl.BlockSpec(memory_space=pltpu.MemorySpace.VMEM),
    )(x_pad, wlp, blp, wih_f, whh_f, bi_f, bhn, w_diff, gb_pad, scat)

    nn_sq = n_nodes * n_nodes
    return adj_flat[:B, :nn_sq].reshape(B, n_nodes, n_nodes)


def make_params(key, latent_dim, hidden_dim, n_layers, n_nodes):
    H = hidden_dim
    n_pairs = n_nodes * (n_nodes - 1) // 2
    assert 3 * H <= GATE_PAD and n_pairs <= PAIR_PAD and n_nodes * n_nodes <= OUT_PAD

    ks = jax.random.split(key, 10)
    s = 1.0 / np.sqrt(H)

    wlp = jax.random.uniform(ks[0], (latent_dim, H), jnp.float32, -s, s)
    blp = jax.random.uniform(ks[1], (1, H), jnp.float32, -s, s)

    # raw per-gate GRU params (PyTorch gate order r, z, n), transposed for x @ W
    wih = np.asarray(jax.random.uniform(ks[2], (n_layers, 3, H, H), jnp.float32, -s, s))
    whh = np.asarray(jax.random.uniform(ks[3], (n_layers, 3, H, H), jnp.float32, -s, s))
    bih = np.asarray(jax.random.uniform(ks[4], (n_layers, 3, H), jnp.float32, -s, s))
    bhh = np.asarray(jax.random.uniform(ks[5], (n_layers, 3, H), jnp.float32, -s, s))

    # fuse the 3 gates along lanes in n|r|z order -> [n_layers, H, 3H], zero-pad lanes
    def fuse_nrz(w):
        return np.concatenate([w[:, 2], w[:, 0], w[:, 1]], axis=-1)     # n|r|z

    wih_f = np.zeros((n_layers, H, GATE_PAD), np.float32)
    wih_f[:, :, :3 * H] = fuse_nrz(wih)
    whh_f = np.zeros((n_layers, H, GATE_PAD), np.float32)
    whh_f[:, :, :3 * H] = fuse_nrz(whh)

    # pre-fold r/z hidden biases into the input-side bias; keep b_hn separate (r-gated)
    bi_f = np.zeros((n_layers, 1, GATE_PAD), np.float32)
    bi_f[:, 0, 0:H] = bih[:, 2]                      # n (input side only)
    bi_f[:, 0, H:2 * H] = bih[:, 0] + bhh[:, 0]      # r
    bi_f[:, 0, 2 * H:3 * H] = bih[:, 1] + bhh[:, 1]  # z
    bhn = bhh[:, 2].reshape(n_layers, 1, H).astype(np.float32)

    # adjacency projection folded to the class-0 minus class-1 difference, lane-padded
    w0 = np.asarray(jax.random.uniform(ks[6], (H, n_pairs), jnp.float32, -s, s))
    w1 = np.asarray(jax.random.uniform(ks[7], (H, n_pairs), jnp.float32, -s, s))
    b0 = np.asarray(jax.random.uniform(ks[8], (n_pairs,), jnp.float32, -s, s))
    b1 = np.asarray(jax.random.uniform(ks[9], (n_pairs,), jnp.float32, -s, s))
    w_diff = np.zeros((H, PAIR_PAD), np.float32)
    w_diff[:, :n_pairs] = w0 - w1
    b_diff = np.zeros((1, PAIR_PAD), np.float32)
    b_diff[0, :n_pairs] = b0 - b1

    # one-hot symmetric scatter implementing adj[:, iu, ju] = logits ; adj + adj.T
    # (padded rows MUST stay exactly zero: pad lanes of hard0 are 1.0 by construction)
    iu, ju = np.triu_indices(n_nodes, k=1)
    scat = np.zeros((PAIR_PAD, OUT_PAD), np.float32)
    scat[np.arange(n_pairs), iu * n_nodes + ju] = 1.0
    scat[np.arange(n_pairs), ju * n_nodes + iu] = 1.0

    return (wlp, blp, jnp.asarray(wih_f), jnp.asarray(whh_f), jnp.asarray(bi_f),
            jnp.asarray(bhn), jnp.asarray(w_diff), jnp.asarray(b_diff), jnp.asarray(scat))


if __name__ == "__main__":
    B, latent_dim, hidden_dim, n_layers, n_nodes = 2, 16, 32, 2, 8
    n_pairs = n_nodes * (n_nodes - 1) // 2

    key = jax.random.PRNGKey(0)
    kx, kp, kg = jax.random.split(key, 3)

    x = jax.random.normal(kx, (B, latent_dim), jnp.float32)
    params = make_params(kp, latent_dim, hidden_dim, n_layers, n_nodes)

    # gumbel noise for the hard gumbel-softmax (sampled in glue, only the class
    # difference g0 - g1 matters; lane-padded to PAIR_PAD and consumed in-kernel)
    g = jax.random.gumbel(kg, (B, n_pairs, 2), jnp.float32)
    g_diff = jnp.zeros((B, PAIR_PAD), jnp.float32).at[:, :n_pairs].set(g[..., 0] - g[..., 1])

    adj = rnn_decoder_forward(x, params, g_diff, n_nodes=n_nodes,
                              n_layers=n_layers, hidden_dim=hidden_dim)
    adj = jax.block_until_ready(adj)

    # sanity: symmetric, zero diagonal, binary entries
    a = np.asarray(adj)
    assert a.shape == (B, n_nodes, n_nodes)
    assert np.allclose(a, np.transpose(a, (0, 2, 1)))
    assert np.allclose(np.diagonal(a, axis1=1, axis2=2), 0.0)
    assert np.all((a == 0.0) | (a == 1.0))

    print("KERNEL_OK")
</pallas_src>

<mosaic_0001>
module attributes {stable_mosaic.version = 11 : i64} {
  func.func @rnn_decoder_kernel(%arg0: memref<8x16xf32, #tpu.memory_space<vmem>>, %arg1: memref<16x32xf32, #tpu.memory_space<vmem>>, %arg2: memref<1x32xf32, #tpu.memory_space<vmem>>, %arg3: memref<2x32x128xf32, #tpu.memory_space<vmem>>, %arg4: memref<2x32x128xf32, #tpu.memory_space<vmem>>, %arg5: memref<2x1x128xf32, #tpu.memory_space<vmem>>, %arg6: memref<2x1x32xf32, #tpu.memory_space<vmem>>, %arg7: memref<32x128xf32, #tpu.memory_space<vmem>>, %arg8: memref<8x128xf32, #tpu.memory_space<vmem>>, %arg9: memref<128x128xf32, #tpu.memory_space<vmem>>, %arg10: memref<8x128xf32, #tpu.memory_space<vmem>>) attributes {dimension_semantics = [], scalar_prefetch = 0 : i64, scratch_operands = 0 : i64, tpu.core_type = #tpu.core_type<tc>} {
    %c0 = arith.constant 0 : index
    %c0_0 = arith.constant 0 : index
    %0 = vector.load %arg0[%c0, %c0_0] : memref<8x16xf32, #tpu.memory_space<vmem>>, vector<8x16xf32>
    %c0_1 = arith.constant 0 : index
    %c0_2 = arith.constant 0 : index
    %1 = vector.load %arg1[%c0_1, %c0_2] : memref<16x32xf32, #tpu.memory_space<vmem>>, vector<16x32xf32>
    %cst = arith.constant dense<0.000000e+00> : vector<8x32xf32>
    %2 = tpu.matmul %0, %1, %cst {dimension_numbers = #tpu.dot_dimension_numbers<[1], [0], [0], [1], [0, 0, 1, 1], [], []>} : vector<8x16xf32>, vector<16x32xf32>, vector<8x32xf32> -> vector<8x32xf32>
    %c0_3 = arith.constant 0 : index
    %c0_4 = arith.constant 0 : index
    %3 = vector.load %arg2[%c0_3, %c0_4] : memref<1x32xf32, #tpu.memory_space<vmem>>, vector<1x32xf32>
    %4 = vector.broadcast %3 : vector<1x32xf32> to vector<8x32xf32>
    %5 = arith.addf %2, %4 : vector<8x32xf32>
    %c0_5 = arith.constant 0 : index
    %c0_6 = arith.constant 0 : index
    %c0_7 = arith.constant 0 : index
    %6 = vector.load %arg3[%c0_5, %c0_6, %c0_7] : memref<2x32x128xf32, #tpu.memory_space<vmem>>, vector<1x32x128xf32>
    %7 = vector.shape_cast %6 : vector<1x32x128xf32> to vector<32x128xf32>
    %c1 = arith.constant 1 : index
    %c0_8 = arith.constant 0 : index
    %c0_9 = arith.constant 0 : index
    %8 = vector.load %arg3[%c1, %c0_8, %c0_9] : memref<2x32x128xf32, #tpu.memory_space<vmem>>, vector<1x32x128xf32>
    %9 = vector.shape_cast %8 : vector<1x32x128xf32> to vector<32x128xf32>
    %c0_10 = arith.constant 0 : index
    %c0_11 = arith.constant 0 : index
    %c0_12 = arith.constant 0 : index
    %10 = vector.load %arg4[%c0_10, %c0_11, %c0_12] : memref<2x32x128xf32, #tpu.memory_space<vmem>>, vector<1x32x128xf32>
    %11 = vector.shape_cast %10 : vector<1x32x128xf32> to vector<32x128xf32>
    %c1_13 = arith.constant 1 : index
    %c0_14 = arith.constant 0 : index
    %c0_15 = arith.constant 0 : index
    %12 = vector.load %arg4[%c1_13, %c0_14, %c0_15] : memref<2x32x128xf32, #tpu.memory_space<vmem>>, vector<1x32x128xf32>
    %13 = vector.shape_cast %12 : vector<1x32x128xf32> to vector<32x128xf32>
    %c0_16 = arith.constant 0 : index
    %c0_17 = arith.constant 0 : index
    %c0_18 = arith.constant 0 : index
    %14 = vector.load %arg5[%c0_16, %c0_17, %c0_18] : memref<2x1x128xf32, #tpu.memory_space<vmem>>, vector<1x1x128xf32>
    %15 = vector.shape_cast %14 : vector<1x1x128xf32> to vector<1x128xf32>
    %16 = vector.shape_cast %15 : vector<1x128xf32> to vector<1x128xf32>
    %17 = vector.broadcast %16 : vector<1x128xf32> to vector<8x128xf32>
    %c1_19 = arith.constant 1 : index
    %c0_20 = arith.constant 0 : index
    %c0_21 = arith.constant 0 : index
    %18 = vector.load %arg5[%c1_19, %c0_20, %c0_21] : memref<2x1x128xf32, #tpu.memory_space<vmem>>, vector<1x1x128xf32>
    %19 = vector.shape_cast %18 : vector<1x1x128xf32> to vector<1x128xf32>
    %20 = vector.shape_cast %19 : vector<1x128xf32> to vector<1x128xf32>
    %21 = vector.broadcast %20 : vector<1x128xf32> to vector<8x128xf32>
    %c0_22 = arith.constant 0 : index
    %c0_23 = arith.constant 0 : index
    %c0_24 = arith.constant 0 : index
    %22 = vector.load %arg6[%c0_22, %c0_23, %c0_24] : memref<2x1x32xf32, #tpu.memory_space<vmem>>, vector<1x1x32xf32>
    %23 = vector.shape_cast %22 : vector<1x1x32xf32> to vector<1x32xf32>
    %24 = vector.shape_cast %23 : vector<1x32xf32> to vector<1x32xf32>
    %25 = vector.broadcast %24 : vector<1x32xf32> to vector<8x32xf32>
    %c1_25 = arith.constant 1 : index
    %c0_26 = arith.constant 0 : index
    %c0_27 = arith.constant 0 : index
    %26 = vector.load %arg6[%c1_25, %c0_26, %c0_27] : memref<2x1x32xf32, #tpu.memory_space<vmem>>, vector<1x1x32xf32>
    %27 = vector.shape_cast %26 : vector<1x1x32xf32> to vector<1x32xf32>
    %28 = vector.shape_cast %27 : vector<1x32xf32> to vector<1x32xf32>
    %29 = vector.broadcast %28 : vector<1x32xf32> to vector<8x32xf32>
    %cst_28 = arith.constant dense<0.000000e+00> : vector<8x128xf32>
    %30 = tpu.matmul %5, %7, %cst_28 {dimension_numbers = #tpu.dot_dimension_numbers<[1], [0], [0], [1], [0, 0, 1, 1], [], []>} : vector<8x32xf32>, vector<32x128xf32>, vector<8x128xf32> -> vector<8x128xf32>
    %31 = arith.addf %30, %17 : vector<8x128xf32>
    %cst_29 = arith.constant 0.000000e+00 : f32
    %32 = vector.broadcast %cst_29 : f32 to vector<8x32xf32>
    %cst_30 = arith.constant 0.000000e+00 : f32
    %33 = vector.broadcast %cst_30 : f32 to vector<8x32xf32>
    %cst_31 = arith.constant 0.000000e+00 : f32
    %34 = vector.broadcast %cst_31 : f32 to vector<8x32xf32>
    %cst_32 = arith.constant dense<0.000000e+00> : vector<8x128xf32>
    %35 = tpu.matmul %32, %11, %cst_32 {dimension_numbers = #tpu.dot_dimension_numbers<[1], [0], [0], [1], [0, 0, 1, 1], [], []>} : vector<8x32xf32>, vector<32x128xf32>, vector<8x128xf32> -> vector<8x128xf32>
    %36 = arith.addf %31, %35 : vector<8x128xf32>
    %37 = arith.negf %36 : vector<8x128xf32>
    %38 = math.exp %37 : vector<8x128xf32>
    %cst_33 = arith.constant 1.000000e+00 : f32
    %39 = vector.broadcast %cst_33 : f32 to vector<8x128xf32>
    %40 = arith.addf %39, %38 : vector<8x128xf32>
    %41 = arith.divf %39, %40 : vector<8x128xf32>
    %42 = vector.extract_strided_slice %41 {offsets = [0, 32], sizes = [8, 32], strides = [1, 1]} : vector<8x128xf32> to vector<8x32xf32>
    %43 = vector.extract_strided_slice %41 {offsets = [0, 64], sizes = [8, 32], strides = [1, 1]} : vector<8x128xf32> to vector<8x32xf32>
    %44 = vector.extract_strided_slice %31 {offsets = [0, 0], sizes = [8, 32], strides = [1, 1]} : vector<8x128xf32> to vector<8x32xf32>
    %45 = vector.extract_strided_slice %35 {offsets = [0, 0], sizes = [8, 32], strides = [1, 1]} : vector<8x128xf32> to vector<8x32xf32>
    %46 = arith.addf %45, %25 : vector<8x32xf32>
    %47 = arith.mulf %42, %46 : vector<8x32xf32>
    %48 = arith.addf %44, %47 : vector<8x32xf32>
    %49 = math.tanh %48 : vector<8x32xf32>
    %50 = arith.subf %32, %49 : vector<8x32xf32>
    %51 = arith.mulf %43, %50 : vector<8x32xf32>
    %52 = arith.addf %49, %51 : vector<8x32xf32>
    %cst_34 = arith.constant dense<0.000000e+00> : vector<8x128xf32>
    %53 = tpu.matmul %52, %9, %cst_34 {dimension_numbers = #tpu.dot_dimension_numbers<[1], [0], [0], [1], [0, 0, 1, 1], [], []>} : vector<8x32xf32>, vector<32x128xf32>, vector<8x128xf32> -> vector<8x128xf32>
    %54 = arith.addf %53, %21 : vector<8x128xf32>
    %cst_35 = arith.constant dense<0.000000e+00> : vector<8x128xf32>
    %55 = tpu.matmul %33, %13, %cst_35 {dimension_numbers = #tpu.dot_dimension_numbers<[1], [0], [0], [1], [0, 0, 1, 1], [], []>} : vector<8x32xf32>, vector<32x128xf32>, vector<8x128xf32> -> vector<8x128xf32>
    %56 = arith.addf %54, %55 : vector<8x128xf32>
    %57 = arith.negf %56 : vector<8x128xf32>
    %58 = math.exp %57 : vector<8x128xf32>
    %cst_36 = arith.constant 1.000000e+00 : f32
    %59 = vector.broadcast %cst_36 : f32 to vector<8x128xf32>
    %60 = arith.addf %59, %58 : vector<8x128xf32>
    %61 = arith.divf %59, %60 : vector<8x128xf32>
    %62 = vector.extract_strided_slice %61 {offsets = [0, 32], sizes = [8, 32], strides = [1, 1]} : vector<8x128xf32> to vector<8x32xf32>
    %63 = vector.extract_strided_slice %61 {offsets = [0, 64], sizes = [8, 32], strides = [1, 1]} : vector<8x128xf32> to vector<8x32xf32>
    %64 = vector.extract_strided_slice %54 {offsets = [0, 0], sizes = [8, 32], strides = [1, 1]} : vector<8x128xf32> to vector<8x32xf32>
    %65 = vector.extract_strided_slice %55 {offsets = [0, 0], sizes = [8, 32], strides = [1, 1]} : vector<8x128xf32> to vector<8x32xf32>
    %66 = arith.addf %65, %29 : vector<8x32xf32>
    %67 = arith.mulf %62, %66 : vector<8x32xf32>
    %68 = arith.addf %64, %67 : vector<8x32xf32>
    %69 = math.tanh %68 : vector<8x32xf32>
    %70 = arith.subf %33, %69 : vector<8x32xf32>
    %71 = arith.mulf %63, %70 : vector<8x32xf32>
    %72 = arith.addf %69, %71 : vector<8x32xf32>
    %73 = arith.addf %34, %72 : vector<8x32xf32>
    %cst_37 = arith.constant dense<0.000000e+00> : vector<8x128xf32>
    %74 = tpu.matmul %52, %11, %cst_37 {dimension_numbers = #tpu.dot_dimension_numbers<[1], [0], [0], [1], [0, 0, 1, 1], [], []>} : vector<8x32xf32>, vector<32x128xf32>, vector<8x128xf32> -> vector<8x128xf32>
    %75 = arith.addf %31, %74 : vector<8x128xf32>
    %76 = arith.negf %75 : vector<8x128xf32>
    %77 = math.exp %76 : vector<8x128xf32>
    %cst_38 = arith.constant 1.000000e+00 : f32
    %78 = vector.broadcast %cst_38 : f32 to vector<8x128xf32>
    %79 = arith.addf %78, %77 : vector<8x128xf32>
    %80 = arith.divf %78, %79 : vector<8x128xf32>
    %81 = vector.extract_strided_slice %80 {offsets = [0, 32], sizes = [8, 32], strides = [1, 1]} : vector<8x128xf32> to vector<8x32xf32>
    %82 = vector.extract_strided_slice %80 {offsets = [0, 64], sizes = [8, 32], strides = [1, 1]} : vector<8x128xf32> to vector<8x32xf32>
    %83 = vector.extract_strided_slice %31 {offsets = [0, 0], sizes = [8, 32], strides = [1, 1]} : vector<8x128xf32> to vector<8x32xf32>
    %84 = vector.extract_strided_slice %74 {offsets = [0, 0], sizes = [8, 32], strides = [1, 1]} : vector<8x128xf32> to vector<8x32xf32>
    %85 = arith.addf %84, %25 : vector<8x32xf32>
    %86 = arith.mulf %81, %85 : vector<8x32xf32>
    %87 = arith.addf %83, %86 : vector<8x32xf32>
    %88 = math.tanh %87 : vector<8x32xf32>
    %89 = arith.subf %52, %88 : vector<8x32xf32>
    %90 = arith.mulf %82, %89 : vector<8x32xf32>
    %91 = arith.addf %88, %90 : vector<8x32xf32>
    %cst_39 = arith.constant dense<0.000000e+00> : vector<8x128xf32>
    %92 = tpu.matmul %91, %9, %cst_39 {dimension_numbers = #tpu.dot_dimension_numbers<[1], [0], [0], [1], [0, 0, 1, 1], [], []>} : vector<8x32xf32>, vector<32x128xf32>, vector<8x128xf32> -> vector<8x128xf32>
    %93 = arith.addf %92, %21 : vector<8x128xf32>
    %cst_40 = arith.constant dense<0.000000e+00> : vector<8x128xf32>
    %94 = tpu.matmul %72, %13, %cst_40 {dimension_numbers = #tpu.dot_dimension_numbers<[1], [0], [0], [1], [0, 0, 1, 1], [], []>} : vector<8x32xf32>, vector<32x128xf32>, vector<8x128xf32> -> vector<8x128xf32>
    %95 = arith.addf %93, %94 : vector<8x128xf32>
    %96 = arith.negf %95 : vector<8x128xf32>
    %97 = math.exp %96 : vector<8x128xf32>
    %cst_41 = arith.constant 1.000000e+00 : f32
    %98 = vector.broadcast %cst_41 : f32 to vector<8x128xf32>
    %99 = arith.addf %98, %97 : vector<8x128xf32>
    %100 = arith.divf %98, %99 : vector<8x128xf32>
    %101 = vector.extract_strided_slice %100 {offsets = [0, 32], sizes = [8, 32], strides = [1, 1]} : vector<8x128xf32> to vector<8x32xf32>
    %102 = vector.extract_strided_slice %100 {offsets = [0, 64], sizes = [8, 32], strides = [1, 1]} : vector<8x128xf32> to vector<8x32xf32>
    %103 = vector.extract_strided_slice %93 {offsets = [0, 0], sizes = [8, 32], strides = [1, 1]} : vector<8x128xf32> to vector<8x32xf32>
    %104 = vector.extract_strided_slice %94 {offsets = [0, 0], sizes = [8, 32], strides = [1, 1]} : vector<8x128xf32> to vector<8x32xf32>
    %105 = arith.addf %104, %29 : vector<8x32xf32>
    %106 = arith.mulf %101, %105 : vector<8x32xf32>
    %107 = arith.addf %103, %106 : vector<8x32xf32>
    %108 = math.tanh %107 : vector<8x32xf32>
    %109 = arith.subf %72, %108 : vector<8x32xf32>
    %110 = arith.mulf %102, %109 : vector<8x32xf32>
    %111 = arith.addf %108, %110 : vector<8x32xf32>
    %112 = arith.addf %73, %111 : vector<8x32xf32>
    %cst_42 = arith.constant dense<0.000000e+00> : vector<8x128xf32>
    %113 = tpu.matmul %91, %11, %cst_42 {dimension_numbers = #tpu.dot_dimension_numbers<[1], [0], [0], [1], [0, 0, 1, 1], [], []>} : vector<8x32xf32>, vector<32x128xf32>, vector<8x128xf32> -> vector<8x128xf32>
    %114 = arith.addf %31, %113 : vector<8x128xf32>
    %115 = arith.negf %114 : vector<8x128xf32>
    %116 = math.exp %115 : vector<8x128xf32>
    %cst_43 = arith.constant 1.000000e+00 : f32
    %117 = vector.broadcast %cst_43 : f32 to vector<8x128xf32>
    %118 = arith.addf %117, %116 : vector<8x128xf32>
    %119 = arith.divf %117, %118 : vector<8x128xf32>
    %120 = vector.extract_strided_slice %119 {offsets = [0, 32], sizes = [8, 32], strides = [1, 1]} : vector<8x128xf32> to vector<8x32xf32>
    %121 = vector.extract_strided_slice %119 {offsets = [0, 64], sizes = [8, 32], strides = [1, 1]} : vector<8x128xf32> to vector<8x32xf32>
    %122 = vector.extract_strided_slice %31 {offsets = [0, 0], sizes = [8, 32], strides = [1, 1]} : vector<8x128xf32> to vector<8x32xf32>
    %123 = vector.extract_strided_slice %113 {offsets = [0, 0], sizes = [8, 32], strides = [1, 1]} : vector<8x128xf32> to vector<8x32xf32>
    %124 = arith.addf %123, %25 : vector<8x32xf32>
    %125 = arith.mulf %120, %124 : vector<8x32xf32>
    %126 = arith.addf %122, %125 : vector<8x32xf32>
    %127 = math.tanh %126 : vector<8x32xf32>
    %128 = arith.subf %91, %127 : vector<8x32xf32>
    %129 = arith.mulf %121, %128 : vector<8x32xf32>
    %130 = arith.addf %127, %129 : vector<8x32xf32>
    %cst_44 = arith.constant dense<0.000000e+00> : vector<8x128xf32>
    %131 = tpu.matmul %130, %9, %cst_44 {dimension_numbers = #tpu.dot_dimension_numbers<[1], [0], [0], [1], [0, 0, 1, 1], [], []>} : vector<8x32xf32>, vector<32x128xf32>, vector<8x128xf32> -> vector<8x128xf32>
    %132 = arith.addf %131, %21 : vector<8x128xf32>
    %cst_45 = arith.constant dense<0.000000e+00> : vector<8x128xf32>
    %133 = tpu.matmul %111, %13, %cst_45 {dimension_numbers = #tpu.dot_dimension_numbers<[1], [0], [0], [1], [0, 0, 1, 1], [], []>} : vector<8x32xf32>, vector<32x128xf32>, vector<8x128xf32> -> vector<8x128xf32>
    %134 = arith.addf %132, %133 : vector<8x128xf32>
    %135 = arith.negf %134 : vector<8x128xf32>
    %136 = math.exp %135 : vector<8x128xf32>
    %cst_46 = arith.constant 1.000000e+00 : f32
    %137 = vector.broadcast %cst_46 : f32 to vector<8x128xf32>
    %138 = arith.addf %137, %136 : vector<8x128xf32>
    %139 = arith.divf %137, %138 : vector<8x128xf32>
    %140 = vector.extract_strided_slice %139 {offsets = [0, 32], sizes = [8, 32], strides = [1, 1]} : vector<8x128xf32> to vector<8x32xf32>
    %141 = vector.extract_strided_slice %139 {offsets = [0, 64], sizes = [8, 32], strides = [1, 1]} : vector<8x128xf32> to vector<8x32xf32>
    %142 = vector.extract_strided_slice %132 {offsets = [0, 0], sizes = [8, 32], strides = [1, 1]} : vector<8x128xf32> to vector<8x32xf32>
    %143 = vector.extract_strided_slice %133 {offsets = [0, 0], sizes = [8, 32], strides = [1, 1]} : vector<8x128xf32> to vector<8x32xf32>
    %144 = arith.addf %143, %29 : vector<8x32xf32>
    %145 = arith.mulf %140, %144 : vector<8x32xf32>
    %146 = arith.addf %142, %145 : vector<8x32xf32>
    %147 = math.tanh %146 : vector<8x32xf32>
    %148 = arith.subf %111, %147 : vector<8x32xf32>
    %149 = arith.mulf %141, %148 : vector<8x32xf32>
    %150 = arith.addf %147, %149 : vector<8x32xf32>
    %151 = arith.addf %112, %150 : vector<8x32xf32>
    %cst_47 = arith.constant dense<0.000000e+00> : vector<8x128xf32>
    %152 = tpu.matmul %130, %11, %cst_47 {dimension_numbers = #tpu.dot_dimension_numbers<[1], [0], [0], [1], [0, 0, 1, 1], [], []>} : vector<8x32xf32>, vector<32x128xf32>, vector<8x128xf32> -> vector<8x128xf32>
    %153 = arith.addf %31, %152 : vector<8x128xf32>
    %154 = arith.negf %153 : vector<8x128xf32>
    %155 = math.exp %154 : vector<8x128xf32>
    %cst_48 = arith.constant 1.000000e+00 : f32
    %156 = vector.broadcast %cst_48 : f32 to vector<8x128xf32>
    %157 = arith.addf %156, %155 : vector<8x128xf32>
    %158 = arith.divf %156, %157 : vector<8x128xf32>
    %159 = vector.extract_strided_slice %158 {offsets = [0, 32], sizes = [8, 32], strides = [1, 1]} : vector<8x128xf32> to vector<8x32xf32>
    %160 = vector.extract_strided_slice %158 {offsets = [0, 64], sizes = [8, 32], strides = [1, 1]} : vector<8x128xf32> to vector<8x32xf32>
    %161 = vector.extract_strided_slice %31 {offsets = [0, 0], sizes = [8, 32], strides = [1, 1]} : vector<8x128xf32> to vector<8x32xf32>
    %162 = vector.extract_strided_slice %152 {offsets = [0, 0], sizes = [8, 32], strides = [1, 1]} : vector<8x128xf32> to vector<8x32xf32>
    %163 = arith.addf %162, %25 : vector<8x32xf32>
    %164 = arith.mulf %159, %163 : vector<8x32xf32>
    %165 = arith.addf %161, %164 : vector<8x32xf32>
    %166 = math.tanh %165 : vector<8x32xf32>
    %167 = arith.subf %130, %166 : vector<8x32xf32>
    %168 = arith.mulf %160, %167 : vector<8x32xf32>
    %169 = arith.addf %166, %168 : vector<8x32xf32>
    %cst_49 = arith.constant dense<0.000000e+00> : vector<8x128xf32>
    %170 = tpu.matmul %169, %9, %cst_49 {dimension_numbers = #tpu.dot_dimension_numbers<[1], [0], [0], [1], [0, 0, 1, 1], [], []>} : vector<8x32xf32>, vector<32x128xf32>, vector<8x128xf32> -> vector<8x128xf32>
    %171 = arith.addf %170, %21 : vector<8x128xf32>
    %cst_50 = arith.constant dense<0.000000e+00> : vector<8x128xf32>
    %172 = tpu.matmul %150, %13, %cst_50 {dimension_numbers = #tpu.dot_dimension_numbers<[1], [0], [0], [1], [0, 0, 1, 1], [], []>} : vector<8x32xf32>, vector<32x128xf32>, vector<8x128xf32> -> vector<8x128xf32>
    %173 = arith.addf %171, %172 : vector<8x128xf32>
    %174 = arith.negf %173 : vector<8x128xf32>
    %175 = math.exp %174 : vector<8x128xf32>
    %cst_51 = arith.constant 1.000000e+00 : f32
    %176 = vector.broadcast %cst_51 : f32 to vector<8x128xf32>
    %177 = arith.addf %176, %175 : vector<8x128xf32>
    %178 = arith.divf %176, %177 : vector<8x128xf32>
    %179 = vector.extract_strided_slice %178 {offsets = [0, 32], sizes = [8, 32], strides = [1, 1]} : vector<8x128xf32> to vector<8x32xf32>
    %180 = vector.extract_strided_slice %178 {offsets = [0, 64], sizes = [8, 32], strides = [1, 1]} : vector<8x128xf32> to vector<8x32xf32>
    %181 = vector.extract_strided_slice %171 {offsets = [0, 0], sizes = [8, 32], strides = [1, 1]} : vector<8x128xf32> to vector<8x32xf32>
    %182 = vector.extract_strided_slice %172 {offsets = [0, 0], sizes = [8, 32], strides = [1, 1]} : vector<8x128xf32> to vector<8x32xf32>
    %183 = arith.addf %182, %29 : vector<8x32xf32>
    %184 = arith.mulf %179, %183 : vector<8x32xf32>
    %185 = arith.addf %181, %184 : vector<8x32xf32>
    %186 = math.tanh %185 : vector<8x32xf32>
    %187 = arith.subf %150, %186 : vector<8x32xf32>
    %188 = arith.mulf %180, %187 : vector<8x32xf32>
    %189 = arith.addf %186, %188 : vector<8x32xf32>
    %190 = arith.addf %151, %189 : vector<8x32xf32>
    %cst_52 = arith.constant dense<0.000000e+00> : vector<8x128xf32>
    %191 = tpu.matmul %169, %11, %cst_52 {dimension_numbers = #tpu.dot_dimension_numbers<[1], [0], [0], [1], [0, 0, 1, 1], [], []>} : vector<8x32xf32>, vector<32x128xf32>, vector<8x128xf32> -> vector<8x128xf32>
    %192 = arith.addf %31, %191 : vector<8x128xf32>
    %193 = arith.negf %192 : vector<8x128xf32>
    %194 = math.exp %193 : vector<8x128xf32>
    %cst_53 = arith.constant 1.000000e+00 : f32
    %195 = vector.broadcast %cst_53 : f32 to vector<8x128xf32>
    %196 = arith.addf %195, %194 : vector<8x128xf32>
    %197 = arith.divf %195, %196 : vector<8x128xf32>
    %198 = vector.extract_strided_slice %197 {offsets = [0, 32], sizes = [8, 32], strides = [1, 1]} : vector<8x128xf32> to vector<8x32xf32>
    %199 = vector.extract_strided_slice %197 {offsets = [0, 64], sizes = [8, 32], strides = [1, 1]} : vector<8x128xf32> to vector<8x32xf32>
    %200 = vector.extract_strided_slice %31 {offsets = [0, 0], sizes = [8, 32], strides = [1, 1]} : vector<8x128xf32> to vector<8x32xf32>
    %201 = vector.extract_strided_slice %191 {offsets = [0, 0], sizes = [8, 32], strides = [1, 1]} : vector<8x128xf32> to vector<8x32xf32>
    %202 = arith.addf %201, %25 : vector<8x32xf32>
    %203 = arith.mulf %198, %202 : vector<8x32xf32>
    %204 = arith.addf %200, %203 : vector<8x32xf32>
    %205 = math.tanh %204 : vector<8x32xf32>
    %206 = arith.subf %169, %205 : vector<8x32xf32>
    %207 = arith.mulf %199, %206 : vector<8x32xf32>
    %208 = arith.addf %205, %207 : vector<8x32xf32>
    %cst_54 = arith.constant dense<0.000000e+00> : vector<8x128xf32>
    %209 = tpu.matmul %208, %9, %cst_54 {dimension_numbers = #tpu.dot_dimension_numbers<[1], [0], [0], [1], [0, 0, 1, 1], [], []>} : vector<8x32xf32>, vector<32x128xf32>, vector<8x128xf32> -> vector<8x128xf32>
    %210 = arith.addf %209, %21 : vector<8x128xf32>
    %cst_55 = arith.constant dense<0.000000e+00> : vector<8x128xf32>
    %211 = tpu.matmul %189, %13, %cst_55 {dimension_numbers = #tpu.dot_dimension_numbers<[1], [0], [0], [1], [0, 0, 1, 1], [], []>} : vector<8x32xf32>, vector<32x128xf32>, vector<8x128xf32> -> vector<8x128xf32>
    %212 = arith.addf %210, %211 : vector<8x128xf32>
    %213 = arith.negf %212 : vector<8x128xf32>
    %214 = math.exp %213 : vector<8x128xf32>
    %cst_56 = arith.constant 1.000000e+00 : f32
    %215 = vector.broadcast %cst_56 : f32 to vector<8x128xf32>
    %216 = arith.addf %215, %214 : vector<8x128xf32>
    %217 = arith.divf %215, %216 : vector<8x128xf32>
    %218 = vector.extract_strided_slice %217 {offsets = [0, 32], sizes = [8, 32], strides = [1, 1]} : vector<8x128xf32> to vector<8x32xf32>
    %219 = vector.extract_strided_slice %217 {offsets = [0, 64], sizes = [8, 32], strides = [1, 1]} : vector<8x128xf32> to vector<8x32xf32>
    %220 = vector.extract_strided_slice %210 {offsets = [0, 0], sizes = [8, 32], strides = [1, 1]} : vector<8x128xf32> to vector<8x32xf32>
    %221 = vector.extract_strided_slice %211 {offsets = [0, 0], sizes = [8, 32], strides = [1, 1]} : vector<8x128xf32> to vector<8x32xf32>
    %222 = arith.addf %221, %29 : vector<8x32xf32>
    %223 = arith.mulf %218, %222 : vector<8x32xf32>
    %224 = arith.addf %220, %223 : vector<8x32xf32>
    %225 = math.tanh %224 : vector<8x32xf32>
    %226 = arith.subf %189, %225 : vector<8x32xf32>
    %227 = arith.mulf %219, %226 : vector<8x32xf32>
    %228 = arith.addf %225, %227 : vector<8x32xf32>
    %229 = arith.addf %190, %228 : vector<8x32xf32>
    %cst_57 = arith.constant dense<0.000000e+00> : vector<8x128xf32>
    %230 = tpu.matmul %208, %11, %cst_57 {dimension_numbers = #tpu.dot_dimension_numbers<[1], [0], [0], [1], [0, 0, 1, 1], [], []>} : vector<8x32xf32>, vector<32x128xf32>, vector<8x128xf32> -> vector<8x128xf32>
    %231 = arith.addf %31, %230 : vector<8x128xf32>
    %232 = arith.negf %231 : vector<8x128xf32>
    %233 = math.exp %232 : vector<8x128xf32>
    %cst_58 = arith.constant 1.000000e+00 : f32
    %234 = vector.broadcast %cst_58 : f32 to vector<8x128xf32>
    %235 = arith.addf %234, %233 : vector<8x128xf32>
    %236 = arith.divf %234, %235 : vector<8x128xf32>
    %237 = vector.extract_strided_slice %236 {offsets = [0, 32], sizes = [8, 32], strides = [1, 1]} : vector<8x128xf32> to vector<8x32xf32>
    %238 = vector.extract_strided_slice %236 {offsets = [0, 64], sizes = [8, 32], strides = [1, 1]} : vector<8x128xf32> to vector<8x32xf32>
    %239 = vector.extract_strided_slice %31 {offsets = [0, 0], sizes = [8, 32], strides = [1, 1]} : vector<8x128xf32> to vector<8x32xf32>
    %240 = vector.extract_strided_slice %230 {offsets = [0, 0], sizes = [8, 32], strides = [1, 1]} : vector<8x128xf32> to vector<8x32xf32>
    %241 = arith.addf %240, %25 : vector<8x32xf32>
    %242 = arith.mulf %237, %241 : vector<8x32xf32>
    %243 = arith.addf %239, %242 : vector<8x32xf32>
    %244 = math.tanh %243 : vector<8x32xf32>
    %245 = arith.subf %208, %244 : vector<8x32xf32>
    %246 = arith.mulf %238, %245 : vector<8x32xf32>
    %247 = arith.addf %244, %246 : vector<8x32xf32>
    %cst_59 = arith.constant dense<0.000000e+00> : vector<8x128xf32>
    %248 = tpu.matmul %247, %9, %cst_59 {dimension_numbers = #tpu.dot_dimension_numbers<[1], [0], [0], [1], [0, 0, 1, 1], [], []>} : vector<8x32xf32>, vector<32x128xf32>, vector<8x128xf32> -> vector<8x128xf32>
    %249 = arith.addf %248, %21 : vector<8x128xf32>
    %cst_60 = arith.constant dense<0.000000e+00> : vector<8x128xf32>
    %250 = tpu.matmul %228, %13, %cst_60 {dimension_numbers = #tpu.dot_dimension_numbers<[1], [0], [0], [1], [0, 0, 1, 1], [], []>} : vector<8x32xf32>, vector<32x128xf32>, vector<8x128xf32> -> vector<8x128xf32>
    %251 = arith.addf %249, %250 : vector<8x128xf32>
    %252 = arith.negf %251 : vector<8x128xf32>
    %253 = math.exp %252 : vector<8x128xf32>
    %cst_61 = arith.constant 1.000000e+00 : f32
    %254 = vector.broadcast %cst_61 : f32 to vector<8x128xf32>
    %255 = arith.addf %254, %253 : vector<8x128xf32>
    %256 = arith.divf %254, %255 : vector<8x128xf32>
    %257 = vector.extract_strided_slice %256 {offsets = [0, 32], sizes = [8, 32], strides = [1, 1]} : vector<8x128xf32> to vector<8x32xf32>
    %258 = vector.extract_strided_slice %256 {offsets = [0, 64], sizes = [8, 32], strides = [1, 1]} : vector<8x128xf32> to vector<8x32xf32>
    %259 = vector.extract_strided_slice %249 {offsets = [0, 0], sizes = [8, 32], strides = [1, 1]} : vector<8x128xf32> to vector<8x32xf32>
    %260 = vector.extract_strided_slice %250 {offsets = [0, 0], sizes = [8, 32], strides = [1, 1]} : vector<8x128xf32> to vector<8x32xf32>
    %261 = arith.addf %260, %29 : vector<8x32xf32>
    %262 = arith.mulf %257, %261 : vector<8x32xf32>
    %263 = arith.addf %259, %262 : vector<8x32xf32>
    %264 = math.tanh %263 : vector<8x32xf32>
    %265 = arith.subf %228, %264 : vector<8x32xf32>
    %266 = arith.mulf %258, %265 : vector<8x32xf32>
    %267 = arith.addf %264, %266 : vector<8x32xf32>
    %268 = arith.addf %229, %267 : vector<8x32xf32>
    %cst_62 = arith.constant dense<0.000000e+00> : vector<8x128xf32>
    %269 = tpu.matmul %247, %11, %cst_62 {dimension_numbers = #tpu.dot_dimension_numbers<[1], [0], [0], [1], [0, 0, 1, 1], [], []>} : vector<8x32xf32>, vector<32x128xf32>, vector<8x128xf32> -> vector<8x128xf32>
    %270 = arith.addf %31, %269 : vector<8x128xf32>
    %271 = arith.negf %270 : vector<8x128xf32>
    %272 = math.exp %271 : vector<8x128xf32>
    %cst_63 = arith.constant 1.000000e+00 : f32
    %273 = vector.broadcast %cst_63 : f32 to vector<8x128xf32>
    %274 = arith.addf %273, %272 : vector<8x128xf32>
    %275 = arith.divf %273, %274 : vector<8x128xf32>
    %276 = vector.extract_strided_slice %275 {offsets = [0, 32], sizes = [8, 32], strides = [1, 1]} : vector<8x128xf32> to vector<8x32xf32>
    %277 = vector.extract_strided_slice %275 {offsets = [0, 64], sizes = [8, 32], strides = [1, 1]} : vector<8x128xf32> to vector<8x32xf32>
    %278 = vector.extract_strided_slice %31 {offsets = [0, 0], sizes = [8, 32], strides = [1, 1]} : vector<8x128xf32> to vector<8x32xf32>
    %279 = vector.extract_strided_slice %269 {offsets = [0, 0], sizes = [8, 32], strides = [1, 1]} : vector<8x128xf32> to vector<8x32xf32>
    %280 = arith.addf %279, %25 : vector<8x32xf32>
    %281 = arith.mulf %276, %280 : vector<8x32xf32>
    %282 = arith.addf %278, %281 : vector<8x32xf32>
    %283 = math.tanh %282 : vector<8x32xf32>
    %284 = arith.subf %247, %283 : vector<8x32xf32>
    %285 = arith.mulf %277, %284 : vector<8x32xf32>
    %286 = arith.addf %283, %285 : vector<8x32xf32>
    %cst_64 = arith.constant dense<0.000000e+00> : vector<8x128xf32>
    %287 = tpu.matmul %286, %9, %cst_64 {dimension_numbers = #tpu.dot_dimension_numbers<[1], [0], [0], [1], [0, 0, 1, 1], [], []>} : vector<8x32xf32>, vector<32x128xf32>, vector<8x128xf32> -> vector<8x128xf32>
    %288 = arith.addf %287, %21 : vector<8x128xf32>
    %cst_65 = arith.constant dense<0.000000e+00> : vector<8x128xf32>
    %289 = tpu.matmul %267, %13, %cst_65 {dimension_numbers = #tpu.dot_dimension_numbers<[1], [0], [0], [1], [0, 0, 1, 1], [], []>} : vector<8x32xf32>, vector<32x128xf32>, vector<8x128xf32> -> vector<8x128xf32>
    %290 = arith.addf %288, %289 : vector<8x128xf32>
    %291 = arith.negf %290 : vector<8x128xf32>
    %292 = math.exp %291 : vector<8x128xf32>
    %cst_66 = arith.constant 1.000000e+00 : f32
    %293 = vector.broadcast %cst_66 : f32 to vector<8x128xf32>
    %294 = arith.addf %293, %292 : vector<8x128xf32>
    %295 = arith.divf %293, %294 : vector<8x128xf32>
    %296 = vector.extract_strided_slice %295 {offsets = [0, 32], sizes = [8, 32], strides = [1, 1]} : vector<8x128xf32> to vector<8x32xf32>
    %297 = vector.extract_strided_slice %295 {offsets = [0, 64], sizes = [8, 32], strides = [1, 1]} : vector<8x128xf32> to vector<8x32xf32>
    %298 = vector.extract_strided_slice %288 {offsets = [0, 0], sizes = [8, 32], strides = [1, 1]} : vector<8x128xf32> to vector<8x32xf32>
    %299 = vector.extract_strided_slice %289 {offsets = [0, 0], sizes = [8, 32], strides = [1, 1]} : vector<8x128xf32> to vector<8x32xf32>
    %300 = arith.addf %299, %29 : vector<8x32xf32>
    %301 = arith.mulf %296, %300 : vector<8x32xf32>
    %302 = arith.addf %298, %301 : vector<8x32xf32>
    %303 = math.tanh %302 : vector<8x32xf32>
    %304 = arith.subf %267, %303 : vector<8x32xf32>
    %305 = arith.mulf %297, %304 : vector<8x32xf32>
    %306 = arith.addf %303, %305 : vector<8x32xf32>
    %307 = arith.addf %268, %306 : vector<8x32xf32>
    %cst_67 = arith.constant dense<0.000000e+00> : vector<8x128xf32>
    %308 = tpu.matmul %286, %11, %cst_67 {dimension_numbers = #tpu.dot_dimension_numbers<[1], [0], [0], [1], [0, 0, 1, 1], [], []>} : vector<8x32xf32>, vector<32x128xf32>, vector<8x128xf32> -> vector<8x128xf32>
    %309 = arith.addf %31, %308 : vector<8x128xf32>
    %310 = arith.negf %309 : vector<8x128xf32>
    %311 = math.exp %310 : vector<8x128xf32>
    %cst_68 = arith.constant 1.000000e+00 : f32
    %312 = vector.broadcast %cst_68 : f32 to vector<8x128xf32>
    %313 = arith.addf %312, %311 : vector<8x128xf32>
    %314 = arith.divf %312, %313 : vector<8x128xf32>
    %315 = vector.extract_strided_slice %314 {offsets = [0, 32], sizes = [8, 32], strides = [1, 1]} : vector<8x128xf32> to vector<8x32xf32>
    %316 = vector.extract_strided_slice %314 {offsets = [0, 64], sizes = [8, 32], strides = [1, 1]} : vector<8x128xf32> to vector<8x32xf32>
    %317 = vector.extract_strided_slice %31 {offsets = [0, 0], sizes = [8, 32], strides = [1, 1]} : vector<8x128xf32> to vector<8x32xf32>
    %318 = vector.extract_strided_slice %308 {offsets = [0, 0], sizes = [8, 32], strides = [1, 1]} : vector<8x128xf32> to vector<8x32xf32>
    %319 = arith.addf %318, %25 : vector<8x32xf32>
    %320 = arith.mulf %315, %319 : vector<8x32xf32>
    %321 = arith.addf %317, %320 : vector<8x32xf32>
    %322 = math.tanh %321 : vector<8x32xf32>
    %323 = arith.subf %286, %322 : vector<8x32xf32>
    %324 = arith.mulf %316, %323 : vector<8x32xf32>
    %325 = arith.addf %322, %324 : vector<8x32xf32>
    %cst_69 = arith.constant dense<0.000000e+00> : vector<8x128xf32>
    %326 = tpu.matmul %325, %9, %cst_69 {dimension_numbers = #tpu.dot_dimension_numbers<[1], [0], [0], [1], [0, 0, 1, 1], [], []>} : vector<8x32xf32>, vector<32x128xf32>, vector<8x128xf32> -> vector<8x128xf32>
    %327 = arith.addf %326, %21 : vector<8x128xf32>
    %cst_70 = arith.constant dense<0.000000e+00> : vector<8x128xf32>
    %328 = tpu.matmul %306, %13, %cst_70 {dimension_numbers = #tpu.dot_dimension_numbers<[1], [0], [0], [1], [0, 0, 1, 1], [], []>} : vector<8x32xf32>, vector<32x128xf32>, vector<8x128xf32> -> vector<8x128xf32>
    %329 = arith.addf %327, %328 : vector<8x128xf32>
    %330 = arith.negf %329 : vector<8x128xf32>
    %331 = math.exp %330 : vector<8x128xf32>
    %cst_71 = arith.constant 1.000000e+00 : f32
    %332 = vector.broadcast %cst_71 : f32 to vector<8x128xf32>
    %333 = arith.addf %332, %331 : vector<8x128xf32>
    %334 = arith.divf %332, %333 : vector<8x128xf32>
    %335 = vector.extract_strided_slice %334 {offsets = [0, 32], sizes = [8, 32], strides = [1, 1]} : vector<8x128xf32> to vector<8x32xf32>
    %336 = vector.extract_strided_slice %334 {offsets = [0, 64], sizes = [8, 32], strides = [1, 1]} : vector<8x128xf32> to vector<8x32xf32>
    %337 = vector.extract_strided_slice %327 {offsets = [0, 0], sizes = [8, 32], strides = [1, 1]} : vector<8x128xf32> to vector<8x32xf32>
    %338 = vector.extract_strided_slice %328 {offsets = [0, 0], sizes = [8, 32], strides = [1, 1]} : vector<8x128xf32> to vector<8x32xf32>
    %339 = arith.addf %338, %29 : vector<8x32xf32>
    %340 = arith.mulf %335, %339 : vector<8x32xf32>
    %341 = arith.addf %337, %340 : vector<8x32xf32>
    %342 = math.tanh %341 : vector<8x32xf32>
    %343 = arith.subf %306, %342 : vector<8x32xf32>
    %344 = arith.mulf %336, %343 : vector<8x32xf32>
    %345 = arith.addf %342, %344 : vector<8x32xf32>
    %346 = arith.addf %307, %345 : vector<8x32xf32>
    %cst_72 = arith.constant 1.250000e-01 : f32
    %347 = vector.broadcast %cst_72 : f32 to vector<8x32xf32>
    %348 = arith.mulf %346, %347 : vector<8x32xf32>
    %c0_73 = arith.constant 0 : index
    %c0_74 = arith.constant 0 : index
    %349 = vector.load %arg7[%c0_73, %c0_74] : memref<32x128xf32, #tpu.memory_space<vmem>>, vector<32x128xf32>
    %cst_75 = arith.constant dense<0.000000e+00> : vector<8x128xf32>
    %350 = tpu.matmul %348, %349, %cst_75 {dimension_numbers = #tpu.dot_dimension_numbers<[1], [0], [0], [1], [0, 0, 1, 1], [], []>} : vector<8x32xf32>, vector<32x128xf32>, vector<8x128xf32> -> vector<8x128xf32>
    %c0_76 = arith.constant 0 : index
    %c0_77 = arith.constant 0 : index
    %351 = vector.load %arg8[%c0_76, %c0_77] : memref<8x128xf32, #tpu.memory_space<vmem>>, vector<8x128xf32>
    %352 = arith.addf %350, %351 : vector<8x128xf32>
    %cst_78 = arith.constant 0.000000e+00 : f32
    %353 = vector.broadcast %cst_78 : f32 to vector<8x128xf32>
    %354 = arith.cmpf oge, %352, %353 : vector<8x128xf32>
    %355 = arith.extui %354 : vector<8x128xi1> to vector<8x128xi32>
    %356 = arith.sitofp %355 : vector<8x128xi32> to vector<8x128xf32>
    %c0_79 = arith.constant 0 : index
    %c0_80 = arith.constant 0 : index
    %357 = vector.load %arg9[%c0_79, %c0_80] : memref<128x128xf32, #tpu.memory_space<vmem>>, vector<128x128xf32>
    %cst_81 = arith.constant dense<0.000000e+00> : vector<8x128xf32>
    %358 = tpu.matmul %356, %357, %cst_81 {dimension_numbers = #tpu.dot_dimension_numbers<[1], [0], [0], [1], [0, 0, 1, 1], [], []>} : vector<8x128xf32>, vector<128x128xf32>, vector<8x128xf32> -> vector<8x128xf32>
    %c0_82 = arith.constant 0 : index
    %c0_83 = arith.constant 0 : index
    %359 = vector.load %arg10[%c0_82, %c0_83] : memref<8x128xf32, #tpu.memory_space<vmem>>, vector<8x128xf32>
    tpu.vector_store %arg10[%c0_82, %c0_83], %358 {strides = array<i32>} : memref<8x128xf32, #tpu.memory_space<vmem>>, vector<8x128xf32>,
    return
  }
}

</mosaic_0001>

<llo_original>
// kernel: tpu_custom_call.1
$region0: #{tpu_custom_call.1}
  #allocation0 [shape = 'u32[]', space=smem, size = 0x4, offset = 0x4, fixed_abs, tag = 'smem constant byte address 0x4 - core index']
  #allocation1 [shape = 'u32[144,128]{1,0:T(1,128)}', space=vmem, size = 0x12000, scoped, tag = 'internal scratch']
  %s0 = inlined_call_operand.hbm [shape: f32[8,16], index: 0, kind: input, shape index: {}]
  %s1 = inlined_call_operand.hbm [shape: f32[16,32], index: 1, kind: input, shape index: {}]
  %s2 = inlined_call_operand.vmem [shape: f32[1,32], index: 2, kind: input, shape index: {}]
  %s3 = inlined_call_operand.hbm [shape: f32[2,32,128], index: 3, kind: input, shape index: {}]
  %s4 = inlined_call_operand.hbm [shape: f32[2,32,128], index: 4, kind: input, shape index: {}]
  %s5 = inlined_call_operand.vmem [shape: f32[2,1,128], index: 5, kind: input, shape index: {}]
  %s6 = inlined_call_operand.vmem [shape: f32[2,1,32], index: 6, kind: input, shape index: {}]
  %s7 = inlined_call_operand.hbm [shape: f32[32,128], index: 7, kind: input, shape index: {}]
  %s8 = inlined_call_operand.vmem [shape: f32[8,128], index: 8, kind: input, shape index: {}]
  %s9 = inlined_call_operand.hbm [shape: f32[128,128], index: 9, kind: input, shape index: {}]
  %s10 = inlined_call_operand.hbm [shape: f32[8,128], index: 10, kind: output, shape index: {}]
  %s11 = sld [smem:[#allocation0]]
  $region74: #{tpu_custom_call.1} parent=0
    _
  %s13 = ssub.s32 1, %s11
  %s14 = scalar_select 0, %s13, %s11
  $region1: #{tpu_custom_call.1} parent=0
    #allocation2 [shape = 'u8[4096]{0}', space=vmem, size = 0x1000, scoped, tag = 'input window, operand 0, single buffered']
    #allocation3 [shape = 's32[1]{0}', space=sflag, size = 0x4, scoped, tag = 'scoped memory for tpu_custom_call.1']
    #allocation4 [shape = 's32[1]{0}', space=sflag, size = 0x4, scoped, tag = 'scoped memory for tpu_custom_call.1']
    #allocation5 [shape = 'u8[8192]{0}', space=vmem, size = 0x2000, scoped, tag = 'input window, operand 1, single buffered']
    #allocation6 [shape = 's32[1]{0}', space=sflag, size = 0x4, scoped, tag = 'scoped memory for tpu_custom_call.1']
    #allocation7 [shape = 'u8[32768]{0}', space=vmem, size = 0x8000, scoped, tag = 'input window, operand 3, single buffered']
    #allocation8 [shape = 'u8[32768]{0}', space=vmem, size = 0x8000, scoped, tag = 'input window, operand 4, single buffered']
    #allocation9 [shape = 's32[1]{0}', space=sflag, size = 0x4, scoped, tag = 'scoped memory for tpu_custom_call.1']
    #allocation10 [shape = 'u8[16384]{0}', space=vmem, size = 0x4000, scoped, tag = 'input window, operand 7, single buffered']
    #allocation11 [shape = 'u8[65536]{0}', space=vmem, size = 0x10000, scoped, tag = 'input window, operand 9, single buffered']
    #allocation12 [shape = 's32[1]{0}', space=sflag, size = 0x4, scoped, tag = 'scoped memory for tpu_custom_call.1']
    #allocation13 [shape = 'u8[4096]{0}', space=vmem, size = 0x1000, scoped, tag = 'output window, operand 0, single buffered']
    %15 = vsyncpa [#allocation3], 0
    %16 = vsyncpa [#allocation6], 0
    %17 = vsyncpa [#allocation9], 0
    %18 = vsyncpa [#allocation12], 0
    %19 = vsyncpa [#allocation4], 0
    // Predicated region
    $region2: #{tpu_custom_call.1} parent=1 // pred_check
      _
    $region3: #{tpu_custom_call.1} parent=1 // pred_check_branch
      %21 = sbr.rel (0) target = $region5
    $region4: #{tpu_custom_call.1} parent=1 // pred_region
      %s23 = ssub.s32 128, 128
      %24 = vsyncadd [#allocation3], %s23
      %s26 = sshll.u32 [#allocation2], 4
      %s27 = int_to_ptr.vmem [resolvable:$true] %s26
      %29 = dma.hbm_to_vmem [thread:$0]  %s0, 128, %s27, [#allocation3]
    $region5: #{tpu_custom_call.1} parent=1 // pred_fallthru
      _
    // Predicated region
    $region6: #{tpu_custom_call.1} parent=1 // pred_check
      _
    $region7: #{tpu_custom_call.1} parent=1 // pred_check_branch
      %31 = sbr.rel (0) target = $region9
    $region8: #{tpu_custom_call.1} parent=1 // pred_region
      %s33 = ssub.s32 256, 256
      %34 = vsyncadd [#allocation6], %s33
      %s35 = sshll.u32 [#allocation5], 4
      %s36 = int_to_ptr.vmem [resolvable:$true] %s35
      %41 = dma.hbm_to_vmem [thread:$0]  %s1, 256, %s36, [#allocation6], 128, 128, 8
    $region9: #{tpu_custom_call.1} parent=1 // pred_fallthru
      _
    // Predicated region
    $region10: #{tpu_custom_call.1} parent=1 // pred_check
      _
    $region11: #{tpu_custom_call.1} parent=1 // pred_check_branch
      %43 = sbr.rel (0) target = $region13
    $region12: #{tpu_custom_call.1} parent=1 // pred_region
      _
    $region13: #{tpu_custom_call.1} parent=1 // pred_fallthru
      _
    // Predicated region
    $region14: #{tpu_custom_call.1} parent=1 // pred_check
      _
    $region15: #{tpu_custom_call.1} parent=1 // pred_check_branch
      %45 = sbr.rel (0) target = $region17
    $region16: #{tpu_custom_call.1} parent=1 // pred_region
      %s47 = ssub.s32 1024, 1024
      %48 = vsyncadd [#allocation6], %s47
      %s49 = sshll.u32 [#allocation7], 4
      %s50 = int_to_ptr.vmem [resolvable:$true] %s49
      %55 = dma.hbm_to_vmem [thread:$0]  %s3, 1024, %s50, [#allocation6], 128, 128, 8
    $region17: #{tpu_custom_call.1} parent=1 // pred_fallthru
      _
    // Predicated region
    $region18: #{tpu_custom_call.1} parent=1 // pred_check
      _
    $region19: #{tpu_custom_call.1} parent=1 // pred_check_branch
      %57 = sbr.rel (0) target = $region21
    $region20: #{tpu_custom_call.1} parent=1 // pred_region
      %s59 = ssub.s32 1024, 1024
      %60 = vsyncadd [#allocation9], %s59
      %s61 = sshll.u32 [#allocation8], 4
      %s62 = int_to_ptr.vmem [resolvable:$true] %s61
      %67 = dma.hbm_to_vmem [thread:$0]  %s4, 1024, %s62, [#allocation9], 128, 128, 8
    $region21: #{tpu_custom_call.1} parent=1 // pred_fallthru
      _
    // Predicated region
    $region22: #{tpu_custom_call.1} parent=1 // pred_check
      _
    $region23: #{tpu_custom_call.1} parent=1 // pred_check_branch
      %69 = sbr.rel (0) target = $region25
    $region24: #{tpu_custom_call.1} parent=1 // pred_region
      _
    $region25: #{tpu_custom_call.1} parent=1 // pred_fallthru
      _
    // Predicated region
    $region26: #{tpu_custom_call.1} parent=1 // pred_check
      _
    $region27: #{tpu_custom_call.1} parent=1 // pred_check_branch
      %71 = sbr.rel (0) target = $region29
    $region28: #{tpu_custom_call.1} parent=1 // pred_region
      _
    $region29: #{tpu_custom_call.1} parent=1 // pred_fallthru
      _
    // Predicated region
    $region30: #{tpu_custom_call.1} parent=1 // pred_check
      _
    $region31: #{tpu_custom_call.1} parent=1 // pred_check_branch
      %73 = sbr.rel (0) target = $region33
    $region32: #{tpu_custom_call.1} parent=1 // pred_region
      %s75 = ssub.s32 512, 512
      %76 = vsyncadd [#allocation9], %s75
      %s77 = sshll.u32 [#allocation10], 4
      %s78 = int_to_ptr.vmem [resolvable:$true] %s77
      %83 = dma.hbm_to_vmem [thread:$0]  %s7, 512, %s78, [#allocation9], 128, 128, 8
    $region33: #{tpu_custom_call.1} parent=1 // pred_fallthru
      _
    // Predicated region
    $region34: #{tpu_custom_call.1} parent=1 // pred_check
      _
    $region35: #{tpu_custom_call.1} parent=1 // pred_check_branch
      %85 = sbr.rel (0) target = $region37
    $region36: #{tpu_custom_call.1} parent=1 // pred_region
      _
    $region37: #{tpu_custom_call.1} parent=1 // pred_fallthru
      _
    // Predicated region
    $region38: #{tpu_custom_call.1} parent=1 // pred_check
      _
    $region39: #{tpu_custom_call.1} parent=1 // pred_check_branch
      %87 = sbr.rel (0) target = $region41
    $region40: #{tpu_custom_call.1} parent=1 // pred_region
      %s89 = ssub.s32 2048, 2048
      %90 = vsyncadd [#allocation12], %s89
      %s91 = sshll.u32 [#allocation11], 4
      %s92 = int_to_ptr.vmem [resolvable:$true] %s91
      %97 = dma.hbm_to_vmem [thread:$0]  %s9, 2048, %s92, [#allocation12], 128, 128, 8
    $region41: #{tpu_custom_call.1} parent=1 // pred_fallthru
      _
    // Predicated region
    $region42: #{tpu_custom_call.1} parent=1 // pred_check
      _
    $region43: #{tpu_custom_call.1} parent=1 // pred_check_branch
      %99 = sbr.rel (0) target = $region45
    $region44: #{tpu_custom_call.1} parent=1 // pred_region
      %100 = dma.done [#allocation3], 128
    $region45: #{tpu_custom_call.1} parent=1 // pred_fallthru
      _
    // Predicated region
    $region46: #{tpu_custom_call.1} parent=1 // pred_check
      _
    $region47: #{tpu_custom_call.1} parent=1 // pred_check_branch
      %102 = sbr.rel (0) target = $region49
    $region48: #{tpu_custom_call.1} parent=1 // pred_region
      %103 = dma.done [#allocation6], 256
    $region49: #{tpu_custom_call.1} parent=1 // pred_fallthru
      _
    // Predicated region
    $region50: #{tpu_custom_call.1} parent=1 // pred_check
      _
    $region51: #{tpu_custom_call.1} parent=1 // pred_check_branch
      %105 = sbr.rel (0) target = $region53
    $region52: #{tpu_custom_call.1} parent=1 // pred_region
      %106 = dma.done [#allocation6], 1024
    $region53: #{tpu_custom_call.1} parent=1 // pred_fallthru
      _
    // Predicated region
    $region54: #{tpu_custom_call.1} parent=1 // pred_check
      _
    $region55: #{tpu_custom_call.1} parent=1 // pred_check_branch
      %108 = sbr.rel (0) target = $region57
    $region56: #{tpu_custom_call.1} parent=1 // pred_region
      %109 = dma.done [#allocation9], 1024
    $region57: #{tpu_custom_call.1} parent=1 // pred_fallthru
      _
    // Predicated region
    $region58: #{tpu_custom_call.1} parent=1 // pred_check
      _
    $region59: #{tpu_custom_call.1} parent=1 // pred_check_branch
      %111 = sbr.rel (0) target = $region61
    $region60: #{tpu_custom_call.1} parent=1 // pred_region
      %112 = dma.done [#allocation9], 512
    $region61: #{tpu_custom_call.1} parent=1 // pred_fallthru
      _
    // Predicated region
    $region62: #{tpu_custom_call.1} parent=1 // pred_check
      _
    $region63: #{tpu_custom_call.1} parent=1 // pred_check_branch
      %114 = sbr.rel (0) target = $region65
    $region64: #{tpu_custom_call.1} parent=1 // pred_region
      %115 = dma.done [#allocation12], 2048
    $region65: #{tpu_custom_call.1} parent=1 // pred_fallthru
      _
    %v116 = vld [vmem:[#allocation2] sm:$0xff]
    %v117 = vld [vmem:[#allocation5] sm:$0xff]
    %v118 = vld [vmem:[#allocation5 + $0x8] sm:$0xff]
    %v119 = vld [vmem:[%s2] sm:$0x1]
    %v121 = vlaneseq
    %v122 = vshrl.u32 %v121, 7
    %v123 = vsub.s32 0, %v122
    %v124 = vrot.slane %v119, %v123
    %vm126 = vcmask 130048
    %v128 = vsel %vm126, %v116, 0
    %130 = vmatprep.subr.mxu0 0.0
    %131 = vmatpush1.msra.mxu0 0.0
    %132 = vmatprep.subr.mxu0 0.0
    %133 = vmatpush1.msra.mxu0 0.0
    %134 = vmatprep.subr.mxu0 0.0
    %135 = vmatpush1.msra.mxu0 0.0
    %136 = vmatprep.subr.mxu0 0.0
    %137 = vmatpush1.msra.mxu0 0.0
    %138 = vmatprep.subr.mxu0 0.0
    %139 = vmatpush1.msra.mxu0 0.0
    %140 = vmatprep.subr.mxu0 0.0
    %141 = vmatpush1.msra.mxu0 0.0
    %142 = vmatprep.subr.mxu0 0.0
    %143 = vmatpush1.msra.mxu0 0.0
    %144 = vmatprep.subr.mxu0 0.0
    %145 = vmatpush1.msra.mxu0 0.0
    %146 = vmatprep.subr.mxu0 0.0
    %147 = vmatpush1.msra.mxu0 0.0
    %148 = vmatprep.subr.mxu0 0.0
    %149 = vmatpush1.msra.mxu0 0.0
    %150 = vmatprep.subr.mxu0 0.0
    %151 = vmatpush1.msra.mxu0 0.0
    %152 = vmatprep.subr.mxu0 0.0
    %153 = vmatpush1.msra.mxu0 0.0
    %154 = vmatprep.subr.mxu0 0.0
    %155 = vmatpush1.msra.mxu0 0.0
    %156 = vmatprep.subr.mxu0 0.0
    %157 = vmatpush1.msra.mxu0 0.0
    %158 = vmatprep.subr.mxu0 0.0
    %159 = vmatpush1.msra.mxu0 %v118
    %160 = vmatprep.subr.mxu0 0.0
    %161 = vmatpush1.msra.mxu0 %v117
    %162 = vmatprep.subr.mxu0 0.0
    %163 = vmatpush2.msra.mxu0 0.0
    %164 = vmatprep.subr.mxu0 0.0
    %165 = vmatpush2.msra.mxu0 0.0
    %166 = vmatprep.subr.mxu0 0.0
    %167 = vmatpush2.msra.mxu0 0.0
    %168 = vmatprep.subr.mxu0 0.0
    %169 = vmatpush2.msra.mxu0 0.0
    %170 = vmatprep.subr.mxu0 0.0
    %171 = vmatpush2.msra.mxu0 0.0
    %172 = vmatprep.subr.mxu0 0.0
    %173 = vmatpush2.msra.mxu0 0.0
    %174 = vmatprep.subr.mxu0 0.0
    %175 = vmatpush2.msra.mxu0 0.0
    %176 = vmatprep.subr.mxu0 0.0
    %177 = vmatpush2.msra.mxu0 0.0
    %178 = vmatprep.subr.mxu0 0.0
    %179 = vmatpush2.msra.mxu0 0.0
    %180 = vmatprep.subr.mxu0 0.0
    %181 = vmatpush2.msra.mxu0 0.0
    %182 = vmatprep.subr.mxu0 0.0
    %183 = vmatpush2.msra.mxu0 0.0
    %184 = vmatprep.subr.mxu0 0.0
    %185 = vmatpush2.msra.mxu0 0.0
    %186 = vmatprep.subr.mxu0 0.0
    %187 = vmatpush2.msra.mxu0 0.0
    %188 = vmatprep.subr.mxu0 0.0
    %189 = vmatpush2.msra.mxu0 0.0
    %190 = vmatprep.subr.mxu0 0.0
    %191 = vmatpush2.msra.mxu0 0.0
    %192 = vmatprep.subr.mxu0 0.0
    %193 = vmatpush2.msra.mxu0 0.0
    %194 = vmatprep.mubr.f32.mxu0 0.0
    %195 = vmatmul.mubr.f32.gmra.mxu0 %v128
    %v196 = vpop.f32.mrf.mxu0
    %v197 = vadd.f32 %v124, %v196
    %v198 = vpop.f32.mrf.mxu0
    %199 = vdwg.mxu0
    %v200 = vld [vmem:[#allocation7] sm:$0xff]
    %v201 = vld [vmem:[#allocation7 + $0x8] sm:$0xff]
    %v202 = vld [vmem:[#allocation7 + $0x10] sm:$0xff]
    %v203 = vld [vmem:[#allocation7 + $0x18] sm:$0xff]
    %s204 = scalar_lea.vmem [#allocation7], 32
    %v205 = vld [vmem:[%s204] sm:$0xff]
    %v206 = vld [vmem:[%s204 + $0x8] sm:$0xff]
    %v207 = vld [vmem:[%s204 + $0x10] sm:$0xff]
    %v208 = vld [vmem:[%s204 + $0x18] sm:$0xff]
    %v209 = vld [vmem:[#allocation8] sm:$0xff]
    %v210 = vld [vmem:[#allocation8 + $0x8] sm:$0xff]
    %v211 = vld [vmem:[#allocation8 + $0x10] sm:$0xff]
    %v212 = vld [vmem:[#allocation8 + $0x18] sm:$0xff]
    %s213 = scalar_lea.vmem [#allocation8], 32
    %v214 = vld [vmem:[%s213] sm:$0xff]
    %v215 = vld [vmem:[%s213 + $0x8] sm:$0xff]
    %v216 = vld [vmem:[%s213 + $0x10] sm:$0xff]
    %v217 = vld [vmem:[%s213 + $0x18] sm:$0xff]
    %v218 = vld [vmem:[%s5] sm:$0x1]
    %v220 = vlaneseq
    %v221 = vshrl.u32 %v220, 7
    %v222 = vsub.s32 0, %v221
    %v223 = vrot.slane %v218, %v222
    %s225 = scalar_lea.vmem %s5, 1
    %v226 = vld [vmem:[%s225] sm:$0x1]
    %v228 = vlaneseq
    %v229 = vshrl.u32 %v228, 7
    %v230 = vsub.s32 0, %v229
    %v231 = vrot.slane %v226, %v230
    %v233 = vld [vmem:[%s6] sm:$0x1]
    %v235 = vlaneseq
    %v236 = vshrl.u32 %v235, 7
    %v237 = vsub.s32 0, %v236
    %v238 = vrot.slane %v233, %v237
    %s240 = scalar_lea.vmem %s6, 1
    %v241 = vld [vmem:[%s240] sm:$0x1]
    %v243 = vlaneseq
    %v244 = vshrl.u32 %v243, 7
    %v245 = vsub.s32 0, %v244
    %v246 = vrot.slane %v241, %v245
    %vm248 = vcmask 261120
    %v250 = vsel %vm248, %v197, 0
    %252 = vmatprep.subr.mxu0 0.0
    %253 = vmatpush1.msra.mxu0 0.0
    %254 = vmatprep.subr.mxu0 0.0
    %255 = vmatpush1.msra.mxu0 0.0
    %256 = vmatprep.subr.mxu0 0.0
    %257 = vmatpush1.msra.mxu0 0.0
    %258 = vmatprep.subr.mxu0 0.0
    %259 = vmatpush1.msra.mxu0 0.0
    %260 = vmatprep.subr.mxu0 0.0
    %261 = vmatpush1.msra.mxu0 0.0
    %262 = vmatprep.subr.mxu0 0.0
    %263 = vmatpush1.msra.mxu0 0.0
    %264 = vmatprep.subr.mxu0 0.0
    %265 = vmatpush1.msra.mxu0 0.0
    %266 = vmatprep.subr.mxu0 0.0
    %267 = vmatpush1.msra.mxu0 0.0
    %268 = vmatprep.subr.mxu0 0.0
    %269 = vmatpush1.msra.mxu0 0.0
    %270 = vmatprep.subr.mxu0 0.0
    %271 = vmatpush1.msra.mxu0 0.0
    %272 = vmatprep.subr.mxu0 0.0
    %273 = vmatpush1.msra.mxu0 0.0
    %274 = vmatprep.subr.mxu0 0.0
    %275 = vmatpush1.msra.mxu0 0.0
    %276 = vmatprep.subr.mxu0 0.0
    %277 = vmatpush1.msra.mxu0 %v203
    %278 = vmatprep.subr.mxu0 0.0
    %279 = vmatpush1.msra.mxu0 %v202
    %280 = vmatprep.subr.mxu0 0.0
    %281 = vmatpush1.msra.mxu0 %v201
    %282 = vmatprep.subr.mxu0 0.0
    %283 = vmatpush1.msra.mxu0 %v200
    %284 = vmatprep.subr.mxu0 0.0
    %285 = vmatpush2.msra.mxu0 0.0
    %286 = vmatprep.subr.mxu0 0.0
    %287 = vmatpush2.msra.mxu0 0.0
    %288 = vmatprep.subr.mxu0 0.0
    %289 = vmatpush2.msra.mxu0 0.0
    %290 = vmatprep.subr.mxu0 0.0
    %291 = vmatpush2.msra.mxu0 0.0
    %292 = vmatprep.subr.mxu0 0.0
    %293 = vmatpush2.msra.mxu0 0.0
    %294 = vmatprep.subr.mxu0 0.0
    %295 = vmatpush2.msra.mxu0 0.0
    %296 = vmatprep.subr.mxu0 0.0
    %297 = vmatpush2.msra.mxu0 0.0
    %298 = vmatprep.subr.mxu0 0.0
    %299 = vmatpush2.msra.mxu0 0.0
    %300 = vmatprep.subr.mxu0 0.0
    %301 = vmatpush2.msra.mxu0 0.0
    %302 = vmatprep.subr.mxu0 0.0
    %303 = vmatpush2.msra.mxu0 0.0
    %304 = vmatprep.subr.mxu0 0.0
    %305 = vmatpush2.msra.mxu0 0.0
    %306 = vmatprep.subr.mxu0 0.0
    %307 = vmatpush2.msra.mxu0 0.0
    %308 = vmatprep.subr.mxu0 0.0
    %309 = vmatpush2.msra.mxu0 0.0
    %310 = vmatprep.subr.mxu0 0.0
    %311 = vmatpush2.msra.mxu0 0.0
    %312 = vmatprep.subr.mxu0 0.0
    %313 = vmatpush2.msra.mxu0 0.0
    %314 = vmatprep.subr.mxu0 0.0
    %315 = vmatpush2.msra.mxu0 0.0
    %316 = vmatprep.mubr.f32.mxu0 0.0
    %317 = vmatmul.mubr.f32.gmra.mxu0 %v250
    %v318 = vpop.f32.mrf.mxu0
    %v319 = vadd.f32 %v223, %v318
    %v320 = vpop.f32.mrf.mxu0
    %321 = vdwg.mxu0
    %v323 = vsel %vm248, 0.0, 0
    %325 = vmatprep.subr.mxu0 0.0
    %326 = vmatpush1.msra.mxu0 0.0
    %327 = vmatprep.subr.mxu0 0.0
    %328 = vmatpush1.msra.mxu0 0.0
    %329 = vmatprep.subr.mxu0 0.0
    %330 = vmatpush1.msra.mxu0 0.0
    %331 = vmatprep.subr.mxu0 0.0
    %332 = vmatpush1.msra.mxu0 0.0
    %333 = vmatprep.subr.mxu0 0.0
    %334 = vmatpush1.msra.mxu0 0.0
    %335 = vmatprep.subr.mxu0 0.0
    %336 = vmatpush1.msra.mxu0 0.0
    %337 = vmatprep.subr.mxu0 0.0
    %338 = vmatpush1.msra.mxu0 0.0
    %339 = vmatprep.subr.mxu0 0.0
    %340 = vmatpush1.msra.mxu0 0.0
    %341 = vmatprep.subr.mxu0 0.0
    %342 = vmatpush1.msra.mxu0 0.0
    %343 = vmatprep.subr.mxu0 0.0
    %344 = vmatpush1.msra.mxu0 0.0
    %345 = vmatprep.subr.mxu0 0.0
    %346 = vmatpush1.msra.mxu0 0.0
    %347 = vmatprep.subr.mxu0 0.0
    %348 = vmatpush1.msra.mxu0 0.0
    %349 = vmatprep.subr.mxu0 0.0
    %350 = vmatpush1.msra.mxu0 %v212
    %351 = vmatprep.subr.mxu0 0.0
    %352 = vmatpush1.msra.mxu0 %v211
    %353 = vmatprep.subr.mxu0 0.0
    %354 = vmatpush1.msra.mxu0 %v210
    %355 = vmatprep.subr.mxu0 0.0
    %356 = vmatpush1.msra.mxu0 %v209
    %357 = vmatprep.subr.mxu0 0.0
    %358 = vmatpush2.msra.mxu0 0.0
    %359 = vmatprep.subr.mxu0 0.0
    %360 = vmatpush2.msra.mxu0 0.0
    %361 = vmatprep.subr.mxu0 0.0
    %362 = vmatpush2.msra.mxu0 0.0
    %363 = vmatprep.subr.mxu0 0.0
    %364 = vmatpush2.msra.mxu0 0.0
    %365 = vmatprep.subr.mxu0 0.0
    %366 = vmatpush2.msra.mxu0 0.0
    %367 = vmatprep.subr.mxu0 0.0
    %368 = vmatpush2.msra.mxu0 0.0
    %369 = vmatprep.subr.mxu0 0.0
    %370 = vmatpush2.msra.mxu0 0.0
    %371 = vmatprep.subr.mxu0 0.0
    %372 = vmatpush2.msra.mxu0 0.0
    %373 = vmatprep.subr.mxu0 0.0
    %374 = vmatpush2.msra.mxu0 0.0
    %375 = vmatprep.subr.mxu0 0.0
    %376 = vmatpush2.msra.mxu0 0.0
    %377 = vmatprep.subr.mxu0 0.0
    %378 = vmatpush2.msra.mxu0 0.0
    %379 = vmatprep.subr.mxu0 0.0
    %380 = vmatpush2.msra.mxu0 0.0
    %381 = vmatprep.subr.mxu0 0.0
    %382 = vmatpush2.msra.mxu0 0.0
    %383 = vmatprep.subr.mxu0 0.0
    %384 = vmatpush2.msra.mxu0 0.0
    %385 = vmatprep.subr.mxu0 0.0
    %386 = vmatpush2.msra.mxu0 0.0
    %387 = vmatprep.subr.mxu0 0.0
    %388 = vmatpush2.msra.mxu0 0.0
    %389 = vmatprep.mubr.f32.mxu0 0.0
    %390 = vmatmul.mubr.f32.gmra.mxu0 %v323
    %v391 = vpop.f32.mrf.mxu0
    %v392 = vadd.f32 0.0, %v391
    %v393 = vpop.f32.mrf.mxu0
    %394 = vdwg.mxu0
    %v395 = vadd.f32 %v319, %v392
    %v396 = vxor.u32 %v395, 2147483648
    %v397 = vmul.f32 %v396, 1.442695
    %v398 = vpow.pop %v397
    %v399 = vadd.f32 %v398, 1.0
    %v400 = vrcp.pop %v399
    %v401 = vmul.f32 1.0, %v400
    %v402 = vadd.f32 %v392, %v238
    %404 = vrot.lane.b32.xlu0 %v402, 32
    %v405 = vpop.permute.xlu0 %404
    %v407 = vmul.f32 %v401, %v405
    %409 = vrot.lane.b32.xlu0 %v407, 96
    %v410 = vpop.permute.xlu0 %409
    %v412 = vadd.f32 %v319, %v410
    %v413 = vtanh.pop %v412
    %v414 = vsub.f32 0.0, %v413
    %416 = vrot.lane.b32.xlu0 %v414, 64
    %v417 = vpop.permute.xlu0 %416
    %v419 = vmul.f32 %v401, %v417
    %421 = vrot.lane.b32.xlu0 %v419, 64
    %v422 = vpop.permute.xlu0 %421
    %v424 = vadd.f32 %v413, %v422
    %v426 = vsel %vm248, %v424, 0
    %428 = vmatprep.subr.mxu0 0.0
    %429 = vmatpush1.msra.mxu0 0.0
    %430 = vmatprep.subr.mxu0 0.0
    %431 = vmatpush1.msra.mxu0 0.0
    %432 = vmatprep.subr.mxu0 0.0
    %433 = vmatpush1.msra.mxu0 0.0
    %434 = vmatprep.subr.mxu0 0.0
    %435 = vmatpush1.msra.mxu0 0.0
    %436 = vmatprep.subr.mxu0 0.0
    %437 = vmatpush1.msra.mxu0 0.0
    %438 = vmatprep.subr.mxu0 0.0
    %439 = vmatpush1.msra.mxu0 0.0
    %440 = vmatprep.subr.mxu0 0.0
    %441 = vmatpush1.msra.mxu0 0.0
    %442 = vmatprep.subr.mxu0 0.0
    %443 = vmatpush1.msra.mxu0 0.0
    %444 = vmatprep.subr.mxu0 0.0
    %445 = vmatpush1.msra.mxu0 0.0
    %446 = vmatprep.subr.mxu0 0.0
    %447 = vmatpush1.msra.mxu0 0.0
    %448 = vmatprep.subr.mxu0 0.0
    %449 = vmatpush1.msra.mxu0 0.0
    %450 = vmatprep.subr.mxu0 0.0
    %451 = vmatpush1.msra.mxu0 0.0
    %452 = vmatprep.subr.mxu0 0.0
    %453 = vmatpush1.msra.mxu0 %v208
    %454 = vmatprep.subr.mxu0 0.0
    %455 = vmatpush1.msra.mxu0 %v207
    %456 = vmatprep.subr.mxu0 0.0
    %457 = vmatpush1.msra.mxu0 %v206
    %458 = vmatprep.subr.mxu0 0.0
    %459 = vmatpush1.msra.mxu0 %v205
    %460 = vmatprep.subr.mxu0 0.0
    %461 = vmatpush2.msra.mxu0 0.0
    %462 = vmatprep.subr.mxu0 0.0
    %463 = vmatpush2.msra.mxu0 0.0
    %464 = vmatprep.subr.mxu0 0.0
    %465 = vmatpush2.msra.mxu0 0.0
    %466 = vmatprep.subr.mxu0 0.0
    %467 = vmatpush2.msra.mxu0 0.0
    %468 = vmatprep.subr.mxu0 0.0
    %469 = vmatpush2.msra.mxu0 0.0
    %470 = vmatprep.subr.mxu0 0.0
    %471 = vmatpush2.msra.mxu0 0.0
    %472 = vmatprep.subr.mxu0 0.0
    %473 = vmatpush2.msra.mxu0 0.0
    %474 = vmatprep.subr.mxu0 0.0
    %475 = vmatpush2.msra.mxu0 0.0
    %476 = vmatprep.subr.mxu0 0.0
    %477 = vmatpush2.msra.mxu0 0.0
    %478 = vmatprep.subr.mxu0 0.0
    %479 = vmatpush2.msra.mxu0 0.0
    %480 = vmatprep.subr.mxu0 0.0
    %481 = vmatpush2.msra.mxu0 0.0
    %482 = vmatprep.subr.mxu0 0.0
    %483 = vmatpush2.msra.mxu0 0.0
    %484 = vmatprep.subr.mxu0 0.0
    %485 = vmatpush2.msra.mxu0 0.0
    %486 = vmatprep.subr.mxu0 0.0
    %487 = vmatpush2.msra.mxu0 0.0
    %488 = vmatprep.subr.mxu0 0.0
    %489 = vmatpush2.msra.mxu0 0.0
    %490 = vmatprep.subr.mxu0 0.0
    %491 = vmatpush2.msra.mxu0 0.0
    %492 = vmatprep.mubr.f32.mxu0 0.0
    %493 = vmatmul.mubr.f32.gmra.mxu0 %v426
    %v494 = vpop.f32.mrf.mxu0
    %v495 = vadd.f32 %v231, %v494
    %v496 = vpop.f32.mrf.mxu0
    %497 = vdwg.mxu0
    %498 = vmatprep.subr.mxu0 0.0
    %499 = vmatpush1.msra.mxu0 0.0
    %500 = vmatprep.subr.mxu0 0.0
    %501 = vmatpush1.msra.mxu0 0.0
    %502 = vmatprep.subr.mxu0 0.0
    %503 = vmatpush1.msra.mxu0 0.0
    %504 = vmatprep.subr.mxu0 0.0
    %505 = vmatpush1.msra.mxu0 0.0
    %506 = vmatprep.subr.mxu0 0.0
    %507 = vmatpush1.msra.mxu0 0.0
    %508 = vmatprep.subr.mxu0 0.0
    %509 = vmatpush1.msra.mxu0 0.0
    %510 = vmatprep.subr.mxu0 0.0
    %511 = vmatpush1.msra.mxu0 0.0
    %512 = vmatprep.subr.mxu0 0.0
    %513 = vmatpush1.msra.mxu0 0.0
    %514 = vmatprep.subr.mxu0 0.0
    %515 = vmatpush1.msra.mxu0 0.0
    %516 = vmatprep.subr.mxu0 0.0
    %517 = vmatpush1.msra.mxu0 0.0
    %518 = vmatprep.subr.mxu0 0.0
    %519 = vmatpush1.msra.mxu0 0.0
    %520 = vmatprep.subr.mxu0 0.0
    %521 = vmatpush1.msra.mxu0 0.0
    %522 = vmatprep.subr.mxu0 0.0
    %523 = vmatpush1.msra.mxu0 %v217
    %524 = vmatprep.subr.mxu0 0.0
    %525 = vmatpush1.msra.mxu0 %v216
    %526 = vmatprep.subr.mxu0 0.0
    %527 = vmatpush1.msra.mxu0 %v215
    %528 = vmatprep.subr.mxu0 0.0
    %529 = vmatpush1.msra.mxu0 %v214
    %530 = vmatprep.subr.mxu0 0.0
    %531 = vmatpush2.msra.mxu0 0.0
    %532 = vmatprep.subr.mxu0 0.0
    %533 = vmatpush2.msra.mxu0 0.0
    %534 = vmatprep.subr.mxu0 0.0
    %535 = vmatpush2.msra.mxu0 0.0
    %536 = vmatprep.subr.mxu0 0.0
    %537 = vmatpush2.msra.mxu0 0.0
    %538 = vmatprep.subr.mxu0 0.0
    %539 = vmatpush2.msra.mxu0 0.0
    %540 = vmatprep.subr.mxu0 0.0
    %541 = vmatpush2.msra.mxu0 0.0
    %542 = vmatprep.subr.mxu0 0.0
    %543 = vmatpush2.msra.mxu0 0.0
    %544 = vmatprep.subr.mxu0 0.0
    %545 = vmatpush2.msra.mxu0 0.0
    %546 = vmatprep.subr.mxu0 0.0
    %547 = vmatpush2.msra.mxu0 0.0
    %548 = vmatprep.subr.mxu0 0.0
    %549 = vmatpush2.msra.mxu0 0.0
    %550 = vmatprep.subr.mxu0 0.0
    %551 = vmatpush2.msra.mxu0 0.0
    %552 = vmatprep.subr.mxu0 0.0
    %553 = vmatpush2.msra.mxu0 0.0
    %554 = vmatprep.subr.mxu0 0.0
    %555 = vmatpush2.msra.mxu0 0.0
    %556 = vmatprep.subr.mxu0 0.0
    %557 = vmatpush2.msra.mxu0 0.0
    %558 = vmatprep.subr.mxu0 0.0
    %559 = vmatpush2.msra.mxu0 0.0
    %560 = vmatprep.subr.mxu0 0.0
    %561 = vmatpush2.msra.mxu0 0.0
    %562 = vmatprep.mubr.f32.mxu0 0.0
    %563 = vmatmul.mubr.f32.gmra.mxu0 %v323
    %v564 = vpop.f32.mrf.mxu0
    %v565 = vadd.f32 0.0, %v564
    %v566 = vpop.f32.mrf.mxu0
    %567 = vdwg.mxu0
    %v568 = vadd.f32 %v495, %v565
    %v569 = vxor.u32 %v568, 2147483648
    %v570 = vmul.f32 %v569, 1.442695
    %v571 = vpow.pop %v570
    %v572 = vadd.f32 %v571, 1.0
    %v573 = vrcp.pop %v572
    %v574 = vmul.f32 1.0, %v573
    %v575 = vadd.f32 %v565, %v246
    %577 = vrot.lane.b32.xlu0 %v575, 32
    %v578 = vpop.permute.xlu0 %577
    %v580 = vmul.f32 %v574, %v578
    %582 = vrot.lane.b32.xlu0 %v580, 96
    %v583 = vpop.permute.xlu0 %582
    %v585 = vadd.f32 %v495, %v583
    %v586 = vtanh.pop %v585
    %v587 = vsub.f32 0.0, %v586
    %589 = vrot.lane.b32.xlu0 %v587, 64
    %v590 = vpop.permute.xlu0 %589
    %v592 = vmul.f32 %v574, %v590
    %594 = vrot.lane.b32.xlu0 %v592, 64
    %v595 = vpop.permute.xlu0 %594
    %v597 = vadd.f32 %v586, %v595
    %v598 = vadd.f32 %v597, 0.0
    %599 = vmatprep.subr.mxu0 0.0
    %600 = vmatpush1.msra.mxu0 0.0
    %601 = vmatprep.subr.mxu0 0.0
    %602 = vmatpush1.msra.mxu0 0.0
    %603 = vmatprep.subr.mxu0 0.0
    %604 = vmatpush1.msra.mxu0 0.0
    %605 = vmatprep.subr.mxu0 0.0
    %606 = vmatpush1.msra.mxu0 0.0
    %607 = vmatprep.subr.mxu0 0.0
    %608 = vmatpush1.msra.mxu0 0.0
    %609 = vmatprep.subr.mxu0 0.0
    %610 = vmatpush1.msra.mxu0 0.0
    %611 = vmatprep.subr.mxu0 0.0
    %612 = vmatpush1.msra.mxu0 0.0
    %613 = vmatprep.subr.mxu0 0.0
    %614 = vmatpush1.msra.mxu0 0.0
    %615 = vmatprep.subr.mxu0 0.0
    %616 = vmatpush1.msra.mxu0 0.0
    %617 = vmatprep.subr.mxu0 0.0
    %618 = vmatpush1.msra.mxu0 0.0
    %619 = vmatprep.subr.mxu0 0.0
    %620 = vmatpush1.msra.mxu0 0.0
    %621 = vmatprep.subr.mxu0 0.0
    %622 = vmatpush1.msra.mxu0 0.0
    %623 = vmatprep.subr.mxu0 0.0
    %624 = vmatpush1.msra.mxu0 %v212
    %625 = vmatprep.subr.mxu0 0.0
    %626 = vmatpush1.msra.mxu0 %v211
    %627 = vmatprep.subr.mxu0 0.0
    %628 = vmatpush1.msra.mxu0 %v210
    %629 = vmatprep.subr.mxu0 0.0
    %630 = vmatpush1.msra.mxu0 %v209
    %631 = vmatprep.subr.mxu0 0.0
    %632 = vmatpush2.msra.mxu0 0.0
    %633 = vmatprep.subr.mxu0 0.0
    %634 = vmatpush2.msra.mxu0 0.0
    %635 = vmatprep.subr.mxu0 0.0
    %636 = vmatpush2.msra.mxu0 0.0
    %637 = vmatprep.subr.mxu0 0.0
    %638 = vmatpush2.msra.mxu0 0.0
    %639 = vmatprep.subr.mxu0 0.0
    %640 = vmatpush2.msra.mxu0 0.0
    %641 = vmatprep.subr.mxu0 0.0
    %642 = vmatpush2.msra.mxu0 0.0
    %643 = vmatprep.subr.mxu0 0.0
    %644 = vmatpush2.msra.mxu0 0.0
    %645 = vmatprep.subr.mxu0 0.0
    %646 = vmatpush2.msra.mxu0 0.0
    %647 = vmatprep.subr.mxu0 0.0
    %648 = vmatpush2.msra.mxu0 0.0
    %649 = vmatprep.subr.mxu0 0.0
    %650 = vmatpush2.msra.mxu0 0.0
    %651 = vmatprep.subr.mxu0 0.0
    %652 = vmatpush2.msra.mxu0 0.0
    %653 = vmatprep.subr.mxu0 0.0
    %654 = vmatpush2.msra.mxu0 0.0
    %655 = vmatprep.subr.mxu0 0.0
    %656 = vmatpush2.msra.mxu0 0.0
    %657 = vmatprep.subr.mxu0 0.0
    %658 = vmatpush2.msra.mxu0 0.0
    %659 = vmatprep.subr.mxu0 0.0
    %660 = vmatpush2.msra.mxu0 0.0
    %661 = vmatprep.subr.mxu0 0.0
    %662 = vmatpush2.msra.mxu0 0.0
    %663 = vmatprep.mubr.f32.mxu0 0.0
    %664 = vmatmul.mubr.f32.gmra.mxu0 %v426
    %v665 = vpop.f32.mrf.mxu0
    %v666 = vadd.f32 0.0, %v665
    %v667 = vpop.f32.mrf.mxu0
    %668 = vdwg.mxu0
    %v669 = vadd.f32 %v319, %v666
    %v670 = vxor.u32 %v669, 2147483648
    %v671 = vmul.f32 %v670, 1.442695
    %v672 = vpow.pop %v671
    %v673 = vadd.f32 %v672, 1.0
    %v674 = vrcp.pop %v673
    %v675 = vmul.f32 1.0, %v674
    %v676 = vadd.f32 %v666, %v238
    %678 = vrot.lane.b32.xlu0 %v676, 32
    %v679 = vpop.permute.xlu0 %678
    %v681 = vmul.f32 %v675, %v679
    %683 = vrot.lane.b32.xlu0 %v681, 96
    %v684 = vpop.permute.xlu0 %683
    %v686 = vadd.f32 %v319, %v684
    %v687 = vtanh.pop %v686
    %v688 = vsub.f32 %v424, %v687
    %690 = vrot.lane.b32.xlu0 %v688, 64
    %v691 = vpop.permute.xlu0 %690
    %v693 = vmul.f32 %v675, %v691
    %695 = vrot.lane.b32.xlu0 %v693, 64
    %v696 = vpop.permute.xlu0 %695
    %v698 = vadd.f32 %v687, %v696
    %v700 = vsel %vm248, %v698, 0
    %702 = vmatprep.subr.mxu0 0.0
    %703 = vmatpush1.msra.mxu0 0.0
    %704 = vmatprep.subr.mxu0 0.0
    %705 = vmatpush1.msra.mxu0 0.0
    %706 = vmatprep.subr.mxu0 0.0
    %707 = vmatpush1.msra.mxu0 0.0
    %708 = vmatprep.subr.mxu0 0.0
    %709 = vmatpush1.msra.mxu0 0.0
    %710 = vmatprep.subr.mxu0 0.0
    %711 = vmatpush1.msra.mxu0 0.0
    %712 = vmatprep.subr.mxu0 0.0
    %713 = vmatpush1.msra.mxu0 0.0
    %714 = vmatprep.subr.mxu0 0.0
    %715 = vmatpush1.msra.mxu0 0.0
    %716 = vmatprep.subr.mxu0 0.0
    %717 = vmatpush1.msra.mxu0 0.0
    %718 = vmatprep.subr.mxu0 0.0
    %719 = vmatpush1.msra.mxu0 0.0
    %720 = vmatprep.subr.mxu0 0.0
    %721 = vmatpush1.msra.mxu0 0.0
    %722 = vmatprep.subr.mxu0 0.0
    %723 = vmatpush1.msra.mxu0 0.0
    %724 = vmatprep.subr.mxu0 0.0
    %725 = vmatpush1.msra.mxu0 0.0
    %726 = vmatprep.subr.mxu0 0.0
    %727 = vmatpush1.msra.mxu0 %v208
    %728 = vmatprep.subr.mxu0 0.0
    %729 = vmatpush1.msra.mxu0 %v207
    %730 = vmatprep.subr.mxu0 0.0
    %731 = vmatpush1.msra.mxu0 %v206
    %732 = vmatprep.subr.mxu0 0.0
    %733 = vmatpush1.msra.mxu0 %v205
    %734 = vmatprep.subr.mxu0 0.0
    %735 = vmatpush2.msra.mxu0 0.0
    %736 = vmatprep.subr.mxu0 0.0
    %737 = vmatpush2.msra.mxu0 0.0
    %738 = vmatprep.subr.mxu0 0.0
    %739 = vmatpush2.msra.mxu0 0.0
    %740 = vmatprep.subr.mxu0 0.0
    %741 = vmatpush2.msra.mxu0 0.0
    %742 = vmatprep.subr.mxu0 0.0
    %743 = vmatpush2.msra.mxu0 0.0
    %744 = vmatprep.subr.mxu0 0.0
    %745 = vmatpush2.msra.mxu0 0.0
    %746 = vmatprep.subr.mxu0 0.0
    %747 = vmatpush2.msra.mxu0 0.0
    %748 = vmatprep.subr.mxu0 0.0
    %749 = vmatpush2.msra.mxu0 0.0
    %750 = vmatprep.subr.mxu0 0.0
    %751 = vmatpush2.msra.mxu0 0.0
    %752 = vmatprep.subr.mxu0 0.0
    %753 = vmatpush2.msra.mxu0 0.0
    %754 = vmatprep.subr.mxu0 0.0
    %755 = vmatpush2.msra.mxu0 0.0
    %756 = vmatprep.subr.mxu0 0.0
    %757 = vmatpush2.msra.mxu0 0.0
    %758 = vmatprep.subr.mxu0 0.0
    %759 = vmatpush2.msra.mxu0 0.0
    %760 = vmatprep.subr.mxu0 0.0
    %761 = vmatpush2.msra.mxu0 0.0
    %762 = vmatprep.subr.mxu0 0.0
    %763 = vmatpush2.msra.mxu0 0.0
    %764 = vmatprep.subr.mxu0 0.0
    %765 = vmatpush2.msra.mxu0 0.0
    %766 = vmatprep.mubr.f32.mxu0 0.0
    %767 = vmatmul.mubr.f32.gmra.mxu0 %v700
    %v768 = vpop.f32.mrf.mxu0
    %v769 = vadd.f32 %v231, %v768
    %v770 = vpop.f32.mrf.mxu0
    %771 = vdwg.mxu0
    %v773 = vsel %vm248, %v597, 0
    %775 = vmatprep.subr.mxu0 0.0
    %776 = vmatpush1.msra.mxu0 0.0
    %777 = vmatprep.subr.mxu0 0.0
    %778 = vmatpush1.msra.mxu0 0.0
    %779 = vmatprep.subr.mxu0 0.0
    %780 = vmatpush1.msra.mxu0 0.0
    %781 = vmatprep.subr.mxu0 0.0
    %782 = vmatpush1.msra.mxu0 0.0
    %783 = vmatprep.subr.mxu0 0.0
    %784 = vmatpush1.msra.mxu0 0.0
    %785 = vmatprep.subr.mxu0 0.0
    %786 = vmatpush1.msra.mxu0 0.0
    %787 = vmatprep.subr.mxu0 0.0
    %788 = vmatpush1.msra.mxu0 0.0
    %789 = vmatprep.subr.mxu0 0.0
    %790 = vmatpush1.msra.mxu0 0.0
    %791 = vmatprep.subr.mxu0 0.0
    %792 = vmatpush1.msra.mxu0 0.0
    %793 = vmatprep.subr.mxu0 0.0
    %794 = vmatpush1.msra.mxu0 0.0
    %795 = vmatprep.subr.mxu0 0.0
    %796 = vmatpush1.msra.mxu0 0.0
    %797 = vmatprep.subr.mxu0 0.0
    %798 = vmatpush1.msra.mxu0 0.0
    %799 = vmatprep.subr.mxu0 0.0
    %800 = vmatpush1.msra.mxu0 %v217
    %801 = vmatprep.subr.mxu0 0.0
    %802 = vmatpush1.msra.mxu0 %v216
    %803 = vmatprep.subr.mxu0 0.0
    %804 = vmatpush1.msra.mxu0 %v215
    %805 = vmatprep.subr.mxu0 0.0
    %806 = vmatpush1.msra.mxu0 %v214
    %807 = vmatprep.subr.mxu0 0.0
    %808 = vmatpush2.msra.mxu0 0.0
    %809 = vmatprep.subr.mxu0 0.0
    %810 = vmatpush2.msra.mxu0 0.0
    %811 = vmatprep.subr.mxu0 0.0
    %812 = vmatpush2.msra.mxu0 0.0
    %813 = vmatprep.subr.mxu0 0.0
    %814 = vmatpush2.msra.mxu0 0.0
    %815 = vmatprep.subr.mxu0 0.0
    %816 = vmatpush2.msra.mxu0 0.0
    %817 = vmatprep.subr.mxu0 0.0
    %818 = vmatpush2.msra.mxu0 0.0
    %819 = vmatprep.subr.mxu0 0.0
    %820 = vmatpush2.msra.mxu0 0.0
    %821 = vmatprep.subr.mxu0 0.0
    %822 = vmatpush2.msra.mxu0 0.0
    %823 = vmatprep.subr.mxu0 0.0
    %824 = vmatpush2.msra.mxu0 0.0
    %825 = vmatprep.subr.mxu0 0.0
    %826 = vmatpush2.msra.mxu0 0.0
    %827 = vmatprep.subr.mxu0 0.0
    %828 = vmatpush2.msra.mxu0 0.0
    %829 = vmatprep.subr.mxu0 0.0
    %830 = vmatpush2.msra.mxu0 0.0
    %831 = vmatprep.subr.mxu0 0.0
    %832 = vmatpush2.msra.mxu0 0.0
    %833 = vmatprep.subr.mxu0 0.0
    %834 = vmatpush2.msra.mxu0 0.0
    %835 = vmatprep.subr.mxu0 0.0
    %836 = vmatpush2.msra.mxu0 0.0
    %837 = vmatprep.subr.mxu0 0.0
    %838 = vmatpush2.msra.mxu0 0.0
    %839 = vmatprep.mubr.f32.mxu0 0.0
    %840 = vmatmul.mubr.f32.gmra.mxu0 %v773
    %v841 = vpop.f32.mrf.mxu0
    %v842 = vadd.f32 0.0, %v841
    %v843 = vpop.f32.mrf.mxu0
    %844 = vdwg.mxu0
    %v845 = vadd.f32 %v769, %v842
    %v846 = vxor.u32 %v845, 2147483648
    %v847 = vmul.f32 %v846, 1.442695
    %v848 = vpow.pop %v847
    %v849 = vadd.f32 %v848, 1.0
    %v850 = vrcp.pop %v849
    %v851 = vmul.f32 1.0, %v850
    %v852 = vadd.f32 %v842, %v246
    %854 = vrot.lane.b32.xlu0 %v852, 32
    %v855 = vpop.permute.xlu0 %854
    %v857 = vmul.f32 %v851, %v855
    %859 = vrot.lane.b32.xlu0 %v857, 96
    %v860 = vpop.permute.xlu0 %859
    %v862 = vadd.f32 %v769, %v860
    %v863 = vtanh.pop %v862
    %v864 = vsub.f32 %v597, %v863
    %866 = vrot.lane.b32.xlu0 %v864, 64
    %v867 = vpop.permute.xlu0 %866
    %v869 = vmul.f32 %v851, %v867
    %871 = vrot.lane.b32.xlu0 %v869, 64
    %v872 = vpop.permute.xlu0 %871
    %v874 = vadd.f32 %v863, %v872
    %v875 = vadd.f32 %v598, %v874
    %876 = vmatprep.subr.mxu0 0.0
    %877 = vmatpush1.msra.mxu0 0.0
    %878 = vmatprep.subr.mxu0 0.0
    %879 = vmatpush1.msra.mxu0 0.0
    %880 = vmatprep.subr.mxu0 0.0
    %881 = vmatpush1.msra.mxu0 0.0
    %882 = vmatprep.subr.mxu0 0.0
    %883 = vmatpush1.msra.mxu0 0.0
    %884 = vmatprep.subr.mxu0 0.0
    %885 = vmatpush1.msra.mxu0 0.0
    %886 = vmatprep.subr.mxu0 0.0
    %887 = vmatpush1.msra.mxu0 0.0
    %888 = vmatprep.subr.mxu0 0.0
    %889 = vmatpush1.msra.mxu0 0.0
    %890 = vmatprep.subr.mxu0 0.0
    %891 = vmatpush1.msra.mxu0 0.0
    %892 = vmatprep.subr.mxu0 0.0
    %893 = vmatpush1.msra.mxu0 0.0
    %894 = vmatprep.subr.mxu0 0.0
    %895 = vmatpush1.msra.mxu0 0.0
    %896 = vmatprep.subr.mxu0 0.0
    %897 = vmatpush1.msra.mxu0 0.0
    %898 = vmatprep.subr.mxu0 0.0
    %899 = vmatpush1.msra.mxu0 0.0
    %900 = vmatprep.subr.mxu0 0.0
    %901 = vmatpush1.msra.mxu0 %v212
    %902 = vmatprep.subr.mxu0 0.0
    %903 = vmatpush1.msra.mxu0 %v211
    %904 = vmatprep.subr.mxu0 0.0
    %905 = vmatpush1.msra.mxu0 %v210
    %906 = vmatprep.subr.mxu0 0.0
    %907 = vmatpush1.msra.mxu0 %v209
    %908 = vmatprep.subr.mxu0 0.0
    %909 = vmatpush2.msra.mxu0 0.0
    %910 = vmatprep.subr.mxu0 0.0
    %911 = vmatpush2.msra.mxu0 0.0
    %912 = vmatprep.subr.mxu0 0.0
    %913 = vmatpush2.msra.mxu0 0.0
    %914 = vmatprep.subr.mxu0 0.0
    %915 = vmatpush2.msra.mxu0 0.0
    %916 = vmatprep.subr.mxu0 0.0
    %917 = vmatpush2.msra.mxu0 0.0
    %918 = vmatprep.subr.mxu0 0.0
    %919 = vmatpush2.msra.mxu0 0.0
    %920 = vmatprep.subr.mxu0 0.0
    %921 = vmatpush2.msra.mxu0 0.0
    %922 = vmatprep.subr.mxu0 0.0
    %923 = vmatpush2.msra.mxu0 0.0
    %924 = vmatprep.subr.mxu0 0.0
    %925 = vmatpush2.msra.mxu0 0.0
    %926 = vmatprep.subr.mxu0 0.0
    %927 = vmatpush2.msra.mxu0 0.0
    %928 = vmatprep.subr.mxu0 0.0
    %929 = vmatpush2.msra.mxu0 0.0
    %930 = vmatprep.subr.mxu0 0.0
    %931 = vmatpush2.msra.mxu0 0.0
    %932 = vmatprep.subr.mxu0 0.0
    %933 = vmatpush2.msra.mxu0 0.0
    %934 = vmatprep.subr.mxu0 0.0
    %935 = vmatpush2.msra.mxu0 0.0
    %936 = vmatprep.subr.mxu0 0.0
    %937 = vmatpush2.msra.mxu0 0.0
    %938 = vmatprep.subr.mxu0 0.0
    %939 = vmatpush2.msra.mxu0 0.0
    %940 = vmatprep.mubr.f32.mxu0 0.0
    %941 = vmatmul.mubr.f32.gmra.mxu0 %v700
    %v942 = vpop.f32.mrf.mxu0
    %v943 = vadd.f32 0.0, %v942
    %v944 = vpop.f32.mrf.mxu0
    %945 = vdwg.mxu0
    %v946 = vadd.f32 %v319, %v943
    %v947 = vxor.u32 %v946, 2147483648
    %v948 = vmul.f32 %v947, 1.442695
    %v949 = vpow.pop %v948
    %v950 = vadd.f32 %v949, 1.0
    %v951 = vrcp.pop %v950
    %v952 = vmul.f32 1.0, %v951
    %v953 = vadd.f32 %v943, %v238
    %955 = vrot.lane.b32.xlu0 %v953, 32
    %v956 = vpop.permute.xlu0 %955
    %v958 = vmul.f32 %v952, %v956
    %960 = vrot.lane.b32.xlu0 %v958, 96
    %v961 = vpop.permute.xlu0 %960
    %v963 = vadd.f32 %v319, %v961
    %v964 = vtanh.pop %v963
    %v965 = vsub.f32 %v698, %v964
    %967 = vrot.lane.b32.xlu0 %v965, 64
    %v968 = vpop.permute.xlu0 %967
    %v970 = vmul.f32 %v952, %v968
    %972 = vrot.lane.b32.xlu0 %v970, 64
    %v973 = vpop.permute.xlu0 %972
    %v975 = vadd.f32 %v964, %v973
    %v977 = vsel %vm248, %v975, 0
    %979 = vmatprep.subr.mxu0 0.0
    %980 = vmatpush1.msra.mxu0 0.0
    %981 = vmatprep.subr.mxu0 0.0
    %982 = vmatpush1.msra.mxu0 0.0
    %983 = vmatprep.subr.mxu0 0.0
    %984 = vmatpush1.msra.mxu0 0.0
    %985 = vmatprep.subr.mxu0 0.0
    %986 = vmatpush1.msra.mxu0 0.0
    %987 = vmatprep.subr.mxu0 0.0
    %988 = vmatpush1.msra.mxu0 0.0
    %989 = vmatprep.subr.mxu0 0.0
    %990 = vmatpush1.msra.mxu0 0.0
    %991 = vmatprep.subr.mxu0 0.0
    %992 = vmatpush1.msra.mxu0 0.0
    %993 = vmatprep.subr.mxu0 0.0
    %994 = vmatpush1.msra.mxu0 0.0
    %995 = vmatprep.subr.mxu0 0.0
    %996 = vmatpush1.msra.mxu0 0.0
    %997 = vmatprep.subr.mxu0 0.0
    %998 = vmatpush1.msra.mxu0 0.0
    %999 = vmatprep.subr.mxu0 0.0
    %1000 = vmatpush1.msra.mxu0 0.0
    %1001 = vmatprep.subr.mxu0 0.0
    %1002 = vmatpush1.msra.mxu0 0.0
    %1003 = vmatprep.subr.mxu0 0.0
    %1004 = vmatpush1.msra.mxu0 %v208
    %1005 = vmatprep.subr.mxu0 0.0
    %1006 = vmatpush1.msra.mxu0 %v207
    %1007 = vmatprep.subr.mxu0 0.0
    %1008 = vmatpush1.msra.mxu0 %v206
    %1009 = vmatprep.subr.mxu0 0.0
    %1010 = vmatpush1.msra.mxu0 %v205
    %1011 = vmatprep.subr.mxu0 0.0
    %1012 = vmatpush2.msra.mxu0 0.0
    %1013 = vmatprep.subr.mxu0 0.0
    %1014 = vmatpush2.msra.mxu0 0.0
    %1015 = vmatprep.subr.mxu0 0.0
    %1016 = vmatpush2.msra.mxu0 0.0
    %1017 = vmatprep.subr.mxu0 0.0
    %1018 = vmatpush2.msra.mxu0 0.0
    %1019 = vmatprep.subr.mxu0 0.0
    %1020 = vmatpush2.msra.mxu0 0.0
    %1021 = vmatprep.subr.mxu0 0.0
    %1022 = vmatpush2.msra.mxu0 0.0
    %1023 = vmatprep.subr.mxu0 0.0
    %1024 = vmatpush2.msra.mxu0 0.0
    %1025 = vmatprep.subr.mxu0 0.0
    %1026 = vmatpush2.msra.mxu0 0.0
    %1027 = vmatprep.subr.mxu0 0.0
    %1028 = vmatpush2.msra.mxu0 0.0
    %1029 = vmatprep.subr.mxu0 0.0
    %1030 = vmatpush2.msra.mxu0 0.0
    %1031 = vmatprep.subr.mxu0 0.0
    %1032 = vmatpush2.msra.mxu0 0.0
    %1033 = vmatprep.subr.mxu0 0.0
    %1034 = vmatpush2.msra.mxu0 0.0
    %1035 = vmatprep.subr.mxu0 0.0
    %1036 = vmatpush2.msra.mxu0 0.0
    %1037 = vmatprep.subr.mxu0 0.0
    %1038 = vmatpush2.msra.mxu0 0.0
    %1039 = vmatprep.subr.mxu0 0.0
    %1040 = vmatpush2.msra.mxu0 0.0
    %1041 = vmatprep.subr.mxu0 0.0
    %1042 = vmatpush2.msra.mxu0 0.0
    %1043 = vmatprep.mubr.f32.mxu0 0.0
    %1044 = vmatmul.mubr.f32.gmra.mxu0 %v977
    %v1045 = vpop.f32.mrf.mxu0
    %v1046 = vadd.f32 %v231, %v1045
    %v1047 = vpop.f32.mrf.mxu0
    %1048 = vdwg.mxu0
    %v1050 = vsel %vm248, %v874, 0
    %1052 = vmatprep.subr.mxu0 0.0
    %1053 = vmatpush1.msra.mxu0 0.0
    %1054 = vmatprep.subr.mxu0 0.0
    %1055 = vmatpush1.msra.mxu0 0.0
    %1056 = vmatprep.subr.mxu0 0.0
    %1057 = vmatpush1.msra.mxu0 0.0
    %1058 = vmatprep.subr.mxu0 0.0
    %1059 = vmatpush1.msra.mxu0 0.0
    %1060 = vmatprep.subr.mxu0 0.0
    %1061 = vmatpush1.msra.mxu0 0.0
    %1062 = vmatprep.subr.mxu0 0.0
    %1063 = vmatpush1.msra.mxu0 0.0
    %1064 = vmatprep.subr.mxu0 0.0
    %1065 = vmatpush1.msra.mxu0 0.0
    %1066 = vmatprep.subr.mxu0 0.0
    %1067 = vmatpush1.msra.mxu0 0.0
    %1068 = vmatprep.subr.mxu0 0.0
    %1069 = vmatpush1.msra.mxu0 0.0
    %1070 = vmatprep.subr.mxu0 0.0
    %1071 = vmatpush1.msra.mxu0 0.0
    %1072 = vmatprep.subr.mxu0 0.0
    %1073 = vmatpush1.msra.mxu0 0.0
    %1074 = vmatprep.subr.mxu0 0.0
    %1075 = vmatpush1.msra.mxu0 0.0
    %1076 = vmatprep.subr.mxu0 0.0
    %1077 = vmatpush1.msra.mxu0 %v217
    %1078 = vmatprep.subr.mxu0 0.0
    %1079 = vmatpush1.msra.mxu0 %v216
    %1080 = vmatprep.subr.mxu0 0.0
    %1081 = vmatpush1.msra.mxu0 %v215
    %1082 = vmatprep.subr.mxu0 0.0
    %1083 = vmatpush1.msra.mxu0 %v214
    %1084 = vmatprep.subr.mxu0 0.0
    %1085 = vmatpush2.msra.mxu0 0.0
    %1086 = vmatprep.subr.mxu0 0.0
    %1087 = vmatpush2.msra.mxu0 0.0
    %1088 = vmatprep.subr.mxu0 0.0
    %1089 = vmatpush2.msra.mxu0 0.0
    %1090 = vmatprep.subr.mxu0 0.0
    %1091 = vmatpush2.msra.mxu0 0.0
    %1092 = vmatprep.subr.mxu0 0.0
    %1093 = vmatpush2.msra.mxu0 0.0
    %1094 = vmatprep.subr.mxu0 0.0
    %1095 = vmatpush2.msra.mxu0 0.0
    %1096 = vmatprep.subr.mxu0 0.0
    %1097 = vmatpush2.msra.mxu0 0.0
    %1098 = vmatprep.subr.mxu0 0.0
    %1099 = vmatpush2.msra.mxu0 0.0
    %1100 = vmatprep.subr.mxu0 0.0
    %1101 = vmatpush2.msra.mxu0 0.0
    %1102 = vmatprep.subr.mxu0 0.0
    %1103 = vmatpush2.msra.mxu0 0.0
    %1104 = vmatprep.subr.mxu0 0.0
    %1105 = vmatpush2.msra.mxu0 0.0
    %1106 = vmatprep.subr.mxu0 0.0
    %1107 = vmatpush2.msra.mxu0 0.0
    %1108 = vmatprep.subr.mxu0 0.0
    %1109 = vmatpush2.msra.mxu0 0.0
    %1110 = vmatprep.subr.mxu0 0.0
    %1111 = vmatpush2.msra.mxu0 0.0
    %1112 = vmatprep.subr.mxu0 0.0
    %1113 = vmatpush2.msra.mxu0 0.0
    %1114 = vmatprep.subr.mxu0 0.0
    %1115 = vmatpush2.msra.mxu0 0.0
    %1116 = vmatprep.mubr.f32.mxu0 0.0
    %1117 = vmatmul.mubr.f32.gmra.mxu0 %v1050
    %v1118 = vpop.f32.mrf.mxu0
    %v1119 = vadd.f32 0.0, %v1118
    %v1120 = vpop.f32.mrf.mxu0
    %1121 = vdwg.mxu0
    %v1122 = vadd.f32 %v1046, %v1119
    %v1123 = vxor.u32 %v1122, 2147483648
    %v1124 = vmul.f32 %v1123, 1.442695
    %v1125 = vpow.pop %v1124
    %v1126 = vadd.f32 %v1125, 1.0
    %v1127 = vrcp.pop %v1126
    %v1128 = vmul.f32 1.0, %v1127
    %v1129 = vadd.f32 %v1119, %v246
    %1131 = vrot.lane.b32.xlu0 %v1129, 32
    %v1132 = vpop.permute.xlu0 %1131
    %v1134 = vmul.f32 %v1128, %v1132
    %1136 = vrot.lane.b32.xlu0 %v1134, 96
    %v1137 = vpop.permute.xlu0 %1136
    %v1139 = vadd.f32 %v1046, %v1137
    %v1140 = vtanh.pop %v1139
    %v1141 = vsub.f32 %v874, %v1140
    %1143 = vrot.lane.b32.xlu0 %v1141, 64
    %v1144 = vpop.permute.xlu0 %1143
    %v1146 = vmul.f32 %v1128, %v1144
    %1148 = vrot.lane.b32.xlu0 %v1146, 64
    %v1149 = vpop.permute.xlu0 %1148
    %v1151 = vadd.f32 %v1140, %v1149
    %v1152 = vadd.f32 %v875, %v1151
    %1153 = vmatprep.subr.mxu0 0.0
    %1154 = vmatpush1.msra.mxu0 0.0
    %1155 = vmatprep.subr.mxu0 0.0
    %1156 = vmatpush1.msra.mxu0 0.0
    %1157 = vmatprep.subr.mxu0 0.0
    %1158 = vmatpush1.msra.mxu0 0.0
    %1159 = vmatprep.subr.mxu0 0.0
    %1160 = vmatpush1.msra.mxu0 0.0
    %1161 = vmatprep.subr.mxu0 0.0
    %1162 = vmatpush1.msra.mxu0 0.0
    %1163 = vmatprep.subr.mxu0 0.0
    %1164 = vmatpush1.msra.mxu0 0.0
    %1165 = vmatprep.subr.mxu0 0.0
    %1166 = vmatpush1.msra.mxu0 0.0
    %1167 = vmatprep.subr.mxu0 0.0
    %1168 = vmatpush1.msra.mxu0 0.0
    %1169 = vmatprep.subr.mxu0 0.0
    %1170 = vmatpush1.msra.mxu0 0.0
    %1171 = vmatprep.subr.mxu0 0.0
    %1172 = vmatpush1.msra.mxu0 0.0
    %1173 = vmatprep.subr.mxu0 0.0
    %1174 = vmatpush1.msra.mxu0 0.0
    %1175 = vmatprep.subr.mxu0 0.0
    %1176 = vmatpush1.msra.mxu0 0.0
    %1177 = vmatprep.subr.mxu0 0.0
    %1178 = vmatpush1.msra.mxu0 %v212
    %1179 = vmatprep.subr.mxu0 0.0
    %1180 = vmatpush1.msra.mxu0 %v211
    %1181 = vmatprep.subr.mxu0 0.0
    %1182 = vmatpush1.msra.mxu0 %v210
    %1183 = vmatprep.subr.mxu0 0.0
    %1184 = vmatpush1.msra.mxu0 %v209
    %1185 = vmatprep.subr.mxu0 0.0
    %1186 = vmatpush2.msra.mxu0 0.0
    %1187 = vmatprep.subr.mxu0 0.0
    %1188 = vmatpush2.msra.mxu0 0.0
    %1189 = vmatprep.subr.mxu0 0.0
    %1190 = vmatpush2.msra.mxu0 0.0
    %1191 = vmatprep.subr.mxu0 0.0
    %1192 = vmatpush2.msra.mxu0 0.0
    %1193 = vmatprep.subr.mxu0 0.0
    %1194 = vmatpush2.msra.mxu0 0.0
    %1195 = vmatprep.subr.mxu0 0.0
    %1196 = vmatpush2.msra.mxu0 0.0
    %1197 = vmatprep.subr.mxu0 0.0
    %1198 = vmatpush2.msra.mxu0 0.0
    %1199 = vmatprep.subr.mxu0 0.0
    %1200 = vmatpush2.msra.mxu0 0.0
    %1201 = vmatprep.subr.mxu0 0.0
    %1202 = vmatpush2.msra.mxu0 0.0
    %1203 = vmatprep.subr.mxu0 0.0
    %1204 = vmatpush2.msra.mxu0 0.0
    %1205 = vmatprep.subr.mxu0 0.0
    %1206 = vmatpush2.msra.mxu0 0.0
    %1207 = vmatprep.subr.mxu0 0.0
    %1208 = vmatpush2.msra.mxu0 0.0
    %1209 = vmatprep.subr.mxu0 0.0
    %1210 = vmatpush2.msra.mxu0 0.0
    %1211 = vmatprep.subr.mxu0 0.0
    %1212 = vmatpush2.msra.mxu0 0.0
    %1213 = vmatprep.subr.mxu0 0.0
    %1214 = vmatpush2.msra.mxu0 0.0
    %1215 = vmatprep.subr.mxu0 0.0
    %1216 = vmatpush2.msra.mxu0 0.0
    %1217 = vmatprep.mubr.f32.mxu0 0.0
    %1218 = vmatmul.mubr.f32.gmra.mxu0 %v977
    %v1219 = vpop.f32.mrf.mxu0
    %v1220 = vadd.f32 0.0, %v1219
    %v1221 = vpop.f32.mrf.mxu0
    %1222 = vdwg.mxu0
    %v1223 = vadd.f32 %v319, %v1220
    %v1224 = vxor.u32 %v1223, 2147483648
    %v1225 = vmul.f32 %v1224, 1.442695
    %v1226 = vpow.pop %v1225
    %v1227 = vadd.f32 %v1226, 1.0
    %v1228 = vrcp.pop %v1227
    %v1229 = vmul.f32 1.0, %v1228
    %v1230 = vadd.f32 %v1220, %v238
    %1232 = vrot.lane.b32.xlu0 %v1230, 32
    %v1233 = vpop.permute.xlu0 %1232
    %v1235 = vmul.f32 %v1229, %v1233
    %1237 = vrot.lane.b32.xlu0 %v1235, 96
    %v1238 = vpop.permute.xlu0 %1237
    %v1240 = vadd.f32 %v319, %v1238
    %v1241 = vtanh.pop %v1240
    %v1242 = vsub.f32 %v975, %v1241
    %1244 = vrot.lane.b32.xlu0 %v1242, 64
    %v1245 = vpop.permute.xlu0 %1244
    %v1247 = vmul.f32 %v1229, %v1245
    %1249 = vrot.lane.b32.xlu0 %v1247, 64
    %v1250 = vpop.permute.xlu0 %1249
    %v1252 = vadd.f32 %v1241, %v1250
    %v1254 = vsel %vm248, %v1252, 0
    %1256 = vmatprep.subr.mxu0 0.0
    %1257 = vmatpush1.msra.mxu0 0.0
    %1258 = vmatprep.subr.mxu0 0.0
    %1259 = vmatpush1.msra.mxu0 0.0
    %1260 = vmatprep.subr.mxu0 0.0
    %1261 = vmatpush1.msra.mxu0 0.0
    %1262 = vmatprep.subr.mxu0 0.0
    %1263 = vmatpush1.msra.mxu0 0.0
    %1264 = vmatprep.subr.mxu0 0.0
    %1265 = vmatpush1.msra.mxu0 0.0
    %1266 = vmatprep.subr.mxu0 0.0
    %1267 = vmatpush1.msra.mxu0 0.0
    %1268 = vmatprep.subr.mxu0 0.0
    %1269 = vmatpush1.msra.mxu0 0.0
    %1270 = vmatprep.subr.mxu0 0.0
    %1271 = vmatpush1.msra.mxu0 0.0
    %1272 = vmatprep.subr.mxu0 0.0
    %1273 = vmatpush1.msra.mxu0 0.0
    %1274 = vmatprep.subr.mxu0 0.0
    %1275 = vmatpush1.msra.mxu0 0.0
    %1276 = vmatprep.subr.mxu0 0.0
    %1277 = vmatpush1.msra.mxu0 0.0
    %1278 = vmatprep.subr.mxu0 0.0
    %1279 = vmatpush1.msra.mxu0 0.0
    %1280 = vmatprep.subr.mxu0 0.0
    %1281 = vmatpush1.msra.mxu0 %v208
    %1282 = vmatprep.subr.mxu0 0.0
    %1283 = vmatpush1.msra.mxu0 %v207
    %1284 = vmatprep.subr.mxu0 0.0
    %1285 = vmatpush1.msra.mxu0 %v206
    %1286 = vmatprep.subr.mxu0 0.0
    %1287 = vmatpush1.msra.mxu0 %v205
    %1288 = vmatprep.subr.mxu0 0.0
    %1289 = vmatpush2.msra.mxu0 0.0
    %1290 = vmatprep.subr.mxu0 0.0
    %1291 = vmatpush2.msra.mxu0 0.0
    %1292 = vmatprep.subr.mxu0 0.0
    %1293 = vmatpush2.msra.mxu0 0.0
    %1294 = vmatprep.subr.mxu0 0.0
    %1295 = vmatpush2.msra.mxu0 0.0
    %1296 = vmatprep.subr.mxu0 0.0
    %1297 = vmatpush2.msra.mxu0 0.0
    %1298 = vmatprep.subr.mxu0 0.0
    %1299 = vmatpush2.msra.mxu0 0.0
    %1300 = vmatprep.subr.mxu0 0.0
    %1301 = vmatpush2.msra.mxu0 0.0
    %1302 = vmatprep.subr.mxu0 0.0
    %1303 = vmatpush2.msra.mxu0 0.0
    %1304 = vmatprep.subr.mxu0 0.0
    %1305 = vmatpush2.msra.mxu0 0.0
    %1306 = vmatprep.subr.mxu0 0.0
    %1307 = vmatpush2.msra.mxu0 0.0
    %1308 = vmatprep.subr.mxu0 0.0
    %1309 = vmatpush2.msra.mxu0 0.0
    %1310 = vmatprep.subr.mxu0 0.0
    %1311 = vmatpush2.msra.mxu0 0.0
    %1312 = vmatprep.subr.mxu0 0.0
    %1313 = vmatpush2.msra.mxu0 0.0
    %1314 = vmatprep.subr.mxu0 0.0
    %1315 = vmatpush2.msra.mxu0 0.0
    %1316 = vmatprep.subr.mxu0 0.0
    %1317 = vmatpush2.msra.mxu0 0.0
    %1318 = vmatprep.subr.mxu0 0.0
    %1319 = vmatpush2.msra.mxu0 0.0
    %1320 = vmatprep.mubr.f32.mxu0 0.0
    %1321 = vmatmul.mubr.f32.gmra.mxu0 %v1254
    %v1322 = vpop.f32.mrf.mxu0
    %v1323 = vadd.f32 %v231, %v1322
    %v1324 = vpop.f32.mrf.mxu0
    %1325 = vdwg.mxu0
    %v1327 = vsel %vm248, %v1151, 0
    %1329 = vmatprep.subr.mxu0 0.0
    %1330 = vmatpush1.msra.mxu0 0.0
    %1331 = vmatprep.subr.mxu0 0.0
    %1332 = vmatpush1.msra.mxu0 0.0
    %1333 = vmatprep.subr.mxu0 0.0
    %1334 = vmatpush1.msra.mxu0 0.0
    %1335 = vmatprep.subr.mxu0 0.0
    %1336 = vmatpush1.msra.mxu0 0.0
    %1337 = vmatprep.subr.mxu0 0.0
    %1338 = vmatpush1.msra.mxu0 0.0
    %1339 = vmatprep.subr.mxu0 0.0
    %1340 = vmatpush1.msra.mxu0 0.0
    %1341 = vmatprep.subr.mxu0 0.0
    %1342 = vmatpush1.msra.mxu0 0.0
    %1343 = vmatprep.subr.mxu0 0.0
    %1344 = vmatpush1.msra.mxu0 0.0
    %1345 = vmatprep.subr.mxu0 0.0
    %1346 = vmatpush1.msra.mxu0 0.0
    %1347 = vmatprep.subr.mxu0 0.0
    %1348 = vmatpush1.msra.mxu0 0.0
    %1349 = vmatprep.subr.mxu0 0.0
    %1350 = vmatpush1.msra.mxu0 0.0
    %1351 = vmatprep.subr.mxu0 0.0
    %1352 = vmatpush1.msra.mxu0 0.0
    %1353 = vmatprep.subr.mxu0 0.0
    %1354 = vmatpush1.msra.mxu0 %v217
    %1355 = vmatprep.subr.mxu0 0.0
    %1356 = vmatpush1.msra.mxu0 %v216
    %1357 = vmatprep.subr.mxu0 0.0
    %1358 = vmatpush1.msra.mxu0 %v215
    %1359 = vmatprep.subr.mxu0 0.0
    %1360 = vmatpush1.msra.mxu0 %v214
    %1361 = vmatprep.subr.mxu0 0.0
    %1362 = vmatpush2.msra.mxu0 0.0
    %1363 = vmatprep.subr.mxu0 0.0
    %1364 = vmatpush2.msra.mxu0 0.0
    %1365 = vmatprep.subr.mxu0 0.0
    %1366 = vmatpush2.msra.mxu0 0.0
    %1367 = vmatprep.subr.mxu0 0.0
    %1368 = vmatpush2.msra.mxu0 0.0
    %1369 = vmatprep.subr.mxu0 0.0
    %1370 = vmatpush2.msra.mxu0 0.0
    %1371 = vmatprep.subr.mxu0 0.0
    %1372 = vmatpush2.msra.mxu0 0.0
    %1373 = vmatprep.subr.mxu0 0.0
    %1374 = vmatpush2.msra.mxu0 0.0
    %1375 = vmatprep.subr.mxu0 0.0
    %1376 = vmatpush2.msra.mxu0 0.0
    %1377 = vmatprep.subr.mxu0 0.0
    %1378 = vmatpush2.msra.mxu0 0.0
    %1379 = vmatprep.subr.mxu0 0.0
    %1380 = vmatpush2.msra.mxu0 0.0
    %1381 = vmatprep.subr.mxu0 0.0
    %1382 = vmatpush2.msra.mxu0 0.0
    %1383 = vmatprep.subr.mxu0 0.0
    %1384 = vmatpush2.msra.mxu0 0.0
    %1385 = vmatprep.subr.mxu0 0.0
    %1386 = vmatpush2.msra.mxu0 0.0
    %1387 = vmatprep.subr.mxu0 0.0
    %1388 = vmatpush2.msra.mxu0 0.0
    %1389 = vmatprep.subr.mxu0 0.0
    %1390 = vmatpush2.msra.mxu0 0.0
    %1391 = vmatprep.subr.mxu0 0.0
    %1392 = vmatpush2.msra.mxu0 0.0
    %1393 = vmatprep.mubr.f32.mxu0 0.0
    %1394 = vmatmul.mubr.f32.gmra.mxu0 %v1327
    %v1395 = vpop.f32.mrf.mxu0
    %v1396 = vadd.f32 0.0, %v1395
    %v1397 = vpop.f32.mrf.mxu0
    %1398 = vdwg.mxu0
    %v1399 = vadd.f32 %v1323, %v1396
    %v1400 = vxor.u32 %v1399, 2147483648
    %v1401 = vmul.f32 %v1400, 1.442695
    %v1402 = vpow.pop %v1401
    %v1403 = vadd.f32 %v1402, 1.0
    %v1404 = vrcp.pop %v1403
    %v1405 = vmul.f32 1.0, %v1404
    %v1406 = vadd.f32 %v1396, %v246
    %1408 = vrot.lane.b32.xlu0 %v1406, 32
    %v1409 = vpop.permute.xlu0 %1408
    %v1411 = vmul.f32 %v1405, %v1409
    %1413 = vrot.lane.b32.xlu0 %v1411, 96
    %v1414 = vpop.permute.xlu0 %1413
    %v1416 = vadd.f32 %v1323, %v1414
    %v1417 = vtanh.pop %v1416
    %v1418 = vsub.f32 %v1151, %v1417
    %1420 = vrot.lane.b32.xlu0 %v1418, 64
    %v1421 = vpop.permute.xlu0 %1420
    %v1423 = vmul.f32 %v1405, %v1421
    %1425 = vrot.lane.b32.xlu0 %v1423, 64
    %v1426 = vpop.permute.xlu0 %1425
    %v1428 = vadd.f32 %v1417, %v1426
    %v1429 = vadd.f32 %v1152, %v1428
    %1430 = vmatprep.subr.mxu0 0.0
    %1431 = vmatpush1.msra.mxu0 0.0
    %1432 = vmatprep.subr.mxu0 0.0
    %1433 = vmatpush1.msra.mxu0 0.0
    %1434 = vmatprep.subr.mxu0 0.0
    %1435 = vmatpush1.msra.mxu0 0.0
    %1436 = vmatprep.subr.mxu0 0.0
    %1437 = vmatpush1.msra.mxu0 0.0
    %1438 = vmatprep.subr.mxu0 0.0
    %1439 = vmatpush1.msra.mxu0 0.0
    %1440 = vmatprep.subr.mxu0 0.0
    %1441 = vmatpush1.msra.mxu0 0.0
    %1442 = vmatprep.subr.mxu0 0.0
    %1443 = vmatpush1.msra.mxu0 0.0
    %1444 = vmatprep.subr.mxu0 0.0
    %1445 = vmatpush1.msra.mxu0 0.0
    %1446 = vmatprep.subr.mxu0 0.0
    %1447 = vmatpush1.msra.mxu0 0.0
    %1448 = vmatprep.subr.mxu0 0.0
    %1449 = vmatpush1.msra.mxu0 0.0
    %1450 = vmatprep.subr.mxu0 0.0
    %1451 = vmatpush1.msra.mxu0 0.0
    %1452 = vmatprep.subr.mxu0 0.0
    %1453 = vmatpush1.msra.mxu0 0.0
    %1454 = vmatprep.subr.mxu0 0.0
    %1455 = vmatpush1.msra.mxu0 %v212
    %1456 = vmatprep.subr.mxu0 0.0
    %1457 = vmatpush1.msra.mxu0 %v211
    %1458 = vmatprep.subr.mxu0 0.0
    %1459 = vmatpush1.msra.mxu0 %v210
    %1460 = vmatprep.subr.mxu0 0.0
    %1461 = vmatpush1.msra.mxu0 %v209
    %1462 = vmatprep.subr.mxu0 0.0
    %1463 = vmatpush2.msra.mxu0 0.0
    %1464 = vmatprep.subr.mxu0 0.0
    %1465 = vmatpush2.msra.mxu0 0.0
    %1466 = vmatprep.subr.mxu0 0.0
    %1467 = vmatpush2.msra.mxu0 0.0
    %1468 = vmatprep.subr.mxu0 0.0
    %1469 = vmatpush2.msra.mxu0 0.0
    %1470 = vmatprep.subr.mxu0 0.0
    %1471 = vmatpush2.msra.mxu0 0.0
    %1472 = vmatprep.subr.mxu0 0.0
    %1473 = vmatpush2.msra.mxu0 0.0
    %1474 = vmatprep.subr.mxu0 0.0
    %1475 = vmatpush2.msra.mxu0 0.0
    %1476 = vmatprep.subr.mxu0 0.0
    %1477 = vmatpush2.msra.mxu0 0.0
    %1478 = vmatprep.subr.mxu0 0.0
    %1479 = vmatpush2.msra.mxu0 0.0
    %1480 = vmatprep.subr.mxu0 0.0
    %1481 = vmatpush2.msra.mxu0 0.0
    %1482 = vmatprep.subr.mxu0 0.0
    %1483 = vmatpush2.msra.mxu0 0.0
    %1484 = vmatprep.subr.mxu0 0.0
    %1485 = vmatpush2.msra.mxu0 0.0
    %1486 = vmatprep.subr.mxu0 0.0
    %1487 = vmatpush2.msra.mxu0 0.0
    %1488 = vmatprep.subr.mxu0 0.0
    %1489 = vmatpush2.msra.mxu0 0.0
    %1490 = vmatprep.subr.mxu0 0.0
    %1491 = vmatpush2.msra.mxu0 0.0
    %1492 = vmatprep.subr.mxu0 0.0
    %1493 = vmatpush2.msra.mxu0 0.0
    %1494 = vmatprep.mubr.f32.mxu0 0.0
    %1495 = vmatmul.mubr.f32.gmra.mxu0 %v1254
    %v1496 = vpop.f32.mrf.mxu0
    %v1497 = vadd.f32 0.0, %v1496
    %v1498 = vpop.f32.mrf.mxu0
    %1499 = vdwg.mxu0
    %v1500 = vadd.f32 %v319, %v1497
    %v1501 = vxor.u32 %v1500, 2147483648
    %v1502 = vmul.f32 %v1501, 1.442695
    %v1503 = vpow.pop %v1502
    %v1504 = vadd.f32 %v1503, 1.0
    %v1505 = vrcp.pop %v1504
    %v1506 = vmul.f32 1.0, %v1505
    %v1507 = vadd.f32 %v1497, %v238
    %1509 = vrot.lane.b32.xlu0 %v1507, 32
    %v1510 = vpop.permute.xlu0 %1509
    %v1512 = vmul.f32 %v1506, %v1510
    %1514 = vrot.lane.b32.xlu0 %v1512, 96
    %v1515 = vpop.permute.xlu0 %1514
    %v1517 = vadd.f32 %v319, %v1515
    %v1518 = vtanh.pop %v1517
    %v1519 = vsub.f32 %v1252, %v1518
    %1521 = vrot.lane.b32.xlu0 %v1519, 64
    %v1522 = vpop.permute.xlu0 %1521
    %v1524 = vmul.f32 %v1506, %v1522
    %1526 = vrot.lane.b32.xlu0 %v1524, 64
    %v1527 = vpop.permute.xlu0 %1526
    %v1529 = vadd.f32 %v1518, %v1527
    %v1531 = vsel %vm248, %v1529, 0
    %1533 = vmatprep.subr.mxu0 0.0
    %1534 = vmatpush1.msra.mxu0 0.0
    %1535 = vmatprep.subr.mxu0 0.0
    %1536 = vmatpush1.msra.mxu0 0.0
    %1537 = vmatprep.subr.mxu0 0.0
    %1538 = vmatpush1.msra.mxu0 0.0
    %1539 = vmatprep.subr.mxu0 0.0
    %1540 = vmatpush1.msra.mxu0 0.0
    %1541 = vmatprep.subr.mxu0 0.0
    %1542 = vmatpush1.msra.mxu0 0.0
    %1543 = vmatprep.subr.mxu0 0.0
    %1544 = vmatpush1.msra.mxu0 0.0
    %1545 = vmatprep.subr.mxu0 0.0
    %1546 = vmatpush1.msra.mxu0 0.0
    %1547 = vmatprep.subr.mxu0 0.0
    %1548 = vmatpush1.msra.mxu0 0.0
    %1549 = vmatprep.subr.mxu0 0.0
    %1550 = vmatpush1.msra.mxu0 0.0
    %1551 = vmatprep.subr.mxu0 0.0
    %1552 = vmatpush1.msra.mxu0 0.0
    %1553 = vmatprep.subr.mxu0 0.0
    %1554 = vmatpush1.msra.mxu0 0.0
    %1555 = vmatprep.subr.mxu0 0.0
    %1556 = vmatpush1.msra.mxu0 0.0
    %1557 = vmatprep.subr.mxu0 0.0
    %1558 = vmatpush1.msra.mxu0 %v208
    %1559 = vmatprep.subr.mxu0 0.0
    %1560 = vmatpush1.msra.mxu0 %v207
    %1561 = vmatprep.subr.mxu0 0.0
    %1562 = vmatpush1.msra.mxu0 %v206
    %1563 = vmatprep.subr.mxu0 0.0
    %1564 = vmatpush1.msra.mxu0 %v205
    %1565 = vmatprep.subr.mxu0 0.0
    %1566 = vmatpush2.msra.mxu0 0.0
    %1567 = vmatprep.subr.mxu0 0.0
    %1568 = vmatpush2.msra.mxu0 0.0
    %1569 = vmatprep.subr.mxu0 0.0
    %1570 = vmatpush2.msra.mxu0 0.0
    %1571 = vmatprep.subr.mxu0 0.0
    %1572 = vmatpush2.msra.mxu0 0.0
    %1573 = vmatprep.subr.mxu0 0.0
    %1574 = vmatpush2.msra.mxu0 0.0
    %1575 = vmatprep.subr.mxu0 0.0
    %1576 = vmatpush2.msra.mxu0 0.0
    %1577 = vmatprep.subr.mxu0 0.0
    %1578 = vmatpush2.msra.mxu0 0.0
    %1579 = vmatprep.subr.mxu0 0.0
    %1580 = vmatpush2.msra.mxu0 0.0
    %1581 = vmatprep.subr.mxu0 0.0
    %1582 = vmatpush2.msra.mxu0 0.0
    %1583 = vmatprep.subr.mxu0 0.0
    %1584 = vmatpush2.msra.mxu0 0.0
    %1585 = vmatprep.subr.mxu0 0.0
    %1586 = vmatpush2.msra.mxu0 0.0
    %1587 = vmatprep.subr.mxu0 0.0
    %1588 = vmatpush2.msra.mxu0 0.0
    %1589 = vmatprep.subr.mxu0 0.0
    %1590 = vmatpush2.msra.mxu0 0.0
    %1591 = vmatprep.subr.mxu0 0.0
    %1592 = vmatpush2.msra.mxu0 0.0
    %1593 = vmatprep.subr.mxu0 0.0
    %1594 = vmatpush2.msra.mxu0 0.0
    %1595 = vmatprep.subr.mxu0 0.0
    %1596 = vmatpush2.msra.mxu0 0.0
    %1597 = vmatprep.mubr.f32.mxu0 0.0
    %1598 = vmatmul.mubr.f32.gmra.mxu0 %v1531
    %v1599 = vpop.f32.mrf.mxu0
    %v1600 = vadd.f32 %v231, %v1599
    %v1601 = vpop.f32.mrf.mxu0
    %1602 = vdwg.mxu0
    %v1604 = vsel %vm248, %v1428, 0
    %1606 = vmatprep.subr.mxu0 0.0
    %1607 = vmatpush1.msra.mxu0 0.0
    %1608 = vmatprep.subr.mxu0 0.0
    %1609 = vmatpush1.msra.mxu0 0.0
    %1610 = vmatprep.subr.mxu0 0.0
    %1611 = vmatpush1.msra.mxu0 0.0
    %1612 = vmatprep.subr.mxu0 0.0
    %1613 = vmatpush1.msra.mxu0 0.0
    %1614 = vmatprep.subr.mxu0 0.0
    %1615 = vmatpush1.msra.mxu0 0.0
    %1616 = vmatprep.subr.mxu0 0.0
    %1617 = vmatpush1.msra.mxu0 0.0
    %1618 = vmatprep.subr.mxu0 0.0
    %1619 = vmatpush1.msra.mxu0 0.0
    %1620 = vmatprep.subr.mxu0 0.0
    %1621 = vmatpush1.msra.mxu0 0.0
    %1622 = vmatprep.subr.mxu0 0.0
    %1623 = vmatpush1.msra.mxu0 0.0
    %1624 = vmatprep.subr.mxu0 0.0
    %1625 = vmatpush1.msra.mxu0 0.0
    %1626 = vmatprep.subr.mxu0 0.0
    %1627 = vmatpush1.msra.mxu0 0.0
    %1628 = vmatprep.subr.mxu0 0.0
    %1629 = vmatpush1.msra.mxu0 0.0
    %1630 = vmatprep.subr.mxu0 0.0
    %1631 = vmatpush1.msra.mxu0 %v217
    %1632 = vmatprep.subr.mxu0 0.0
    %1633 = vmatpush1.msra.mxu0 %v216
    %1634 = vmatprep.subr.mxu0 0.0
    %1635 = vmatpush1.msra.mxu0 %v215
    %1636 = vmatprep.subr.mxu0 0.0
    %1637 = vmatpush1.msra.mxu0 %v214
    %1638 = vmatprep.subr.mxu0 0.0
    %1639 = vmatpush2.msra.mxu0 0.0
    %1640 = vmatprep.subr.mxu0 0.0
    %1641 = vmatpush2.msra.mxu0 0.0
    %1642 = vmatprep.subr.mxu0 0.0
    %1643 = vmatpush2.msra.mxu0 0.0
    %1644 = vmatprep.subr.mxu0 0.0
    %1645 = vmatpush2.msra.mxu0 0.0
    %1646 = vmatprep.subr.mxu0 0.0
    %1647 = vmatpush2.msra.mxu0 0.0
    %1648 = vmatprep.subr.mxu0 0.0
    %1649 = vmatpush2.msra.mxu0 0.0
    %1650 = vmatprep.subr.mxu0 0.0
    %1651 = vmatpush2.msra.mxu0 0.0
    %1652 = vmatprep.subr.mxu0 0.0
    %1653 = vmatpush2.msra.mxu0 0.0
    %1654 = vmatprep.subr.mxu0 0.0
    %1655 = vmatpush2.msra.mxu0 0.0
    %1656 = vmatprep.subr.mxu0 0.0
    %1657 = vmatpush2.msra.mxu0 0.0
    %1658 = vmatprep.subr.mxu0 0.0
    %1659 = vmatpush2.msra.mxu0 0.0
    %1660 = vmatprep.subr.mxu0 0.0
    %1661 = vmatpush2.msra.mxu0 0.0
    %1662 = vmatprep.subr.mxu0 0.0
    %1663 = vmatpush2.msra.mxu0 0.0
    %1664 = vmatprep.subr.mxu0 0.0
    %1665 = vmatpush2.msra.mxu0 0.0
    %1666 = vmatprep.subr.mxu0 0.0
    %1667 = vmatpush2.msra.mxu0 0.0
    %1668 = vmatprep.subr.mxu0 0.0
    %1669 = vmatpush2.msra.mxu0 0.0
    %1670 = vmatprep.mubr.f32.mxu0 0.0
    %1671 = vmatmul.mubr.f32.gmra.mxu0 %v1604
    %v1672 = vpop.f32.mrf.mxu0
    %v1673 = vadd.f32 0.0, %v1672
    %v1674 = vpop.f32.mrf.mxu0
    %1675 = vdwg.mxu0
    %v1676 = vadd.f32 %v1600, %v1673
    %v1677 = vxor.u32 %v1676, 2147483648
    %v1678 = vmul.f32 %v1677, 1.442695
    %v1679 = vpow.pop %v1678
    %v1680 = vadd.f32 %v1679, 1.0
    %v1681 = vrcp.pop %v1680
    %v1682 = vmul.f32 1.0, %v1681
    %v1683 = vadd.f32 %v1673, %v246
    %1685 = vrot.lane.b32.xlu0 %v1683, 32
    %v1686 = vpop.permute.xlu0 %1685
    %v1688 = vmul.f32 %v1682, %v1686
    %1690 = vrot.lane.b32.xlu0 %v1688, 96
    %v1691 = vpop.permute.xlu0 %1690
    %v1693 = vadd.f32 %v1600, %v1691
    %v1694 = vtanh.pop %v1693
    %v1695 = vsub.f32 %v1428, %v1694
    %1697 = vrot.lane.b32.xlu0 %v1695, 64
    %v1698 = vpop.permute.xlu0 %1697
    %v1700 = vmul.f32 %v1682, %v1698
    %1702 = vrot.lane.b32.xlu0 %v1700, 64
    %v1703 = vpop.permute.xlu0 %1702
    %v1705 = vadd.f32 %v1694, %v1703
    %v1706 = vadd.f32 %v1429, %v1705
    %1707 = vmatprep.subr.mxu0 0.0
    %1708 = vmatpush1.msra.mxu0 0.0
    %1709 = vmatprep.subr.mxu0 0.0
    %1710 = vmatpush1.msra.mxu0 0.0
    %1711 = vmatprep.subr.mxu0 0.0
    %1712 = vmatpush1.msra.mxu0 0.0
    %1713 = vmatprep.subr.mxu0 0.0
    %1714 = vmatpush1.msra.mxu0 0.0
    %1715 = vmatprep.subr.mxu0 0.0
    %1716 = vmatpush1.msra.mxu0 0.0
    %1717 = vmatprep.subr.mxu0 0.0
    %1718 = vmatpush1.msra.mxu0 0.0
    %1719 = vmatprep.subr.mxu0 0.0
    %1720 = vmatpush1.msra.mxu0 0.0
    %1721 = vmatprep.subr.mxu0 0.0
    %1722 = vmatpush1.msra.mxu0 0.0
    %1723 = vmatprep.subr.mxu0 0.0
    %1724 = vmatpush1.msra.mxu0 0.0
    %1725 = vmatprep.subr.mxu0 0.0
    %1726 = vmatpush1.msra.mxu0 0.0
    %1727 = vmatprep.subr.mxu0 0.0
    %1728 = vmatpush1.msra.mxu0 0.0
    %1729 = vmatprep.subr.mxu0 0.0
    %1730 = vmatpush1.msra.mxu0 0.0
    %1731 = vmatprep.subr.mxu0 0.0
    %1732 = vmatpush1.msra.mxu0 %v212
    %1733 = vmatprep.subr.mxu0 0.0
    %1734 = vmatpush1.msra.mxu0 %v211
    %1735 = vmatprep.subr.mxu0 0.0
    %1736 = vmatpush1.msra.mxu0 %v210
    %1737 = vmatprep.subr.mxu0 0.0
    %1738 = vmatpush1.msra.mxu0 %v209
    %1739 = vmatprep.subr.mxu0 0.0
    %1740 = vmatpush2.msra.mxu0 0.0
    %1741 = vmatprep.subr.mxu0 0.0
    %1742 = vmatpush2.msra.mxu0 0.0
    %1743 = vmatprep.subr.mxu0 0.0
    %1744 = vmatpush2.msra.mxu0 0.0
    %1745 = vmatprep.subr.mxu0 0.0
    %1746 = vmatpush2.msra.mxu0 0.0
    %1747 = vmatprep.subr.mxu0 0.0
    %1748 = vmatpush2.msra.mxu0 0.0
    %1749 = vmatprep.subr.mxu0 0.0
    %1750 = vmatpush2.msra.mxu0 0.0
    %1751 = vmatprep.subr.mxu0 0.0
    %1752 = vmatpush2.msra.mxu0 0.0
    %1753 = vmatprep.subr.mxu0 0.0
    %1754 = vmatpush2.msra.mxu0 0.0
    %1755 = vmatprep.subr.mxu0 0.0
    %1756 = vmatpush2.msra.mxu0 0.0
    %1757 = vmatprep.subr.mxu0 0.0
    %1758 = vmatpush2.msra.mxu0 0.0
    %1759 = vmatprep.subr.mxu0 0.0
    %1760 = vmatpush2.msra.mxu0 0.0
    %1761 = vmatprep.subr.mxu0 0.0
    %1762 = vmatpush2.msra.mxu0 0.0
    %1763 = vmatprep.subr.mxu0 0.0
    %1764 = vmatpush2.msra.mxu0 0.0
    %1765 = vmatprep.subr.mxu0 0.0
    %1766 = vmatpush2.msra.mxu0 0.0
    %1767 = vmatprep.subr.mxu0 0.0
    %1768 = vmatpush2.msra.mxu0 0.0
    %1769 = vmatprep.subr.mxu0 0.0
    %1770 = vmatpush2.msra.mxu0 0.0
    %1771 = vmatprep.mubr.f32.mxu0 0.0
    %1772 = vmatmul.mubr.f32.gmra.mxu0 %v1531
    %v1773 = vpop.f32.mrf.mxu0
    %v1774 = vadd.f32 0.0, %v1773
    %v1775 = vpop.f32.mrf.mxu0
    %1776 = vdwg.mxu0
    %v1777 = vadd.f32 %v319, %v1774
    %v1778 = vxor.u32 %v1777, 2147483648
    %v1779 = vmul.f32 %v1778, 1.442695
    %v1780 = vpow.pop %v1779
    %v1781 = vadd.f32 %v1780, 1.0
    %v1782 = vrcp.pop %v1781
    %v1783 = vmul.f32 1.0, %v1782
    %v1784 = vadd.f32 %v1774, %v238
    %1786 = vrot.lane.b32.xlu0 %v1784, 32
    %v1787 = vpop.permute.xlu0 %1786
    %v1789 = vmul.f32 %v1783, %v1787
    %1791 = vrot.lane.b32.xlu0 %v1789, 96
    %v1792 = vpop.permute.xlu0 %1791
    %v1794 = vadd.f32 %v319, %v1792
    %v1795 = vtanh.pop %v1794
    %v1796 = vsub.f32 %v1529, %v1795
    %1798 = vrot.lane.b32.xlu0 %v1796, 64
    %v1799 = vpop.permute.xlu0 %1798
    %v1801 = vmul.f32 %v1783, %v1799
    %1803 = vrot.lane.b32.xlu0 %v1801, 64
    %v1804 = vpop.permute.xlu0 %1803
    %v1806 = vadd.f32 %v1795, %v1804
    %v1808 = vsel %vm248, %v1806, 0
    %1810 = vmatprep.subr.mxu0 0.0
    %1811 = vmatpush1.msra.mxu0 0.0
    %1812 = vmatprep.subr.mxu0 0.0
    %1813 = vmatpush1.msra.mxu0 0.0
    %1814 = vmatprep.subr.mxu0 0.0
    %1815 = vmatpush1.msra.mxu0 0.0
    %1816 = vmatprep.subr.mxu0 0.0
    %1817 = vmatpush1.msra.mxu0 0.0
    %1818 = vmatprep.subr.mxu0 0.0
    %1819 = vmatpush1.msra.mxu0 0.0
    %1820 = vmatprep.subr.mxu0 0.0
    %1821 = vmatpush1.msra.mxu0 0.0
    %1822 = vmatprep.subr.mxu0 0.0
    %1823 = vmatpush1.msra.mxu0 0.0
    %1824 = vmatprep.subr.mxu0 0.0
    %1825 = vmatpush1.msra.mxu0 0.0
    %1826 = vmatprep.subr.mxu0 0.0
    %1827 = vmatpush1.msra.mxu0 0.0
    %1828 = vmatprep.subr.mxu0 0.0
    %1829 = vmatpush1.msra.mxu0 0.0
    %1830 = vmatprep.subr.mxu0 0.0
    %1831 = vmatpush1.msra.mxu0 0.0
    %1832 = vmatprep.subr.mxu0 0.0
    %1833 = vmatpush1.msra.mxu0 0.0
    %1834 = vmatprep.subr.mxu0 0.0
    %1835 = vmatpush1.msra.mxu0 %v208
    %1836 = vmatprep.subr.mxu0 0.0
    %1837 = vmatpush1.msra.mxu0 %v207
    %1838 = vmatprep.subr.mxu0 0.0
    %1839 = vmatpush1.msra.mxu0 %v206
    %1840 = vmatprep.subr.mxu0 0.0
    %1841 = vmatpush1.msra.mxu0 %v205
    %1842 = vmatprep.subr.mxu0 0.0
    %1843 = vmatpush2.msra.mxu0 0.0
    %1844 = vmatprep.subr.mxu0 0.0
    %1845 = vmatpush2.msra.mxu0 0.0
    %1846 = vmatprep.subr.mxu0 0.0
    %1847 = vmatpush2.msra.mxu0 0.0
    %1848 = vmatprep.subr.mxu0 0.0
    %1849 = vmatpush2.msra.mxu0 0.0
    %1850 = vmatprep.subr.mxu0 0.0
    %1851 = vmatpush2.msra.mxu0 0.0
    %1852 = vmatprep.subr.mxu0 0.0
    %1853 = vmatpush2.msra.mxu0 0.0
    %1854 = vmatprep.subr.mxu0 0.0
    %1855 = vmatpush2.msra.mxu0 0.0
    %1856 = vmatprep.subr.mxu0 0.0
    %1857 = vmatpush2.msra.mxu0 0.0
    %1858 = vmatprep.subr.mxu0 0.0
    %1859 = vmatpush2.msra.mxu0 0.0
    %1860 = vmatprep.subr.mxu0 0.0
    %1861 = vmatpush2.msra.mxu0 0.0
    %1862 = vmatprep.subr.mxu0 0.0
    %1863 = vmatpush2.msra.mxu0 0.0
    %1864 = vmatprep.subr.mxu0 0.0
    %1865 = vmatpush2.msra.mxu0 0.0
    %1866 = vmatprep.subr.mxu0 0.0
    %1867 = vmatpush2.msra.mxu0 0.0
    %1868 = vmatprep.subr.mxu0 0.0
    %1869 = vmatpush2.msra.mxu0 0.0
    %1870 = vmatprep.subr.mxu0 0.0
    %1871 = vmatpush2.msra.mxu0 0.0
    %1872 = vmatprep.subr.mxu0 0.0
    %1873 = vmatpush2.msra.mxu0 0.0
    %1874 = vmatprep.mubr.f32.mxu0 0.0
    %1875 = vmatmul.mubr.f32.gmra.mxu0 %v1808
    %v1876 = vpop.f32.mrf.mxu0
    %v1877 = vadd.f32 %v231, %v1876
    %v1878 = vpop.f32.mrf.mxu0
    %1879 = vdwg.mxu0
    %v1881 = vsel %vm248, %v1705, 0
    %1883 = vmatprep.subr.mxu0 0.0
    %1884 = vmatpush1.msra.mxu0 0.0
    %1885 = vmatprep.subr.mxu0 0.0
    %1886 = vmatpush1.msra.mxu0 0.0
    %1887 = vmatprep.subr.mxu0 0.0
    %1888 = vmatpush1.msra.mxu0 0.0
    %1889 = vmatprep.subr.mxu0 0.0
    %1890 = vmatpush1.msra.mxu0 0.0
    %1891 = vmatprep.subr.mxu0 0.0
    %1892 = vmatpush1.msra.mxu0 0.0
    %1893 = vmatprep.subr.mxu0 0.0
    %1894 = vmatpush1.msra.mxu0 0.0
    %1895 = vmatprep.subr.mxu0 0.0
    %1896 = vmatpush1.msra.mxu0 0.0
    %1897 = vmatprep.subr.mxu0 0.0
    %1898 = vmatpush1.msra.mxu0 0.0
    %1899 = vmatprep.subr.mxu0 0.0
    %1900 = vmatpush1.msra.mxu0 0.0
    %1901 = vmatprep.subr.mxu0 0.0
    %1902 = vmatpush1.msra.mxu0 0.0
    %1903 = vmatprep.subr.mxu0 0.0
    %1904 = vmatpush1.msra.mxu0 0.0
    %1905 = vmatprep.subr.mxu0 0.0
    %1906 = vmatpush1.msra.mxu0 0.0
    %1907 = vmatprep.subr.mxu0 0.0
    %1908 = vmatpush1.msra.mxu0 %v217
    %1909 = vmatprep.subr.mxu0 0.0
    %1910 = vmatpush1.msra.mxu0 %v216
    %1911 = vmatprep.subr.mxu0 0.0
    %1912 = vmatpush1.msra.mxu0 %v215
    %1913 = vmatprep.subr.mxu0 0.0
    %1914 = vmatpush1.msra.mxu0 %v214
    %1915 = vmatprep.subr.mxu0 0.0
    %1916 = vmatpush2.msra.mxu0 0.0
    %1917 = vmatprep.subr.mxu0 0.0
    %1918 = vmatpush2.msra.mxu0 0.0
    %1919 = vmatprep.subr.mxu0 0.0
    %1920 = vmatpush2.msra.mxu0 0.0
    %1921 = vmatprep.subr.mxu0 0.0
    %1922 = vmatpush2.msra.mxu0 0.0
    %1923 = vmatprep.subr.mxu0 0.0
    %1924 = vmatpush2.msra.mxu0 0.0
    %1925 = vmatprep.subr.mxu0 0.0
    %1926 = vmatpush2.msra.mxu0 0.0
    %1927 = vmatprep.subr.mxu0 0.0
    %1928 = vmatpush2.msra.mxu0 0.0
    %1929 = vmatprep.subr.mxu0 0.0
    %1930 = vmatpush2.msra.mxu0 0.0
    %1931 = vmatprep.subr.mxu0 0.0
    %1932 = vmatpush2.msra.mxu0 0.0
    %1933 = vmatprep.subr.mxu0 0.0
    %1934 = vmatpush2.msra.mxu0 0.0
    %1935 = vmatprep.subr.mxu0 0.0
    %1936 = vmatpush2.msra.mxu0 0.0
    %1937 = vmatprep.subr.mxu0 0.0
    %1938 = vmatpush2.msra.mxu0 0.0
    %1939 = vmatprep.subr.mxu0 0.0
    %1940 = vmatpush2.msra.mxu0 0.0
    %1941 = vmatprep.subr.mxu0 0.0
    %1942 = vmatpush2.msra.mxu0 0.0
    %1943 = vmatprep.subr.mxu0 0.0
    %1944 = vmatpush2.msra.mxu0 0.0
    %1945 = vmatprep.subr.mxu0 0.0
    %1946 = vmatpush2.msra.mxu0 0.0
    %1947 = vmatprep.mubr.f32.mxu0 0.0
    %1948 = vmatmul.mubr.f32.gmra.mxu0 %v1881
    %v1949 = vpop.f32.mrf.mxu0
    %v1950 = vadd.f32 0.0, %v1949
    %v1951 = vpop.f32.mrf.mxu0
    %1952 = vdwg.mxu0
    %v1953 = vadd.f32 %v1877, %v1950
    %v1954 = vxor.u32 %v1953, 2147483648
    %v1955 = vmul.f32 %v1954, 1.442695
    %v1956 = vpow.pop %v1955
    %v1957 = vadd.f32 %v1956, 1.0
    %v1958 = vrcp.pop %v1957
    %v1959 = vmul.f32 1.0, %v1958
    %v1960 = vadd.f32 %v1950, %v246
    %1962 = vrot.lane.b32.xlu0 %v1960, 32
    %v1963 = vpop.permute.xlu0 %1962
    %v1965 = vmul.f32 %v1959, %v1963
    %1967 = vrot.lane.b32.xlu0 %v1965, 96
    %v1968 = vpop.permute.xlu0 %1967
    %v1970 = vadd.f32 %v1877, %v1968
    %v1971 = vtanh.pop %v1970
    %v1972 = vsub.f32 %v1705, %v1971
    %1974 = vrot.lane.b32.xlu0 %v1972, 64
    %v1975 = vpop.permute.xlu0 %1974
    %v1977 = vmul.f32 %v1959, %v1975
    %1979 = vrot.lane.b32.xlu0 %v1977, 64
    %v1980 = vpop.permute.xlu0 %1979
    %v1982 = vadd.f32 %v1971, %v1980
    %v1983 = vadd.f32 %v1706, %v1982
    %1984 = vmatprep.subr.mxu0 0.0
    %1985 = vmatpush1.msra.mxu0 0.0
    %1986 = vmatprep.subr.mxu0 0.0
    %1987 = vmatpush1.msra.mxu0 0.0
    %1988 = vmatprep.subr.mxu0 0.0
    %1989 = vmatpush1.msra.mxu0 0.0
    %1990 = vmatprep.subr.mxu0 0.0
    %1991 = vmatpush1.msra.mxu0 0.0
    %1992 = vmatprep.subr.mxu0 0.0
    %1993 = vmatpush1.msra.mxu0 0.0
    %1994 = vmatprep.subr.mxu0 0.0
    %1995 = vmatpush1.msra.mxu0 0.0
    %1996 = vmatprep.subr.mxu0 0.0
    %1997 = vmatpush1.msra.mxu0 0.0
    %1998 = vmatprep.subr.mxu0 0.0
    %1999 = vmatpush1.msra.mxu0 0.0
    %2000 = vmatprep.subr.mxu0 0.0
    %2001 = vmatpush1.msra.mxu0 0.0
    %2002 = vmatprep.subr.mxu0 0.0
    %2003 = vmatpush1.msra.mxu0 0.0
    %2004 = vmatprep.subr.mxu0 0.0
    %2005 = vmatpush1.msra.mxu0 0.0
    %2006 = vmatprep.subr.mxu0 0.0
    %2007 = vmatpush1.msra.mxu0 0.0
    %2008 = vmatprep.subr.mxu0 0.0
    %2009 = vmatpush1.msra.mxu0 %v212
    %2010 = vmatprep.subr.mxu0 0.0
    %2011 = vmatpush1.msra.mxu0 %v211
    %2012 = vmatprep.subr.mxu0 0.0
    %2013 = vmatpush1.msra.mxu0 %v210
    %2014 = vmatprep.subr.mxu0 0.0
    %2015 = vmatpush1.msra.mxu0 %v209
    %2016 = vmatprep.subr.mxu0 0.0
    %2017 = vmatpush2.msra.mxu0 0.0
    %2018 = vmatprep.subr.mxu0 0.0
    %2019 = vmatpush2.msra.mxu0 0.0
    %2020 = vmatprep.subr.mxu0 0.0
    %2021 = vmatpush2.msra.mxu0 0.0
    %2022 = vmatprep.subr.mxu0 0.0
    %2023 = vmatpush2.msra.mxu0 0.0
    %2024 = vmatprep.subr.mxu0 0.0
    %2025 = vmatpush2.msra.mxu0 0.0
    %2026 = vmatprep.subr.mxu0 0.0
    %2027 = vmatpush2.msra.mxu0 0.0
    %2028 = vmatprep.subr.mxu0 0.0
    %2029 = vmatpush2.msra.mxu0 0.0
    %2030 = vmatprep.subr.mxu0 0.0
    %2031 = vmatpush2.msra.mxu0 0.0
    %2032 = vmatprep.subr.mxu0 0.0
    %2033 = vmatpush2.msra.mxu0 0.0
    %2034 = vmatprep.subr.mxu0 0.0
    %2035 = vmatpush2.msra.mxu0 0.0
    %2036 = vmatprep.subr.mxu0 0.0
    %2037 = vmatpush2.msra.mxu0 0.0
    %2038 = vmatprep.subr.mxu0 0.0
    %2039 = vmatpush2.msra.mxu0 0.0
    %2040 = vmatprep.subr.mxu0 0.0
    %2041 = vmatpush2.msra.mxu0 0.0
    %2042 = vmatprep.subr.mxu0 0.0
    %2043 = vmatpush2.msra.mxu0 0.0
    %2044 = vmatprep.subr.mxu0 0.0
    %2045 = vmatpush2.msra.mxu0 0.0
    %2046 = vmatprep.subr.mxu0 0.0
    %2047 = vmatpush2.msra.mxu0 0.0
    %2048 = vmatprep.mubr.f32.mxu0 0.0
    %2049 = vmatmul.mubr.f32.gmra.mxu0 %v1808
    %v2050 = vpop.f32.mrf.mxu0
    %v2051 = vadd.f32 0.0, %v2050
    %v2052 = vpop.f32.mrf.mxu0
    %2053 = vdwg.mxu0
    %v2054 = vadd.f32 %v319, %v2051
    %v2055 = vxor.u32 %v2054, 2147483648
    %v2056 = vmul.f32 %v2055, 1.442695
    %v2057 = vpow.pop %v2056
    %v2058 = vadd.f32 %v2057, 1.0
    %v2059 = vrcp.pop %v2058
    %v2060 = vmul.f32 1.0, %v2059
    %v2061 = vadd.f32 %v2051, %v238
    %2063 = vrot.lane.b32.xlu0 %v2061, 32
    %v2064 = vpop.permute.xlu0 %2063
    %v2066 = vmul.f32 %v2060, %v2064
    %2068 = vrot.lane.b32.xlu0 %v2066, 96
    %v2069 = vpop.permute.xlu0 %2068
    %v2071 = vadd.f32 %v319, %v2069
    %v2072 = vtanh.pop %v2071
    %v2073 = vsub.f32 %v1806, %v2072
    %2075 = vrot.lane.b32.xlu0 %v2073, 64
    %v2076 = vpop.permute.xlu0 %2075
    %v2078 = vmul.f32 %v2060, %v2076
    %2080 = vrot.lane.b32.xlu0 %v2078, 64
    %v2081 = vpop.permute.xlu0 %2080
    %v2083 = vadd.f32 %v2072, %v2081
    %v2085 = vsel %vm248, %v2083, 0
    %2087 = vmatprep.subr.mxu0 0.0
    %2088 = vmatpush1.msra.mxu0 0.0
    %2089 = vmatprep.subr.mxu0 0.0
    %2090 = vmatpush1.msra.mxu0 0.0
    %2091 = vmatprep.subr.mxu0 0.0
    %2092 = vmatpush1.msra.mxu0 0.0
    %2093 = vmatprep.subr.mxu0 0.0
    %2094 = vmatpush1.msra.mxu0 0.0
    %2095 = vmatprep.subr.mxu0 0.0
    %2096 = vmatpush1.msra.mxu0 0.0
    %2097 = vmatprep.subr.mxu0 0.0
    %2098 = vmatpush1.msra.mxu0 0.0
    %2099 = vmatprep.subr.mxu0 0.0
    %2100 = vmatpush1.msra.mxu0 0.0
    %2101 = vmatprep.subr.mxu0 0.0
    %2102 = vmatpush1.msra.mxu0 0.0
    %2103 = vmatprep.subr.mxu0 0.0
    %2104 = vmatpush1.msra.mxu0 0.0
    %2105 = vmatprep.subr.mxu0 0.0
    %2106 = vmatpush1.msra.mxu0 0.0
    %2107 = vmatprep.subr.mxu0 0.0
    %2108 = vmatpush1.msra.mxu0 0.0
    %2109 = vmatprep.subr.mxu0 0.0
    %2110 = vmatpush1.msra.mxu0 0.0
    %2111 = vmatprep.subr.mxu0 0.0
    %2112 = vmatpush1.msra.mxu0 %v208
    %2113 = vmatprep.subr.mxu0 0.0
    %2114 = vmatpush1.msra.mxu0 %v207
    %2115 = vmatprep.subr.mxu0 0.0
    %2116 = vmatpush1.msra.mxu0 %v206
    %2117 = vmatprep.subr.mxu0 0.0
    %2118 = vmatpush1.msra.mxu0 %v205
    %2119 = vmatprep.subr.mxu0 0.0
    %2120 = vmatpush2.msra.mxu0 0.0
    %2121 = vmatprep.subr.mxu0 0.0
    %2122 = vmatpush2.msra.mxu0 0.0
    %2123 = vmatprep.subr.mxu0 0.0
    %2124 = vmatpush2.msra.mxu0 0.0
    %2125 = vmatprep.subr.mxu0 0.0
    %2126 = vmatpush2.msra.mxu0 0.0
    %2127 = vmatprep.subr.mxu0 0.0
    %2128 = vmatpush2.msra.mxu0 0.0
    %2129 = vmatprep.subr.mxu0 0.0
    %2130 = vmatpush2.msra.mxu0 0.0
    %2131 = vmatprep.subr.mxu0 0.0
    %2132 = vmatpush2.msra.mxu0 0.0
    %2133 = vmatprep.subr.mxu0 0.0
    %2134 = vmatpush2.msra.mxu0 0.0
    %2135 = vmatprep.subr.mxu0 0.0
    %2136 = vmatpush2.msra.mxu0 0.0
    %2137 = vmatprep.subr.mxu0 0.0
    %2138 = vmatpush2.msra.mxu0 0.0
    %2139 = vmatprep.subr.mxu0 0.0
    %2140 = vmatpush2.msra.mxu0 0.0
    %2141 = vmatprep.subr.mxu0 0.0
    %2142 = vmatpush2.msra.mxu0 0.0
    %2143 = vmatprep.subr.mxu0 0.0
    %2144 = vmatpush2.msra.mxu0 0.0
    %2145 = vmatprep.subr.mxu0 0.0
    %2146 = vmatpush2.msra.mxu0 0.0
    %2147 = vmatprep.subr.mxu0 0.0
    %2148 = vmatpush2.msra.mxu0 0.0
    %2149 = vmatprep.subr.mxu0 0.0
    %2150 = vmatpush2.msra.mxu0 0.0
    %2151 = vmatprep.mubr.f32.mxu0 0.0
    %2152 = vmatmul.mubr.f32.gmra.mxu0 %v2085
    %v2153 = vpop.f32.mrf.mxu0
    %v2154 = vadd.f32 %v231, %v2153
    %v2155 = vpop.f32.mrf.mxu0
    %2156 = vdwg.mxu0
    %v2158 = vsel %vm248, %v1982, 0
    %2160 = vmatprep.subr.mxu0 0.0
    %2161 = vmatpush1.msra.mxu0 0.0
    %2162 = vmatprep.subr.mxu0 0.0
    %2163 = vmatpush1.msra.mxu0 0.0
    %2164 = vmatprep.subr.mxu0 0.0
    %2165 = vmatpush1.msra.mxu0 0.0
    %2166 = vmatprep.subr.mxu0 0.0
    %2167 = vmatpush1.msra.mxu0 0.0
    %2168 = vmatprep.subr.mxu0 0.0
    %2169 = vmatpush1.msra.mxu0 0.0
    %2170 = vmatprep.subr.mxu0 0.0
    %2171 = vmatpush1.msra.mxu0 0.0
    %2172 = vmatprep.subr.mxu0 0.0
    %2173 = vmatpush1.msra.mxu0 0.0
    %2174 = vmatprep.subr.mxu0 0.0
    %2175 = vmatpush1.msra.mxu0 0.0
    %2176 = vmatprep.subr.mxu0 0.0
    %2177 = vmatpush1.msra.mxu0 0.0
    %2178 = vmatprep.subr.mxu0 0.0
    %2179 = vmatpush1.msra.mxu0 0.0
    %2180 = vmatprep.subr.mxu0 0.0
    %2181 = vmatpush1.msra.mxu0 0.0
    %2182 = vmatprep.subr.mxu0 0.0
    %2183 = vmatpush1.msra.mxu0 0.0
    %2184 = vmatprep.subr.mxu0 0.0
    %2185 = vmatpush1.msra.mxu0 %v217
    %2186 = vmatprep.subr.mxu0 0.0
    %2187 = vmatpush1.msra.mxu0 %v216
    %2188 = vmatprep.subr.mxu0 0.0
    %2189 = vmatpush1.msra.mxu0 %v215
    %2190 = vmatprep.subr.mxu0 0.0
    %2191 = vmatpush1.msra.mxu0 %v214
    %2192 = vmatprep.subr.mxu0 0.0
    %2193 = vmatpush2.msra.mxu0 0.0
    %2194 = vmatprep.subr.mxu0 0.0
    %2195 = vmatpush2.msra.mxu0 0.0
    %2196 = vmatprep.subr.mxu0 0.0
    %2197 = vmatpush2.msra.mxu0 0.0
    %2198 = vmatprep.subr.mxu0 0.0
    %2199 = vmatpush2.msra.mxu0 0.0
    %2200 = vmatprep.subr.mxu0 0.0
    %2201 = vmatpush2.msra.mxu0 0.0
    %2202 = vmatprep.subr.mxu0 0.0
    %2203 = vmatpush2.msra.mxu0 0.0
    %2204 = vmatprep.subr.mxu0 0.0
    %2205 = vmatpush2.msra.mxu0 0.0
    %2206 = vmatprep.subr.mxu0 0.0
    %2207 = vmatpush2.msra.mxu0 0.0
    %2208 = vmatprep.subr.mxu0 0.0
    %2209 = vmatpush2.msra.mxu0 0.0
    %2210 = vmatprep.subr.mxu0 0.0
    %2211 = vmatpush2.msra.mxu0 0.0
    %2212 = vmatprep.subr.mxu0 0.0
    %2213 = vmatpush2.msra.mxu0 0.0
    %2214 = vmatprep.subr.mxu0 0.0
    %2215 = vmatpush2.msra.mxu0 0.0
    %2216 = vmatprep.subr.mxu0 0.0
    %2217 = vmatpush2.msra.mxu0 0.0
    %2218 = vmatprep.subr.mxu0 0.0
    %2219 = vmatpush2.msra.mxu0 0.0
    %2220 = vmatprep.subr.mxu0 0.0
    %2221 = vmatpush2.msra.mxu0 0.0
    %2222 = vmatprep.subr.mxu0 0.0
    %2223 = vmatpush2.msra.mxu0 0.0
    %2224 = vmatprep.mubr.f32.mxu0 0.0
    %2225 = vmatmul.mubr.f32.gmra.mxu0 %v2158
    %v2226 = vpop.f32.mrf.mxu0
    %v2227 = vadd.f32 0.0, %v2226
    %v2228 = vpop.f32.mrf.mxu0
    %2229 = vdwg.mxu0
    %v2230 = vadd.f32 %v2154, %v2227
    %v2231 = vxor.u32 %v2230, 2147483648
    %v2232 = vmul.f32 %v2231, 1.442695
    %v2233 = vpow.pop %v2232
    %v2234 = vadd.f32 %v2233, 1.0
    %v2235 = vrcp.pop %v2234
    %v2236 = vmul.f32 1.0, %v2235
    %v2237 = vadd.f32 %v2227, %v246
    %2239 = vrot.lane.b32.xlu0 %v2237, 32
    %v2240 = vpop.permute.xlu0 %2239
    %v2242 = vmul.f32 %v2236, %v2240
    %2244 = vrot.lane.b32.xlu0 %v2242, 96
    %v2245 = vpop.permute.xlu0 %2244
    %v2247 = vadd.f32 %v2154, %v2245
    %v2248 = vtanh.pop %v2247
    %v2249 = vsub.f32 %v1982, %v2248
    %2251 = vrot.lane.b32.xlu0 %v2249, 64
    %v2252 = vpop.permute.xlu0 %2251
    %v2254 = vmul.f32 %v2236, %v2252
    %2256 = vrot.lane.b32.xlu0 %v2254, 64
    %v2257 = vpop.permute.xlu0 %2256
    %v2259 = vadd.f32 %v2248, %v2257
    %v2260 = vadd.f32 %v1983, %v2259
    %2261 = vmatprep.subr.mxu0 0.0
    %2262 = vmatpush1.msra.mxu0 0.0
    %2263 = vmatprep.subr.mxu0 0.0
    %2264 = vmatpush1.msra.mxu0 0.0
    %2265 = vmatprep.subr.mxu0 0.0
    %2266 = vmatpush1.msra.mxu0 0.0
    %2267 = vmatprep.subr.mxu0 0.0
    %2268 = vmatpush1.msra.mxu0 0.0
    %2269 = vmatprep.subr.mxu0 0.0
    %2270 = vmatpush1.msra.mxu0 0.0
    %2271 = vmatprep.subr.mxu0 0.0
    %2272 = vmatpush1.msra.mxu0 0.0
    %2273 = vmatprep.subr.mxu0 0.0
    %2274 = vmatpush1.msra.mxu0 0.0
    %2275 = vmatprep.subr.mxu0 0.0
    %2276 = vmatpush1.msra.mxu0 0.0
    %2277 = vmatprep.subr.mxu0 0.0
    %2278 = vmatpush1.msra.mxu0 0.0
    %2279 = vmatprep.subr.mxu0 0.0
    %2280 = vmatpush1.msra.mxu0 0.0
    %2281 = vmatprep.subr.mxu0 0.0
    %2282 = vmatpush1.msra.mxu0 0.0
    %2283 = vmatprep.subr.mxu0 0.0
    %2284 = vmatpush1.msra.mxu0 0.0
    %2285 = vmatprep.subr.mxu0 0.0
    %2286 = vmatpush1.msra.mxu0 %v212
    %2287 = vmatprep.subr.mxu0 0.0
    %2288 = vmatpush1.msra.mxu0 %v211
    %2289 = vmatprep.subr.mxu0 0.0
    %2290 = vmatpush1.msra.mxu0 %v210
    %2291 = vmatprep.subr.mxu0 0.0
    %2292 = vmatpush1.msra.mxu0 %v209
    %2293 = vmatprep.subr.mxu0 0.0
    %2294 = vmatpush2.msra.mxu0 0.0
    %2295 = vmatprep.subr.mxu0 0.0
    %2296 = vmatpush2.msra.mxu0 0.0
    %2297 = vmatprep.subr.mxu0 0.0
    %2298 = vmatpush2.msra.mxu0 0.0
    %2299 = vmatprep.subr.mxu0 0.0
    %2300 = vmatpush2.msra.mxu0 0.0
    %2301 = vmatprep.subr.mxu0 0.0
    %2302 = vmatpush2.msra.mxu0 0.0
    %2303 = vmatprep.subr.mxu0 0.0
    %2304 = vmatpush2.msra.mxu0 0.0
    %2305 = vmatprep.subr.mxu0 0.0
    %2306 = vmatpush2.msra.mxu0 0.0
    %2307 = vmatprep.subr.mxu0 0.0
    %2308 = vmatpush2.msra.mxu0 0.0
    %2309 = vmatprep.subr.mxu0 0.0
    %2310 = vmatpush2.msra.mxu0 0.0
    %2311 = vmatprep.subr.mxu0 0.0
    %2312 = vmatpush2.msra.mxu0 0.0
    %2313 = vmatprep.subr.mxu0 0.0
    %2314 = vmatpush2.msra.mxu0 0.0
    %2315 = vmatprep.subr.mxu0 0.0
    %2316 = vmatpush2.msra.mxu0 0.0
    %2317 = vmatprep.subr.mxu0 0.0
    %2318 = vmatpush2.msra.mxu0 0.0
    %2319 = vmatprep.subr.mxu0 0.0
    %2320 = vmatpush2.msra.mxu0 0.0
    %2321 = vmatprep.subr.mxu0 0.0
    %2322 = vmatpush2.msra.mxu0 0.0
    %2323 = vmatprep.subr.mxu0 0.0
    %2324 = vmatpush2.msra.mxu0 0.0
    %2325 = vmatprep.mubr.f32.mxu0 0.0
    %2326 = vmatmul.mubr.f32.gmra.mxu0 %v2085
    %v2327 = vpop.f32.mrf.mxu0
    %v2328 = vadd.f32 0.0, %v2327
    %v2329 = vpop.f32.mrf.mxu0
    %2330 = vdwg.mxu0
    %v2331 = vadd.f32 %v319, %v2328
    %v2332 = vxor.u32 %v2331, 2147483648
    %v2333 = vmul.f32 %v2332, 1.442695
    %v2334 = vpow.pop %v2333
    %v2335 = vadd.f32 %v2334, 1.0
    %v2336 = vrcp.pop %v2335
    %v2337 = vmul.f32 1.0, %v2336
    %v2338 = vadd.f32 %v2328, %v238
    %2340 = vrot.lane.b32.xlu0 %v2338, 32
    %v2341 = vpop.permute.xlu0 %2340
    %v2343 = vmul.f32 %v2337, %v2341
    %2345 = vrot.lane.b32.xlu0 %v2343, 96
    %v2346 = vpop.permute.xlu0 %2345
    %v2348 = vadd.f32 %v319, %v2346
    %v2349 = vtanh.pop %v2348
    %v2350 = vsub.f32 %v2083, %v2349
    %2352 = vrot.lane.b32.xlu0 %v2350, 64
    %v2353 = vpop.permute.xlu0 %2352
    %v2355 = vmul.f32 %v2337, %v2353
    %2357 = vrot.lane.b32.xlu0 %v2355, 64
    %v2358 = vpop.permute.xlu0 %2357
    %v2360 = vadd.f32 %v2349, %v2358
    %v2362 = vsel %vm248, %v2360, 0
    %2364 = vmatprep.subr.mxu0 0.0
    %2365 = vmatpush1.msra.mxu0 0.0
    %2366 = vmatprep.subr.mxu0 0.0
    %2367 = vmatpush1.msra.mxu0 0.0
    %2368 = vmatprep.subr.mxu0 0.0
    %2369 = vmatpush1.msra.mxu0 0.0
    %2370 = vmatprep.subr.mxu0 0.0
    %2371 = vmatpush1.msra.mxu0 0.0
    %2372 = vmatprep.subr.mxu0 0.0
    %2373 = vmatpush1.msra.mxu0 0.0
    %2374 = vmatprep.subr.mxu0 0.0
    %2375 = vmatpush1.msra.mxu0 0.0
    %2376 = vmatprep.subr.mxu0 0.0
    %2377 = vmatpush1.msra.mxu0 0.0
    %2378 = vmatprep.subr.mxu0 0.0
    %2379 = vmatpush1.msra.mxu0 0.0
    %2380 = vmatprep.subr.mxu0 0.0
    %2381 = vmatpush1.msra.mxu0 0.0
    %2382 = vmatprep.subr.mxu0 0.0
    %2383 = vmatpush1.msra.mxu0 0.0
    %2384 = vmatprep.subr.mxu0 0.0
    %2385 = vmatpush1.msra.mxu0 0.0
    %2386 = vmatprep.subr.mxu0 0.0
    %2387 = vmatpush1.msra.mxu0 0.0
    %2388 = vmatprep.subr.mxu0 0.0
    %2389 = vmatpush1.msra.mxu0 %v208
    %2390 = vmatprep.subr.mxu0 0.0
    %2391 = vmatpush1.msra.mxu0 %v207
    %2392 = vmatprep.subr.mxu0 0.0
    %2393 = vmatpush1.msra.mxu0 %v206
    %2394 = vmatprep.subr.mxu0 0.0
    %2395 = vmatpush1.msra.mxu0 %v205
    %2396 = vmatprep.subr.mxu0 0.0
    %2397 = vmatpush2.msra.mxu0 0.0
    %2398 = vmatprep.subr.mxu0 0.0
    %2399 = vmatpush2.msra.mxu0 0.0
    %2400 = vmatprep.subr.mxu0 0.0
    %2401 = vmatpush2.msra.mxu0 0.0
    %2402 = vmatprep.subr.mxu0 0.0
    %2403 = vmatpush2.msra.mxu0 0.0
    %2404 = vmatprep.subr.mxu0 0.0
    %2405 = vmatpush2.msra.mxu0 0.0
    %2406 = vmatprep.subr.mxu0 0.0
    %2407 = vmatpush2.msra.mxu0 0.0
    %2408 = vmatprep.subr.mxu0 0.0
    %2409 = vmatpush2.msra.mxu0 0.0
    %2410 = vmatprep.subr.mxu0 0.0
    %2411 = vmatpush2.msra.mxu0 0.0
    %2412 = vmatprep.subr.mxu0 0.0
    %2413 = vmatpush2.msra.mxu0 0.0
    %2414 = vmatprep.subr.mxu0 0.0
    %2415 = vmatpush2.msra.mxu0 0.0
    %2416 = vmatprep.subr.mxu0 0.0
    %2417 = vmatpush2.msra.mxu0 0.0
    %2418 = vmatprep.subr.mxu0 0.0
    %2419 = vmatpush2.msra.mxu0 0.0
    %2420 = vmatprep.subr.mxu0 0.0
    %2421 = vmatpush2.msra.mxu0 0.0
    %2422 = vmatprep.subr.mxu0 0.0
    %2423 = vmatpush2.msra.mxu0 0.0
    %2424 = vmatprep.subr.mxu0 0.0
    %2425 = vmatpush2.msra.mxu0 0.0
    %2426 = vmatprep.subr.mxu0 0.0
    %2427 = vmatpush2.msra.mxu0 0.0
    %2428 = vmatprep.mubr.f32.mxu0 0.0
    %2429 = vmatmul.mubr.f32.gmra.mxu0 %v2362
    %v2430 = vpop.f32.mrf.mxu0
    %v2431 = vadd.f32 %v231, %v2430
    %v2432 = vpop.f32.mrf.mxu0
    %2433 = vdwg.mxu0
    %v2435 = vsel %vm248, %v2259, 0
    %2437 = vmatprep.subr.mxu0 0.0
    %2438 = vmatpush1.msra.mxu0 0.0
    %2439 = vmatprep.subr.mxu0 0.0
    %2440 = vmatpush1.msra.mxu0 0.0
    %2441 = vmatprep.subr.mxu0 0.0
    %2442 = vmatpush1.msra.mxu0 0.0
    %2443 = vmatprep.subr.mxu0 0.0
    %2444 = vmatpush1.msra.mxu0 0.0
    %2445 = vmatprep.subr.mxu0 0.0
    %2446 = vmatpush1.msra.mxu0 0.0
    %2447 = vmatprep.subr.mxu0 0.0
    %2448 = vmatpush1.msra.mxu0 0.0
    %2449 = vmatprep.subr.mxu0 0.0
    %2450 = vmatpush1.msra.mxu0 0.0
    %2451 = vmatprep.subr.mxu0 0.0
    %2452 = vmatpush1.msra.mxu0 0.0
    %2453 = vmatprep.subr.mxu0 0.0
    %2454 = vmatpush1.msra.mxu0 0.0
    %2455 = vmatprep.subr.mxu0 0.0
    %2456 = vmatpush1.msra.mxu0 0.0
    %2457 = vmatprep.subr.mxu0 0.0
    %2458 = vmatpush1.msra.mxu0 0.0
    %2459 = vmatprep.subr.mxu0 0.0
    %2460 = vmatpush1.msra.mxu0 0.0
    %2461 = vmatprep.subr.mxu0 0.0
    %2462 = vmatpush1.msra.mxu0 %v217
    %2463 = vmatprep.subr.mxu0 0.0
    %2464 = vmatpush1.msra.mxu0 %v216
    %2465 = vmatprep.subr.mxu0 0.0
    %2466 = vmatpush1.msra.mxu0 %v215
    %2467 = vmatprep.subr.mxu0 0.0
    %2468 = vmatpush1.msra.mxu0 %v214
    %2469 = vmatprep.subr.mxu0 0.0
    %2470 = vmatpush2.msra.mxu0 0.0
    %2471 = vmatprep.subr.mxu0 0.0
    %2472 = vmatpush2.msra.mxu0 0.0
    %2473 = vmatprep.subr.mxu0 0.0
    %2474 = vmatpush2.msra.mxu0 0.0
    %2475 = vmatprep.subr.mxu0 0.0
    %2476 = vmatpush2.msra.mxu0 0.0
    %2477 = vmatprep.subr.mxu0 0.0
    %2478 = vmatpush2.msra.mxu0 0.0
    %2479 = vmatprep.subr.mxu0 0.0
    %2480 = vmatpush2.msra.mxu0 0.0
    %2481 = vmatprep.subr.mxu0 0.0
    %2482 = vmatpush2.msra.mxu0 0.0
    %2483 = vmatprep.subr.mxu0 0.0
    %2484 = vmatpush2.msra.mxu0 0.0
    %2485 = vmatprep.subr.mxu0 0.0
    %2486 = vmatpush2.msra.mxu0 0.0
    %2487 = vmatprep.subr.mxu0 0.0
    %2488 = vmatpush2.msra.mxu0 0.0
    %2489 = vmatprep.subr.mxu0 0.0
    %2490 = vmatpush2.msra.mxu0 0.0
    %2491 = vmatprep.subr.mxu0 0.0
    %2492 = vmatpush2.msra.mxu0 0.0
    %2493 = vmatprep.subr.mxu0 0.0
    %2494 = vmatpush2.msra.mxu0 0.0
    %2495 = vmatprep.subr.mxu0 0.0
    %2496 = vmatpush2.msra.mxu0 0.0
    %2497 = vmatprep.subr.mxu0 0.0
    %2498 = vmatpush2.msra.mxu0 0.0
    %2499 = vmatprep.subr.mxu0 0.0
    %2500 = vmatpush2.msra.mxu0 0.0
    %2501 = vmatprep.mubr.f32.mxu0 0.0
    %2502 = vmatmul.mubr.f32.gmra.mxu0 %v2435
    %v2503 = vpop.f32.mrf.mxu0
    %v2504 = vadd.f32 0.0, %v2503
    %v2505 = vpop.f32.mrf.mxu0
    %2506 = vdwg.mxu0
    %v2507 = vadd.f32 %v2431, %v2504
    %v2508 = vxor.u32 %v2507, 2147483648
    %v2509 = vmul.f32 %v2508, 1.442695
    %v2510 = vpow.pop %v2509
    %v2511 = vadd.f32 %v2510, 1.0
    %v2512 = vrcp.pop %v2511
    %v2513 = vmul.f32 1.0, %v2512
    %v2514 = vadd.f32 %v2504, %v246
    %2516 = vrot.lane.b32.xlu0 %v2514, 32
    %v2517 = vpop.permute.xlu0 %2516
    %v2519 = vmul.f32 %v2513, %v2517
    %2521 = vrot.lane.b32.xlu0 %v2519, 96
    %v2522 = vpop.permute.xlu0 %2521
    %v2524 = vadd.f32 %v2431, %v2522
    %v2525 = vtanh.pop %v2524
    %v2526 = vsub.f32 %v2259, %v2525
    %2528 = vrot.lane.b32.xlu0 %v2526, 64
    %v2529 = vpop.permute.xlu0 %2528
    %v2531 = vmul.f32 %v2513, %v2529
    %2533 = vrot.lane.b32.xlu0 %v2531, 64
    %v2534 = vpop.permute.xlu0 %2533
    %v2536 = vadd.f32 %v2525, %v2534
    %v2537 = vadd.f32 %v2260, %v2536
    %v2538 = vmul.f32 %v2537, 0.125
    %v2539 = vld [vmem:[#allocation10] sm:$0xff]
    %v2540 = vld [vmem:[#allocation10 + $0x8] sm:$0xff]
    %v2541 = vld [vmem:[#allocation10 + $0x10] sm:$0xff]
    %v2542 = vld [vmem:[#allocation10 + $0x18] sm:$0xff]
    %v2543 = vld [vmem:[%s8] sm:$0xff]
    %v2545 = vsel %vm248, %v2538, 0
    %2547 = vmatprep.subr.mxu0 0.0
    %2548 = vmatpush1.msra.mxu0 0.0
    %2549 = vmatprep.subr.mxu0 0.0
    %2550 = vmatpush1.msra.mxu0 0.0
    %2551 = vmatprep.subr.mxu0 0.0
    %2552 = vmatpush1.msra.mxu0 0.0
    %2553 = vmatprep.subr.mxu0 0.0
    %2554 = vmatpush1.msra.mxu0 0.0
    %2555 = vmatprep.subr.mxu0 0.0
    %2556 = vmatpush1.msra.mxu0 0.0
    %2557 = vmatprep.subr.mxu0 0.0
    %2558 = vmatpush1.msra.mxu0 0.0
    %2559 = vmatprep.subr.mxu0 0.0
    %2560 = vmatpush1.msra.mxu0 0.0
    %2561 = vmatprep.subr.mxu0 0.0
    %2562 = vmatpush1.msra.mxu0 0.0
    %2563 = vmatprep.subr.mxu0 0.0
    %2564 = vmatpush1.msra.mxu0 0.0
    %2565 = vmatprep.subr.mxu0 0.0
    %2566 = vmatpush1.msra.mxu0 0.0
    %2567 = vmatprep.subr.mxu0 0.0
    %2568 = vmatpush1.msra.mxu0 0.0
    %2569 = vmatprep.subr.mxu0 0.0
    %2570 = vmatpush1.msra.mxu0 0.0
    %2571 = vmatprep.subr.mxu0 0.0
    %2572 = vmatpush1.msra.mxu0 %v2542
    %2573 = vmatprep.subr.mxu0 0.0
    %2574 = vmatpush1.msra.mxu0 %v2541
    %2575 = vmatprep.subr.mxu0 0.0
    %2576 = vmatpush1.msra.mxu0 %v2540
    %2577 = vmatprep.subr.mxu0 0.0
    %2578 = vmatpush1.msra.mxu0 %v2539
    %2579 = vmatprep.subr.mxu0 0.0
    %2580 = vmatpush2.msra.mxu0 0.0
    %2581 = vmatprep.subr.mxu0 0.0
    %2582 = vmatpush2.msra.mxu0 0.0
    %2583 = vmatprep.subr.mxu0 0.0
    %2584 = vmatpush2.msra.mxu0 0.0
    %2585 = vmatprep.subr.mxu0 0.0
    %2586 = vmatpush2.msra.mxu0 0.0
    %2587 = vmatprep.subr.mxu0 0.0
    %2588 = vmatpush2.msra.mxu0 0.0
    %2589 = vmatprep.subr.mxu0 0.0
    %2590 = vmatpush2.msra.mxu0 0.0
    %2591 = vmatprep.subr.mxu0 0.0
    %2592 = vmatpush2.msra.mxu0 0.0
    %2593 = vmatprep.subr.mxu0 0.0
    %2594 = vmatpush2.msra.mxu0 0.0
    %2595 = vmatprep.subr.mxu0 0.0
    %2596 = vmatpush2.msra.mxu0 0.0
    %2597 = vmatprep.subr.mxu0 0.0
    %2598 = vmatpush2.msra.mxu0 0.0
    %2599 = vmatprep.subr.mxu0 0.0
    %2600 = vmatpush2.msra.mxu0 0.0
    %2601 = vmatprep.subr.mxu0 0.0
    %2602 = vmatpush2.msra.mxu0 0.0
    %2603 = vmatprep.subr.mxu0 0.0
    %2604 = vmatpush2.msra.mxu0 0.0
    %2605 = vmatprep.subr.mxu0 0.0
    %2606 = vmatpush2.msra.mxu0 0.0
    %2607 = vmatprep.subr.mxu0 0.0
    %2608 = vmatpush2.msra.mxu0 0.0
    %2609 = vmatprep.subr.mxu0 0.0
    %2610 = vmatpush2.msra.mxu0 0.0
    %2611 = vmatprep.mubr.f32.mxu0 0.0
    %2612 = vmatmul.mubr.f32.gmra.mxu0 %v2545
    %v2613 = vpop.f32.mrf.mxu0
    %v2614 = vadd.f32 %v2543, %v2613
    %v2615 = vpop.f32.mrf.mxu0
    %2616 = vdwg.mxu0
    %vm2617 = vcmp.ge.f32.partialorder %v2614, 0.0
    %v2618 = vsel %vm2617, 1, 0
    %v2619 = vcvt.s32.f32 %v2618
    %v2620 = vld [vmem:[#allocation11] sm:$0xff]
    %v2621 = vld [vmem:[#allocation11 + $0x8] sm:$0xff]
    %v2622 = vld [vmem:[#allocation11 + $0x10] sm:$0xff]
    %v2623 = vld [vmem:[#allocation11 + $0x18] sm:$0xff]
    %v2624 = vld [vmem:[#allocation11 + $0x20] sm:$0xff]
    %v2625 = vld [vmem:[#allocation11 + $0x28] sm:$0xff]
    %v2626 = vld [vmem:[#allocation11 + $0x30] sm:$0xff]
    %v2627 = vld [vmem:[#allocation11 + $0x38] sm:$0xff]
    %v2628 = vld [vmem:[#allocation11 + $0x40] sm:$0xff]
    %v2629 = vld [vmem:[#allocation11 + $0x48] sm:$0xff]
    %v2630 = vld [vmem:[#allocation11 + $0x50] sm:$0xff]
    %v2631 = vld [vmem:[#allocation11 + $0x58] sm:$0xff]
    %v2632 = vld [vmem:[#allocation11 + $0x60] sm:$0xff]
    %v2633 = vld [vmem:[#allocation11 + $0x68] sm:$0xff]
    %v2634 = vld [vmem:[#allocation11 + $0x70] sm:$0xff]
    %v2635 = vld [vmem:[#allocation11 + $0x78] sm:$0xff]
    %2636 = vmatprep.subr.mxu0 0.0
    %2637 = vmatpush1.msra.mxu0 %v2635
    %2638 = vmatprep.subr.mxu0 0.0
    %2639 = vmatpush1.msra.mxu0 %v2634
    %2640 = vmatprep.subr.mxu0 0.0
    %2641 = vmatpush1.msra.mxu0 %v2633
    %2642 = vmatprep.subr.mxu0 0.0
    %2643 = vmatpush1.msra.mxu0 %v2632
    %2644 = vmatprep.subr.mxu0 0.0
    %2645 = vmatpush1.msra.mxu0 %v2631
    %2646 = vmatprep.subr.mxu0 0.0
    %2647 = vmatpush1.msra.mxu0 %v2630
    %2648 = vmatprep.subr.mxu0 0.0
    %2649 = vmatpush1.msra.mxu0 %v2629
    %2650 = vmatprep.subr.mxu0 0.0
    %2651 = vmatpush1.msra.mxu0 %v2628
    %2652 = vmatprep.subr.mxu0 0.0
    %2653 = vmatpush1.msra.mxu0 %v2627
    %2654 = vmatprep.subr.mxu0 0.0
    %2655 = vmatpush1.msra.mxu0 %v2626
    %2656 = vmatprep.subr.mxu0 0.0
    %2657 = vmatpush1.msra.mxu0 %v2625
    %2658 = vmatprep.subr.mxu0 0.0
    %2659 = vmatpush1.msra.mxu0 %v2624
    %2660 = vmatprep.subr.mxu0 0.0
    %2661 = vmatpush1.msra.mxu0 %v2623
    %2662 = vmatprep.subr.mxu0 0.0
    %2663 = vmatpush1.msra.mxu0 %v2622
    %2664 = vmatprep.subr.mxu0 0.0
    %2665 = vmatpush1.msra.mxu0 %v2621
    %2666 = vmatprep.subr.mxu0 0.0
    %2667 = vmatpush1.msra.mxu0 %v2620
    %2668 = vmatprep.subr.mxu0 0.0
    %2669 = vmatpush2.msra.mxu0 0.0
    %2670 = vmatprep.subr.mxu0 0.0
    %2671 = vmatpush2.msra.mxu0 0.0
    %2672 = vmatprep.subr.mxu0 0.0
    %2673 = vmatpush2.msra.mxu0 0.0
    %2674 = vmatprep.subr.mxu0 0.0
    %2675 = vmatpush2.msra.mxu0 0.0
    %2676 = vmatprep.subr.mxu0 0.0
    %2677 = vmatpush2.msra.mxu0 0.0
    %2678 = vmatprep.subr.mxu0 0.0
    %2679 = vmatpush2.msra.mxu0 0.0
    %2680 = vmatprep.subr.mxu0 0.0
    %2681 = vmatpush2.msra.mxu0 0.0
    %2682 = vmatprep.subr.mxu0 0.0
    %2683 = vmatpush2.msra.mxu0 0.0
    %2684 = vmatprep.subr.mxu0 0.0
    %2685 = vmatpush2.msra.mxu0 0.0
    %2686 = vmatprep.subr.mxu0 0.0
    %2687 = vmatpush2.msra.mxu0 0.0
    %2688 = vmatprep.subr.mxu0 0.0
    %2689 = vmatpush2.msra.mxu0 0.0
    %2690 = vmatprep.subr.mxu0 0.0
    %2691 = vmatpush2.msra.mxu0 0.0
    %2692 = vmatprep.subr.mxu0 0.0
    %2693 = vmatpush2.msra.mxu0 0.0
    %2694 = vmatprep.subr.mxu0 0.0
    %2695 = vmatpush2.msra.mxu0 0.0
    %2696 = vmatprep.subr.mxu0 0.0
    %2697 = vmatpush2.msra.mxu0 0.0
    %2698 = vmatprep.subr.mxu0 0.0
    %2699 = vmatpush2.msra.mxu0 0.0
    %2700 = vmatprep.mubr.f32.mxu0 0.0
    %2701 = vmatmul.mubr.f32.gmra.mxu0 %v2619
    %v2702 = vpop.f32.mrf.mxu0
    %v2703 = vadd.f32 0.0, %v2702
    %v2704 = vpop.f32.mrf.mxu0
    %2705 = vdwg.mxu0
    %2706 = vst [vmem:[#allocation13] sm:$0xff] %v2703
    // Predicated region
    $region66: #{tpu_custom_call.1} parent=1 // pred_check
      _
    $region67: #{tpu_custom_call.1} parent=1 // pred_check_branch
      %2708 = sbr.rel (0) target = $region69
    $region68: #{tpu_custom_call.1} parent=1 // pred_region
      %s2710 = ssub.s32 128, 128
      %2711 = vsyncadd [#allocation4], %s2710
      %s2713 = sshll.u32 [#allocation13], 4
      %s2714 = int_to_ptr.vmem [resolvable:$true] %s2713
      %2716 = dma.vmem_to_hbm [thread:$0]  %s2714, 128, %s10, [#allocation4]
    $region69: #{tpu_custom_call.1} parent=1 // pred_fallthru
      _
    // Predicated region
    $region70: #{tpu_custom_call.1} parent=1 // pred_check
      _
    $region71: #{tpu_custom_call.1} parent=1 // pred_check_branch
      %2718 = sbr.rel (0) target = $region73
    $region72: #{tpu_custom_call.1} parent=1 // pred_region
      %2719 = dma.done [#allocation4], 128
    $region73: #{tpu_custom_call.1} parent=1 // pred_fallthru
      _
    %2720 = vsyncpa [#allocation3], 1
    %2721 = vsyncpa [#allocation6], 1
    %2722 = vsyncpa [#allocation9], 1
    %2723 = vsyncpa [#allocation12], 1
    %2724 = vsyncpa [#allocation4], 1

</llo_original>
